<compile_context>
chip_gen: v6e
topology: v6e:2x2x1
jax: 0.10.0
libtpu: 0.0.40
codegen_flags: <defaults>
</compile_context>

<pallas_src>
import jax
import jax.numpy as jnp
from jax.experimental import pallas as pl
from jax.experimental.pallas import tpu as pltpu

# ---------------- model hyper-parameters (small, deterministic) ----------------
VOCAB = 64
EMBED = 32
HIDDEN = 32
LAYERS = 2
BATCH = 2
SEQ = 8


# --------------------------------- kernel --------------------------------------
def _make_kernel(num_layers: int, seq_len: int, batch: int, hidden: int, vocab: int):
    H, B, S, V, L = hidden, batch, seq_len, vocab, num_layers
    G = 4 * H
    BP = ((batch + 7) // 8) * 8          # sublane-padded internal batch (>= 8)

    def kernel(*refs):
        # ref order: ids (scalar-prefetch, SMEM), tab0, b0, whh0,
        #            (w_fused_l, b_fused_l) for l = 1..L-1, w_fc, b_fc,
        #            logits, h_n, c_n
        ids_ref = refs[0]
        tab0_ref, b0_ref, whh0_ref = refs[1], refs[2], refs[3]
        fused_refs = [(refs[4 + 2 * i], refs[5 + 2 * i]) for i in range(L - 1)]
        wfc_ref = refs[4 + 2 * (L - 1)]
        bfc_ref = refs[5 + 2 * (L - 1)]
        logits_ref, hn_ref, cn_ref = refs[6 + 2 * (L - 1):]

        # ---- token ids -> time-major, sublane-padded one-hot (entirely off the
        #      recurrence chain; rows t*BP+b with b>=B stay all-zero / inert).
        sub = jax.lax.broadcasted_iota(jnp.int32, (S * BP, 1), 0)
        tok = jnp.full((S * BP, 1), -1, jnp.int32)
        for t in range(S):
            for b in range(B):
                tok = jnp.where(sub == (t * BP + b), ids_ref[b, t], tok)
        onehot = (tok == jax.lax.broadcasted_iota(jnp.int32, (S * BP, V), 1)
                  ).astype(jnp.float32)                                   # (S*BP, V)

        # ---- embedding fused with layer-0 input projection: ONE hoisted matmul
        #      for all S timesteps (tab0 = embed @ W_ih0^T, g-cols prescaled).
        gx0 = jnp.dot(onehot, tab0_ref[...],
                      preferred_element_type=jnp.float32) + b0_ref[...]   # (S*BP, G)

        # ---- hoisted activation constants: tanh(x) = 2*sigmoid(2x) - 1 on the
        #      g-gate lanes [2H,3H); plain sigmoid elsewhere.
        col = jax.lax.broadcasted_iota(jnp.int32, (1, G), 1)
        is_g = (col >= 2 * H) & (col < 3 * H)
        a_scale = jnp.where(is_g, 2.0, 1.0).astype(jnp.float32)
        a_shift = jnp.where(is_g, -1.0, 0.0).astype(jnp.float32)

        whh0 = whh0_ref[...]                       # (G,G);  rows >= H are zero
        w_fused = [w[...] for w, _ in fused_refs]  # (2G,G); only rows [0,H) and
        b_fused = [b[...] for _, b in fused_refs]  #         [G,G+H) are non-zero

        def lstm_cell(gates, c_prev):
            # single EUP pass over the full 128-lane gates vreg
            act = jax.nn.sigmoid(gates) * a_scale + a_shift
            # gate alignment on the XLU (independent rolls, off the VPU path);
            # 3 rolls is minimal for the single-block h/c carry.
            f_al = pltpu.roll(act, shift=3 * H, axis=1)   # f -> lanes [0,H)
            g_al = pltpu.roll(act, shift=2 * H, axis=1)   # g -> lanes [0,H)
            o_al = pltpu.roll(act, shift=1 * H, axis=1)   # o -> lanes [0,H)
            c_new = f_al * c_prev + act * g_al            # i already at [0,H)
            h_new = o_al * jnp.tanh(c_new)
            return h_new, c_new

        h = [jnp.zeros((BP, G), jnp.float32) for _ in range(L)]
        c = [jnp.zeros((BP, G), jnp.float32) for _ in range(L)]

        # ---- (layer, timestep) wavefront: S + L - 1 serial steps instead of S*L.
        #      Deeper layers run first within a wavefront step so they consume the
        #      PREVIOUS step's output of the layer below.
        for k in range(S + L - 1):
            for l in reversed(range(L)):
                t = k - l
                if not (0 <= t < S):
                    continue
                if l == 0:
                    # tile-aligned (BP,G) slice of the precomputed gates; only the
                    # recurrent matmul sits on the serial chain.
                    gates = gx0[t * BP:(t + 1) * BP, :] + jnp.dot(
                        h[0], whh0, preferred_element_type=jnp.float32)
                else:
                    # fused input+recurrent projection: one K=2G (=256) MXU pass
                    # on v6e/v7x (two K-passes on v5e).  Zero rows of w_fused
                    # kill the junk lanes [H,4H) of both h vregs.
                    lhs = jnp.concatenate([h[l - 1], h[l]], axis=1)       # (BP, 2G)
                    gates = (jnp.dot(lhs, w_fused[l - 1],
                                     preferred_element_type=jnp.float32)
                             + b_fused[l - 1])
                h[l], c[l] = lstm_cell(gates, c[l])

        for l in range(L):
            hn_ref[l, :, :] = h[l][:B, :H]
            cn_ref[l, :, :] = c[l][:B, :H]

        # final FC on the last layer / last timestep; zero-padded W_fc rows kill
        # the inert lanes, the [:B] slice drops the padded batch rows.
        logits = jnp.dot(h[L - 1], wfc_ref[...],
                         preferred_element_type=jnp.float32) + bfc_ref[...]
        logits_ref[...] = logits[:B, :]

    return kernel


# -------------------------------- wrappers --------------------------------------
def _vmem_full_spec(shape):
    nd = len(shape)
    # index_map signature: (grid_idx, scalar_prefetch_ref) -> block indices
    return pl.BlockSpec(shape, lambda i, _ids, _nd=nd: (0,) * _nd)


def prepare_params(params):
    """One-time glue (outside the per-forward hot path): transpose, zero-pad,
    bias-fold, fuse the embedding into layer-0's projection, fuse layer>=1's
    input+recurrent weights, and fold the 2x g-gate prescale."""
    H, L, V = HIDDEN, LAYERS, VOCAB
    G = 4 * H
    f32 = jnp.float32
    col_scale = jnp.ones((G,), f32).at[2 * H:3 * H].set(2.0)   # tanh-via-sigmoid

    embed = params["embed"].astype(f32)                                   # (V, E)
    w_ih0_t = jnp.transpose(params["w_ih_0"]).astype(f32)                 # (E, G)
    tab0 = jnp.dot(embed, w_ih0_t,
                   precision=jax.lax.Precision.HIGHEST) * col_scale[None, :]  # (V, G)
    b0 = ((params["b_ih_0"] + params["b_hh_0"]).astype(f32)
          * col_scale).reshape(1, G)
    whh0 = jnp.zeros((G, G), f32).at[:H, :].set(
        jnp.transpose(params["w_hh_0"]).astype(f32) * col_scale[None, :])

    prepped = [tab0, b0, whh0]
    for l in range(1, L):
        w_ih_t = jnp.transpose(params[f"w_ih_{l}"]).astype(f32) * col_scale[None, :]
        w_hh_t = jnp.transpose(params[f"w_hh_{l}"]).astype(f32) * col_scale[None, :]
        w_f = (jnp.zeros((2 * G, G), f32)
               .at[:H, :].set(w_ih_t)          # consumes h_{l-1} lanes [0,H)
               .at[G:G + H, :].set(w_hh_t))    # consumes h_l     lanes [0,H)
        b_f = ((params[f"b_ih_{l}"] + params[f"b_hh_{l}"]).astype(f32)
               * col_scale).reshape(1, G)
        prepped += [w_f, b_f]

    wfc = jnp.zeros((G, V), f32).at[:H, :].set(
        jnp.transpose(params["w_fc"]).astype(f32))
    prepped += [wfc, params["b_fc"].astype(f32).reshape(1, V)]
    # TODO(synk): optional bf16 weight storage (keep f32 accumulation) once the
    # reference-tolerance check is loosened accordingly.
    return tuple(prepped)


@jax.jit
def charrnn_forward(x_idx, prepped):
    """Pallas implementation of CharRNN.forward(x, hidden=None)."""
    B, S = x_idx.shape
    H, L, V = HIDDEN, LAYERS, VOCAB

    out_shapes = (
        jax.ShapeDtypeStruct((B, V), jnp.float32),      # logits
        jax.ShapeDtypeStruct((L, B, H), jnp.float32),   # h_n
        jax.ShapeDtypeStruct((L, B, H), jnp.float32),   # c_n
    )
    grid_spec = pltpu.PrefetchScalarGridSpec(
        num_scalar_prefetch=1,                 # raw (B,S) ids land in SMEM
        grid=(1,),
        in_specs=[_vmem_full_spec(a.shape) for a in prepped],
        out_specs=[_vmem_full_spec(s.shape) for s in out_shapes],
    )
    logits, h_n, c_n = pl.pallas_call(
        _make_kernel(L, S, B, H, V),
        out_shape=out_shapes,
        grid_spec=grid_spec,
        # Recurrence is serial; a single grid step is optimal at this size.
        # TODO(synk): add a 'parallel' batch grid axis (2nd v7x TensorCore) once
        # the per-core batch grows beyond one vreg of sublanes.
        compiler_params=pltpu.CompilerParams(
            dimension_semantics=("arbitrary",)),
    )(x_idx.astype(jnp.int32), *prepped)
    return logits, (h_n, c_n)


# ------------------------- pure-JAX reference (for checking) --------------------
def charrnn_reference(x_idx, params):
    x = jnp.take(params["embed"], x_idx, axis=0).astype(jnp.float32)
    B = x.shape[0]
    inp = x
    h_list, c_list = [], []
    for l in range(LAYERS):
        w_ih = params[f"w_ih_{l}"]
        w_hh = params[f"w_hh_{l}"]
        b = params[f"b_ih_{l}"] + params[f"b_hh_{l}"]
        h = jnp.zeros((B, HIDDEN), jnp.float32)
        c = jnp.zeros((B, HIDDEN), jnp.float32)
        outs = []
        for t in range(inp.shape[1]):
            gates = inp[:, t] @ w_ih.T + h @ w_hh.T + b
            i, f, g, o = jnp.split(gates, 4, axis=-1)
            i, f, o = jax.nn.sigmoid(i), jax.nn.sigmoid(f), jax.nn.sigmoid(o)
            g = jnp.tanh(g)
            c = f * c + i * g
            h = o * jnp.tanh(c)
            outs.append(h)
        inp = jnp.stack(outs, axis=1)
        h_list.append(h)
        c_list.append(c)
    logits = inp[:, -1] @ params["w_fc"].T + params["b_fc"]
    return logits, (jnp.stack(h_list), jnp.stack(c_list))


# -------------------------------- parameter init --------------------------------
def init_params(key):
    k = 1.0 / jnp.sqrt(jnp.float32(HIDDEN))
    params = {}
    keys = jax.random.split(key, 4 + 4 * LAYERS)
    params["embed"] = jax.random.normal(keys[0], (VOCAB, EMBED), jnp.float32)
    ki = 1
    for l in range(LAYERS):
        in_dim = EMBED if l == 0 else HIDDEN
        params[f"w_ih_{l}"] = jax.random.uniform(keys[ki], (4 * HIDDEN, in_dim),
                                                 jnp.float32, -k, k); ki += 1
        params[f"w_hh_{l}"] = jax.random.uniform(keys[ki], (4 * HIDDEN, HIDDEN),
                                                 jnp.float32, -k, k); ki += 1
        params[f"b_ih_{l}"] = jax.random.uniform(keys[ki], (4 * HIDDEN,),
                                                 jnp.float32, -k, k); ki += 1
        params[f"b_hh_{l}"] = jax.random.uniform(keys[ki], (4 * HIDDEN,),
                                                 jnp.float32, -k, k); ki += 1
    params["w_fc"] = jax.random.uniform(keys[ki], (VOCAB, HIDDEN),
                                        jnp.float32, -k, k); ki += 1
    params["b_fc"] = jax.random.uniform(keys[ki], (VOCAB,), jnp.float32, -k, k)
    return params


# ----------------------------------- main ---------------------------------------
if __name__ == "__main__":
    key = jax.random.PRNGKey(0)
    pkey, xkey = jax.random.split(key)
    params = init_params(pkey)
    prepped = prepare_params(params)   # one-time, outside the forward hot path
    x = jax.random.randint(xkey, (BATCH, SEQ), 0, VOCAB, dtype=jnp.int32)

    logits, (h_n, c_n) = charrnn_forward(x, prepped)
    jax.block_until_ready((logits, h_n, c_n))

    ref_logits, (ref_h, ref_c) = charrnn_reference(x, params)
    assert logits.shape == (BATCH, VOCAB)
    assert h_n.shape == (LAYERS, BATCH, HIDDEN) and c_n.shape == (LAYERS, BATCH, HIDDEN)
    # tolerance covers the tanh-via-sigmoid reformulation (~1e-5 accumulated);
    # real bugs (gate misalignment / missing prescale) produce O(0.1-1) errors.
    assert jnp.allclose(logits, ref_logits, atol=5e-4, rtol=5e-4)
    assert jnp.allclose(h_n, ref_h, atol=5e-4, rtol=5e-4)
    assert jnp.allclose(c_n, ref_c, atol=5e-4, rtol=5e-4)

    print("KERNEL_OK")
</pallas_src>

<mosaic_0001>
module attributes {stable_mosaic.version = 11 : i64} {
  func.func @kernel(%arg0: i32, %arg1: memref<2x8xi32, #tpu.memory_space<smem>>, %arg2: memref<64x128xf32, #tpu.memory_space<vmem>>, %arg3: memref<1x128xf32, #tpu.memory_space<vmem>>, %arg4: memref<128x128xf32, #tpu.memory_space<vmem>>, %arg5: memref<256x128xf32, #tpu.memory_space<vmem>>, %arg6: memref<1x128xf32, #tpu.memory_space<vmem>>, %arg7: memref<128x64xf32, #tpu.memory_space<vmem>>, %arg8: memref<1x64xf32, #tpu.memory_space<vmem>>, %arg9: memref<2x64xf32, #tpu.memory_space<vmem>>, %arg10: memref<2x2x32xf32, #tpu.memory_space<vmem>>, %arg11: memref<2x2x32xf32, #tpu.memory_space<vmem>>) attributes {dimension_semantics = [#tpu.dimension_semantics<arbitrary>], iteration_bounds = array<i64: 1>, scalar_prefetch = 1 : i64, scratch_operands = 0 : i64, tpu.core_type = #tpu.core_type<tc>, window_params = [{pipeline_mode = #tpu.pipeline_mode<synchronous>, transform_indices = @transform_0, window_bounds = array<i64: 64, 128>}, {pipeline_mode = #tpu.pipeline_mode<synchronous>, transform_indices = @transform_1, window_bounds = array<i64: 1, 128>}, {pipeline_mode = #tpu.pipeline_mode<synchronous>, transform_indices = @transform_2, window_bounds = array<i64: 128, 128>}, {pipeline_mode = #tpu.pipeline_mode<synchronous>, transform_indices = @transform_3, window_bounds = array<i64: 256, 128>}, {pipeline_mode = #tpu.pipeline_mode<synchronous>, transform_indices = @transform_4, window_bounds = array<i64: 1, 128>}, {pipeline_mode = #tpu.pipeline_mode<synchronous>, transform_indices = @transform_5, window_bounds = array<i64: 128, 64>}, {pipeline_mode = #tpu.pipeline_mode<synchronous>, transform_indices = @transform_6, window_bounds = array<i64: 1, 64>}, {pipeline_mode = #tpu.pipeline_mode<synchronous>, transform_indices = @transform_7, window_bounds = array<i64: 2, 64>}, {pipeline_mode = #tpu.pipeline_mode<synchronous>, transform_indices = @transform_8, window_bounds = array<i64: 2, 2, 32>}, {pipeline_mode = #tpu.pipeline_mode<synchronous>, transform_indices = @transform_9, window_bounds = array<i64: 2, 2, 32>}]} {
    %0 = tpu.iota {dimensions = array<i32: 0>} : vector<64x1xi32>
    %c-1_i32 = arith.constant -1 : i32
    %1 = vector.broadcast %c-1_i32 : i32 to vector<64x1xi32>
    %c0_i32 = arith.constant 0 : i32
    %2 = vector.broadcast %c0_i32 : i32 to vector<64x1xi32>
    %3 = arith.cmpi eq, %0, %2 : vector<64x1xi32>
    %c0 = arith.constant 0 : index
    %c0_0 = arith.constant 0 : index
    %4 = memref.load %arg1[%c0, %c0_0] : memref<2x8xi32, #tpu.memory_space<smem>>
    %5 = vector.broadcast %4 : i32 to vector<64x1xi32>
    %6 = arith.select %3, %5, %1 : vector<64x1xi1>, vector<64x1xi32>
    %c1_i32 = arith.constant 1 : i32
    %7 = vector.broadcast %c1_i32 : i32 to vector<64x1xi32>
    %8 = arith.cmpi eq, %0, %7 : vector<64x1xi32>
    %c1 = arith.constant 1 : index
    %c0_1 = arith.constant 0 : index
    %9 = memref.load %arg1[%c1, %c0_1] : memref<2x8xi32, #tpu.memory_space<smem>>
    %10 = vector.broadcast %9 : i32 to vector<64x1xi32>
    %11 = arith.select %8, %10, %6 : vector<64x1xi1>, vector<64x1xi32>
    %c8_i32 = arith.constant 8 : i32
    %12 = vector.broadcast %c8_i32 : i32 to vector<64x1xi32>
    %13 = arith.cmpi eq, %0, %12 : vector<64x1xi32>
    %c0_2 = arith.constant 0 : index
    %c1_3 = arith.constant 1 : index
    %14 = memref.load %arg1[%c0_2, %c1_3] : memref<2x8xi32, #tpu.memory_space<smem>>
    %15 = vector.broadcast %14 : i32 to vector<64x1xi32>
    %16 = arith.select %13, %15, %11 : vector<64x1xi1>, vector<64x1xi32>
    %c9_i32 = arith.constant 9 : i32
    %17 = vector.broadcast %c9_i32 : i32 to vector<64x1xi32>
    %18 = arith.cmpi eq, %0, %17 : vector<64x1xi32>
    %c1_4 = arith.constant 1 : index
    %c1_5 = arith.constant 1 : index
    %19 = memref.load %arg1[%c1_4, %c1_5] : memref<2x8xi32, #tpu.memory_space<smem>>
    %20 = vector.broadcast %19 : i32 to vector<64x1xi32>
    %21 = arith.select %18, %20, %16 : vector<64x1xi1>, vector<64x1xi32>
    %c16_i32 = arith.constant 16 : i32
    %22 = vector.broadcast %c16_i32 : i32 to vector<64x1xi32>
    %23 = arith.cmpi eq, %0, %22 : vector<64x1xi32>
    %c0_6 = arith.constant 0 : index
    %c2 = arith.constant 2 : index
    %24 = memref.load %arg1[%c0_6, %c2] : memref<2x8xi32, #tpu.memory_space<smem>>
    %25 = vector.broadcast %24 : i32 to vector<64x1xi32>
    %26 = arith.select %23, %25, %21 : vector<64x1xi1>, vector<64x1xi32>
    %c17_i32 = arith.constant 17 : i32
    %27 = vector.broadcast %c17_i32 : i32 to vector<64x1xi32>
    %28 = arith.cmpi eq, %0, %27 : vector<64x1xi32>
    %c1_7 = arith.constant 1 : index
    %c2_8 = arith.constant 2 : index
    %29 = memref.load %arg1[%c1_7, %c2_8] : memref<2x8xi32, #tpu.memory_space<smem>>
    %30 = vector.broadcast %29 : i32 to vector<64x1xi32>
    %31 = arith.select %28, %30, %26 : vector<64x1xi1>, vector<64x1xi32>
    %c24_i32 = arith.constant 24 : i32
    %32 = vector.broadcast %c24_i32 : i32 to vector<64x1xi32>
    %33 = arith.cmpi eq, %0, %32 : vector<64x1xi32>
    %c0_9 = arith.constant 0 : index
    %c3 = arith.constant 3 : index
    %34 = memref.load %arg1[%c0_9, %c3] : memref<2x8xi32, #tpu.memory_space<smem>>
    %35 = vector.broadcast %34 : i32 to vector<64x1xi32>
    %36 = arith.select %33, %35, %31 : vector<64x1xi1>, vector<64x1xi32>
    %c25_i32 = arith.constant 25 : i32
    %37 = vector.broadcast %c25_i32 : i32 to vector<64x1xi32>
    %38 = arith.cmpi eq, %0, %37 : vector<64x1xi32>
    %c1_10 = arith.constant 1 : index
    %c3_11 = arith.constant 3 : index
    %39 = memref.load %arg1[%c1_10, %c3_11] : memref<2x8xi32, #tpu.memory_space<smem>>
    %40 = vector.broadcast %39 : i32 to vector<64x1xi32>
    %41 = arith.select %38, %40, %36 : vector<64x1xi1>, vector<64x1xi32>
    %c32_i32 = arith.constant 32 : i32
    %42 = vector.broadcast %c32_i32 : i32 to vector<64x1xi32>
    %43 = arith.cmpi eq, %0, %42 : vector<64x1xi32>
    %c0_12 = arith.constant 0 : index
    %c4 = arith.constant 4 : index
    %44 = memref.load %arg1[%c0_12, %c4] : memref<2x8xi32, #tpu.memory_space<smem>>
    %45 = vector.broadcast %44 : i32 to vector<64x1xi32>
    %46 = arith.select %43, %45, %41 : vector<64x1xi1>, vector<64x1xi32>
    %c33_i32 = arith.constant 33 : i32
    %47 = vector.broadcast %c33_i32 : i32 to vector<64x1xi32>
    %48 = arith.cmpi eq, %0, %47 : vector<64x1xi32>
    %c1_13 = arith.constant 1 : index
    %c4_14 = arith.constant 4 : index
    %49 = memref.load %arg1[%c1_13, %c4_14] : memref<2x8xi32, #tpu.memory_space<smem>>
    %50 = vector.broadcast %49 : i32 to vector<64x1xi32>
    %51 = arith.select %48, %50, %46 : vector<64x1xi1>, vector<64x1xi32>
    %c40_i32 = arith.constant 40 : i32
    %52 = vector.broadcast %c40_i32 : i32 to vector<64x1xi32>
    %53 = arith.cmpi eq, %0, %52 : vector<64x1xi32>
    %c0_15 = arith.constant 0 : index
    %c5 = arith.constant 5 : index
    %54 = memref.load %arg1[%c0_15, %c5] : memref<2x8xi32, #tpu.memory_space<smem>>
    %55 = vector.broadcast %54 : i32 to vector<64x1xi32>
    %56 = arith.select %53, %55, %51 : vector<64x1xi1>, vector<64x1xi32>
    %c41_i32 = arith.constant 41 : i32
    %57 = vector.broadcast %c41_i32 : i32 to vector<64x1xi32>
    %58 = arith.cmpi eq, %0, %57 : vector<64x1xi32>
    %c1_16 = arith.constant 1 : index
    %c5_17 = arith.constant 5 : index
    %59 = memref.load %arg1[%c1_16, %c5_17] : memref<2x8xi32, #tpu.memory_space<smem>>
    %60 = vector.broadcast %59 : i32 to vector<64x1xi32>
    %61 = arith.select %58, %60, %56 : vector<64x1xi1>, vector<64x1xi32>
    %c48_i32 = arith.constant 48 : i32
    %62 = vector.broadcast %c48_i32 : i32 to vector<64x1xi32>
    %63 = arith.cmpi eq, %0, %62 : vector<64x1xi32>
    %c0_18 = arith.constant 0 : index
    %c6 = arith.constant 6 : index
    %64 = memref.load %arg1[%c0_18, %c6] : memref<2x8xi32, #tpu.memory_space<smem>>
    %65 = vector.broadcast %64 : i32 to vector<64x1xi32>
    %66 = arith.select %63, %65, %61 : vector<64x1xi1>, vector<64x1xi32>
    %c49_i32 = arith.constant 49 : i32
    %67 = vector.broadcast %c49_i32 : i32 to vector<64x1xi32>
    %68 = arith.cmpi eq, %0, %67 : vector<64x1xi32>
    %c1_19 = arith.constant 1 : index
    %c6_20 = arith.constant 6 : index
    %69 = memref.load %arg1[%c1_19, %c6_20] : memref<2x8xi32, #tpu.memory_space<smem>>
    %70 = vector.broadcast %69 : i32 to vector<64x1xi32>
    %71 = arith.select %68, %70, %66 : vector<64x1xi1>, vector<64x1xi32>
    %c56_i32 = arith.constant 56 : i32
    %72 = vector.broadcast %c56_i32 : i32 to vector<64x1xi32>
    %73 = arith.cmpi eq, %0, %72 : vector<64x1xi32>
    %c0_21 = arith.constant 0 : index
    %c7 = arith.constant 7 : index
    %74 = memref.load %arg1[%c0_21, %c7] : memref<2x8xi32, #tpu.memory_space<smem>>
    %75 = vector.broadcast %74 : i32 to vector<64x1xi32>
    %76 = arith.select %73, %75, %71 : vector<64x1xi1>, vector<64x1xi32>
    %c57_i32 = arith.constant 57 : i32
    %77 = vector.broadcast %c57_i32 : i32 to vector<64x1xi32>
    %78 = arith.cmpi eq, %0, %77 : vector<64x1xi32>
    %c1_22 = arith.constant 1 : index
    %c7_23 = arith.constant 7 : index
    %79 = memref.load %arg1[%c1_22, %c7_23] : memref<2x8xi32, #tpu.memory_space<smem>>
    %80 = vector.broadcast %79 : i32 to vector<64x1xi32>
    %81 = arith.select %78, %80, %76 : vector<64x1xi1>, vector<64x1xi32>
    %82 = tpu.iota {dimensions = array<i32: 1>} : vector<64x64xi32>
    %83 = vector.broadcast %81 : vector<64x1xi32> to vector<64x64xi32>
    %84 = arith.cmpi eq, %83, %82 : vector<64x64xi32>
    %85 = arith.extui %84 : vector<64x64xi1> to vector<64x64xi32>
    %86 = arith.sitofp %85 : vector<64x64xi32> to vector<64x64xf32>
    %c0_24 = arith.constant 0 : index
    %c0_25 = arith.constant 0 : index
    %87 = vector.load %arg2[%c0_24, %c0_25] : memref<64x128xf32, #tpu.memory_space<vmem>>, vector<64x128xf32>
    %cst = arith.constant dense<0.000000e+00> : vector<64x128xf32>
    %88 = tpu.matmul %86, %87, %cst {dimension_numbers = #tpu.dot_dimension_numbers<[1], [0], [0], [1], [0, 0, 1, 1], [], []>} : vector<64x64xf32>, vector<64x128xf32>, vector<64x128xf32> -> vector<64x128xf32>
    %c0_26 = arith.constant 0 : index
    %c0_27 = arith.constant 0 : index
    %89 = vector.load %arg3[%c0_26, %c0_27] : memref<1x128xf32, #tpu.memory_space<vmem>>, vector<1x128xf32>
    %90 = vector.broadcast %89 : vector<1x128xf32> to vector<64x128xf32>
    %91 = arith.addf %88, %90 : vector<64x128xf32>
    %92 = tpu.iota {dimensions = array<i32: 1>} : vector<1x128xi32>
    %c64_i32 = arith.constant 64 : i32
    %93 = vector.broadcast %c64_i32 : i32 to vector<1x128xi32>
    %94 = arith.cmpi sge, %92, %93 : vector<1x128xi32>
    %c96_i32 = arith.constant 96 : i32
    %95 = vector.broadcast %c96_i32 : i32 to vector<1x128xi32>
    %96 = arith.cmpi slt, %92, %95 : vector<1x128xi32>
    %97 = arith.andi %94, %96 : vector<1x128xi1>
    %cst_28 = arith.constant 2.000000e+00 : f32
    %cst_29 = arith.constant 1.000000e+00 : f32
    %98 = vector.broadcast %cst_28 : f32 to vector<1x128xf32>
    %99 = vector.broadcast %cst_29 : f32 to vector<1x128xf32>
    %100 = arith.select %97, %98, %99 : vector<1x128xi1>, vector<1x128xf32>
    %cst_30 = arith.constant -1.000000e+00 : f32
    %cst_31 = arith.constant 0.000000e+00 : f32
    %101 = vector.broadcast %cst_30 : f32 to vector<1x128xf32>
    %102 = vector.broadcast %cst_31 : f32 to vector<1x128xf32>
    %103 = arith.select %97, %101, %102 : vector<1x128xi1>, vector<1x128xf32>
    %c0_32 = arith.constant 0 : index
    %c0_33 = arith.constant 0 : index
    %104 = vector.load %arg4[%c0_32, %c0_33] : memref<128x128xf32, #tpu.memory_space<vmem>>, vector<128x128xf32>
    %c0_34 = arith.constant 0 : index
    %c0_35 = arith.constant 0 : index
    %105 = vector.load %arg5[%c0_34, %c0_35] : memref<256x128xf32, #tpu.memory_space<vmem>>, vector<256x128xf32>
    %c0_36 = arith.constant 0 : index
    %c0_37 = arith.constant 0 : index
    %106 = vector.load %arg6[%c0_36, %c0_37] : memref<1x128xf32, #tpu.memory_space<vmem>>, vector<1x128xf32>
    %cst_38 = arith.constant 0.000000e+00 : f32
    %107 = vector.broadcast %cst_38 : f32 to vector<8x128xf32>
    %cst_39 = arith.constant 0.000000e+00 : f32
    %108 = vector.broadcast %cst_39 : f32 to vector<8x128xf32>
    %cst_40 = arith.constant 0.000000e+00 : f32
    %109 = vector.broadcast %cst_40 : f32 to vector<8x128xf32>
    %cst_41 = arith.constant 0.000000e+00 : f32
    %110 = vector.broadcast %cst_41 : f32 to vector<8x128xf32>
    %111 = vector.extract_strided_slice %91 {offsets = [0, 0], sizes = [8, 128], strides = [1, 1]} : vector<64x128xf32> to vector<8x128xf32>
    %cst_42 = arith.constant dense<0.000000e+00> : vector<8x128xf32>
    %112 = tpu.matmul %107, %104, %cst_42 {dimension_numbers = #tpu.dot_dimension_numbers<[1], [0], [0], [1], [0, 0, 1, 1], [], []>} : vector<8x128xf32>, vector<128x128xf32>, vector<8x128xf32> -> vector<8x128xf32>
    %113 = arith.addf %111, %112 : vector<8x128xf32>
    %114 = arith.negf %113 : vector<8x128xf32>
    %115 = math.exp %114 : vector<8x128xf32>
    %cst_43 = arith.constant 1.000000e+00 : f32
    %116 = vector.broadcast %cst_43 : f32 to vector<8x128xf32>
    %117 = arith.addf %116, %115 : vector<8x128xf32>
    %118 = arith.divf %116, %117 : vector<8x128xf32>
    %119 = vector.broadcast %100 : vector<1x128xf32> to vector<8x128xf32>
    %120 = arith.mulf %118, %119 : vector<8x128xf32>
    %121 = vector.broadcast %103 : vector<1x128xf32> to vector<8x128xf32>
    %122 = arith.addf %120, %121 : vector<8x128xf32>
    %c96_i32_44 = arith.constant 96 : i32
    %123 = tpu.dynamic_rotate %122 by %c96_i32_44 dim 1 : vector<8x128xf32>, i32 -> vector<8x128xf32>
    %c64_i32_45 = arith.constant 64 : i32
    %124 = tpu.dynamic_rotate %122 by %c64_i32_45 dim 1 : vector<8x128xf32>, i32 -> vector<8x128xf32>
    %c32_i32_46 = arith.constant 32 : i32
    %125 = tpu.dynamic_rotate %122 by %c32_i32_46 dim 1 : vector<8x128xf32>, i32 -> vector<8x128xf32>
    %126 = arith.mulf %123, %109 : vector<8x128xf32>
    %127 = arith.mulf %122, %124 : vector<8x128xf32>
    %128 = arith.addf %126, %127 : vector<8x128xf32>
    %129 = math.tanh %128 : vector<8x128xf32>
    %130 = arith.mulf %125, %129 : vector<8x128xf32>
    %131 = tpu.concatenate %130, %108 in 1 : vector<8x128xf32>, vector<8x128xf32> -> vector<8x256xf32>
    %cst_47 = arith.constant dense<0.000000e+00> : vector<8x128xf32>
    %132 = tpu.matmul %131, %105, %cst_47 {dimension_numbers = #tpu.dot_dimension_numbers<[1], [0], [0], [1], [0, 0, 1, 1], [], []>} : vector<8x256xf32>, vector<256x128xf32>, vector<8x128xf32> -> vector<8x128xf32>
    %133 = vector.broadcast %106 : vector<1x128xf32> to vector<8x128xf32>
    %134 = arith.addf %132, %133 : vector<8x128xf32>
    %135 = arith.negf %134 : vector<8x128xf32>
    %136 = math.exp %135 : vector<8x128xf32>
    %cst_48 = arith.constant 1.000000e+00 : f32
    %137 = vector.broadcast %cst_48 : f32 to vector<8x128xf32>
    %138 = arith.addf %137, %136 : vector<8x128xf32>
    %139 = arith.divf %137, %138 : vector<8x128xf32>
    %140 = vector.broadcast %100 : vector<1x128xf32> to vector<8x128xf32>
    %141 = arith.mulf %139, %140 : vector<8x128xf32>
    %142 = vector.broadcast %103 : vector<1x128xf32> to vector<8x128xf32>
    %143 = arith.addf %141, %142 : vector<8x128xf32>
    %c96_i32_49 = arith.constant 96 : i32
    %144 = tpu.dynamic_rotate %143 by %c96_i32_49 dim 1 : vector<8x128xf32>, i32 -> vector<8x128xf32>
    %c64_i32_50 = arith.constant 64 : i32
    %145 = tpu.dynamic_rotate %143 by %c64_i32_50 dim 1 : vector<8x128xf32>, i32 -> vector<8x128xf32>
    %c32_i32_51 = arith.constant 32 : i32
    %146 = tpu.dynamic_rotate %143 by %c32_i32_51 dim 1 : vector<8x128xf32>, i32 -> vector<8x128xf32>
    %147 = arith.mulf %144, %110 : vector<8x128xf32>
    %148 = arith.mulf %143, %145 : vector<8x128xf32>
    %149 = arith.addf %147, %148 : vector<8x128xf32>
    %150 = math.tanh %149 : vector<8x128xf32>
    %151 = arith.mulf %146, %150 : vector<8x128xf32>
    %152 = vector.extract_strided_slice %91 {offsets = [8, 0], sizes = [8, 128], strides = [1, 1]} : vector<64x128xf32> to vector<8x128xf32>
    %cst_52 = arith.constant dense<0.000000e+00> : vector<8x128xf32>
    %153 = tpu.matmul %130, %104, %cst_52 {dimension_numbers = #tpu.dot_dimension_numbers<[1], [0], [0], [1], [0, 0, 1, 1], [], []>} : vector<8x128xf32>, vector<128x128xf32>, vector<8x128xf32> -> vector<8x128xf32>
    %154 = arith.addf %152, %153 : vector<8x128xf32>
    %155 = arith.negf %154 : vector<8x128xf32>
    %156 = math.exp %155 : vector<8x128xf32>
    %cst_53 = arith.constant 1.000000e+00 : f32
    %157 = vector.broadcast %cst_53 : f32 to vector<8x128xf32>
    %158 = arith.addf %157, %156 : vector<8x128xf32>
    %159 = arith.divf %157, %158 : vector<8x128xf32>
    %160 = vector.broadcast %100 : vector<1x128xf32> to vector<8x128xf32>
    %161 = arith.mulf %159, %160 : vector<8x128xf32>
    %162 = vector.broadcast %103 : vector<1x128xf32> to vector<8x128xf32>
    %163 = arith.addf %161, %162 : vector<8x128xf32>
    %c96_i32_54 = arith.constant 96 : i32
    %164 = tpu.dynamic_rotate %163 by %c96_i32_54 dim 1 : vector<8x128xf32>, i32 -> vector<8x128xf32>
    %c64_i32_55 = arith.constant 64 : i32
    %165 = tpu.dynamic_rotate %163 by %c64_i32_55 dim 1 : vector<8x128xf32>, i32 -> vector<8x128xf32>
    %c32_i32_56 = arith.constant 32 : i32
    %166 = tpu.dynamic_rotate %163 by %c32_i32_56 dim 1 : vector<8x128xf32>, i32 -> vector<8x128xf32>
    %167 = arith.mulf %164, %128 : vector<8x128xf32>
    %168 = arith.mulf %163, %165 : vector<8x128xf32>
    %169 = arith.addf %167, %168 : vector<8x128xf32>
    %170 = math.tanh %169 : vector<8x128xf32>
    %171 = arith.mulf %166, %170 : vector<8x128xf32>
    %172 = tpu.concatenate %171, %151 in 1 : vector<8x128xf32>, vector<8x128xf32> -> vector<8x256xf32>
    %cst_57 = arith.constant dense<0.000000e+00> : vector<8x128xf32>
    %173 = tpu.matmul %172, %105, %cst_57 {dimension_numbers = #tpu.dot_dimension_numbers<[1], [0], [0], [1], [0, 0, 1, 1], [], []>} : vector<8x256xf32>, vector<256x128xf32>, vector<8x128xf32> -> vector<8x128xf32>
    %174 = vector.broadcast %106 : vector<1x128xf32> to vector<8x128xf32>
    %175 = arith.addf %173, %174 : vector<8x128xf32>
    %176 = arith.negf %175 : vector<8x128xf32>
    %177 = math.exp %176 : vector<8x128xf32>
    %cst_58 = arith.constant 1.000000e+00 : f32
    %178 = vector.broadcast %cst_58 : f32 to vector<8x128xf32>
    %179 = arith.addf %178, %177 : vector<8x128xf32>
    %180 = arith.divf %178, %179 : vector<8x128xf32>
    %181 = vector.broadcast %100 : vector<1x128xf32> to vector<8x128xf32>
    %182 = arith.mulf %180, %181 : vector<8x128xf32>
    %183 = vector.broadcast %103 : vector<1x128xf32> to vector<8x128xf32>
    %184 = arith.addf %182, %183 : vector<8x128xf32>
    %c96_i32_59 = arith.constant 96 : i32
    %185 = tpu.dynamic_rotate %184 by %c96_i32_59 dim 1 : vector<8x128xf32>, i32 -> vector<8x128xf32>
    %c64_i32_60 = arith.constant 64 : i32
    %186 = tpu.dynamic_rotate %184 by %c64_i32_60 dim 1 : vector<8x128xf32>, i32 -> vector<8x128xf32>
    %c32_i32_61 = arith.constant 32 : i32
    %187 = tpu.dynamic_rotate %184 by %c32_i32_61 dim 1 : vector<8x128xf32>, i32 -> vector<8x128xf32>
    %188 = arith.mulf %185, %149 : vector<8x128xf32>
    %189 = arith.mulf %184, %186 : vector<8x128xf32>
    %190 = arith.addf %188, %189 : vector<8x128xf32>
    %191 = math.tanh %190 : vector<8x128xf32>
    %192 = arith.mulf %187, %191 : vector<8x128xf32>
    %193 = vector.extract_strided_slice %91 {offsets = [16, 0], sizes = [8, 128], strides = [1, 1]} : vector<64x128xf32> to vector<8x128xf32>
    %cst_62 = arith.constant dense<0.000000e+00> : vector<8x128xf32>
    %194 = tpu.matmul %171, %104, %cst_62 {dimension_numbers = #tpu.dot_dimension_numbers<[1], [0], [0], [1], [0, 0, 1, 1], [], []>} : vector<8x128xf32>, vector<128x128xf32>, vector<8x128xf32> -> vector<8x128xf32>
    %195 = arith.addf %193, %194 : vector<8x128xf32>
    %196 = arith.negf %195 : vector<8x128xf32>
    %197 = math.exp %196 : vector<8x128xf32>
    %cst_63 = arith.constant 1.000000e+00 : f32
    %198 = vector.broadcast %cst_63 : f32 to vector<8x128xf32>
    %199 = arith.addf %198, %197 : vector<8x128xf32>
    %200 = arith.divf %198, %199 : vector<8x128xf32>
    %201 = vector.broadcast %100 : vector<1x128xf32> to vector<8x128xf32>
    %202 = arith.mulf %200, %201 : vector<8x128xf32>
    %203 = vector.broadcast %103 : vector<1x128xf32> to vector<8x128xf32>
    %204 = arith.addf %202, %203 : vector<8x128xf32>
    %c96_i32_64 = arith.constant 96 : i32
    %205 = tpu.dynamic_rotate %204 by %c96_i32_64 dim 1 : vector<8x128xf32>, i32 -> vector<8x128xf32>
    %c64_i32_65 = arith.constant 64 : i32
    %206 = tpu.dynamic_rotate %204 by %c64_i32_65 dim 1 : vector<8x128xf32>, i32 -> vector<8x128xf32>
    %c32_i32_66 = arith.constant 32 : i32
    %207 = tpu.dynamic_rotate %204 by %c32_i32_66 dim 1 : vector<8x128xf32>, i32 -> vector<8x128xf32>
    %208 = arith.mulf %205, %169 : vector<8x128xf32>
    %209 = arith.mulf %204, %206 : vector<8x128xf32>
    %210 = arith.addf %208, %209 : vector<8x128xf32>
    %211 = math.tanh %210 : vector<8x128xf32>
    %212 = arith.mulf %207, %211 : vector<8x128xf32>
    %213 = tpu.concatenate %212, %192 in 1 : vector<8x128xf32>, vector<8x128xf32> -> vector<8x256xf32>
    %cst_67 = arith.constant dense<0.000000e+00> : vector<8x128xf32>
    %214 = tpu.matmul %213, %105, %cst_67 {dimension_numbers = #tpu.dot_dimension_numbers<[1], [0], [0], [1], [0, 0, 1, 1], [], []>} : vector<8x256xf32>, vector<256x128xf32>, vector<8x128xf32> -> vector<8x128xf32>
    %215 = vector.broadcast %106 : vector<1x128xf32> to vector<8x128xf32>
    %216 = arith.addf %214, %215 : vector<8x128xf32>
    %217 = arith.negf %216 : vector<8x128xf32>
    %218 = math.exp %217 : vector<8x128xf32>
    %cst_68 = arith.constant 1.000000e+00 : f32
    %219 = vector.broadcast %cst_68 : f32 to vector<8x128xf32>
    %220 = arith.addf %219, %218 : vector<8x128xf32>
    %221 = arith.divf %219, %220 : vector<8x128xf32>
    %222 = vector.broadcast %100 : vector<1x128xf32> to vector<8x128xf32>
    %223 = arith.mulf %221, %222 : vector<8x128xf32>
    %224 = vector.broadcast %103 : vector<1x128xf32> to vector<8x128xf32>
    %225 = arith.addf %223, %224 : vector<8x128xf32>
    %c96_i32_69 = arith.constant 96 : i32
    %226 = tpu.dynamic_rotate %225 by %c96_i32_69 dim 1 : vector<8x128xf32>, i32 -> vector<8x128xf32>
    %c64_i32_70 = arith.constant 64 : i32
    %227 = tpu.dynamic_rotate %225 by %c64_i32_70 dim 1 : vector<8x128xf32>, i32 -> vector<8x128xf32>
    %c32_i32_71 = arith.constant 32 : i32
    %228 = tpu.dynamic_rotate %225 by %c32_i32_71 dim 1 : vector<8x128xf32>, i32 -> vector<8x128xf32>
    %229 = arith.mulf %226, %190 : vector<8x128xf32>
    %230 = arith.mulf %225, %227 : vector<8x128xf32>
    %231 = arith.addf %229, %230 : vector<8x128xf32>
    %232 = math.tanh %231 : vector<8x128xf32>
    %233 = arith.mulf %228, %232 : vector<8x128xf32>
    %234 = vector.extract_strided_slice %91 {offsets = [24, 0], sizes = [8, 128], strides = [1, 1]} : vector<64x128xf32> to vector<8x128xf32>
    %cst_72 = arith.constant dense<0.000000e+00> : vector<8x128xf32>
    %235 = tpu.matmul %212, %104, %cst_72 {dimension_numbers = #tpu.dot_dimension_numbers<[1], [0], [0], [1], [0, 0, 1, 1], [], []>} : vector<8x128xf32>, vector<128x128xf32>, vector<8x128xf32> -> vector<8x128xf32>
    %236 = arith.addf %234, %235 : vector<8x128xf32>
    %237 = arith.negf %236 : vector<8x128xf32>
    %238 = math.exp %237 : vector<8x128xf32>
    %cst_73 = arith.constant 1.000000e+00 : f32
    %239 = vector.broadcast %cst_73 : f32 to vector<8x128xf32>
    %240 = arith.addf %239, %238 : vector<8x128xf32>
    %241 = arith.divf %239, %240 : vector<8x128xf32>
    %242 = vector.broadcast %100 : vector<1x128xf32> to vector<8x128xf32>
    %243 = arith.mulf %241, %242 : vector<8x128xf32>
    %244 = vector.broadcast %103 : vector<1x128xf32> to vector<8x128xf32>
    %245 = arith.addf %243, %244 : vector<8x128xf32>
    %c96_i32_74 = arith.constant 96 : i32
    %246 = tpu.dynamic_rotate %245 by %c96_i32_74 dim 1 : vector<8x128xf32>, i32 -> vector<8x128xf32>
    %c64_i32_75 = arith.constant 64 : i32
    %247 = tpu.dynamic_rotate %245 by %c64_i32_75 dim 1 : vector<8x128xf32>, i32 -> vector<8x128xf32>
    %c32_i32_76 = arith.constant 32 : i32
    %248 = tpu.dynamic_rotate %245 by %c32_i32_76 dim 1 : vector<8x128xf32>, i32 -> vector<8x128xf32>
    %249 = arith.mulf %246, %210 : vector<8x128xf32>
    %250 = arith.mulf %245, %247 : vector<8x128xf32>
    %251 = arith.addf %249, %250 : vector<8x128xf32>
    %252 = math.tanh %251 : vector<8x128xf32>
    %253 = arith.mulf %248, %252 : vector<8x128xf32>
    %254 = tpu.concatenate %253, %233 in 1 : vector<8x128xf32>, vector<8x128xf32> -> vector<8x256xf32>
    %cst_77 = arith.constant dense<0.000000e+00> : vector<8x128xf32>
    %255 = tpu.matmul %254, %105, %cst_77 {dimension_numbers = #tpu.dot_dimension_numbers<[1], [0], [0], [1], [0, 0, 1, 1], [], []>} : vector<8x256xf32>, vector<256x128xf32>, vector<8x128xf32> -> vector<8x128xf32>
    %256 = vector.broadcast %106 : vector<1x128xf32> to vector<8x128xf32>
    %257 = arith.addf %255, %256 : vector<8x128xf32>
    %258 = arith.negf %257 : vector<8x128xf32>
    %259 = math.exp %258 : vector<8x128xf32>
    %cst_78 = arith.constant 1.000000e+00 : f32
    %260 = vector.broadcast %cst_78 : f32 to vector<8x128xf32>
    %261 = arith.addf %260, %259 : vector<8x128xf32>
    %262 = arith.divf %260, %261 : vector<8x128xf32>
    %263 = vector.broadcast %100 : vector<1x128xf32> to vector<8x128xf32>
    %264 = arith.mulf %262, %263 : vector<8x128xf32>
    %265 = vector.broadcast %103 : vector<1x128xf32> to vector<8x128xf32>
    %266 = arith.addf %264, %265 : vector<8x128xf32>
    %c96_i32_79 = arith.constant 96 : i32
    %267 = tpu.dynamic_rotate %266 by %c96_i32_79 dim 1 : vector<8x128xf32>, i32 -> vector<8x128xf32>
    %c64_i32_80 = arith.constant 64 : i32
    %268 = tpu.dynamic_rotate %266 by %c64_i32_80 dim 1 : vector<8x128xf32>, i32 -> vector<8x128xf32>
    %c32_i32_81 = arith.constant 32 : i32
    %269 = tpu.dynamic_rotate %266 by %c32_i32_81 dim 1 : vector<8x128xf32>, i32 -> vector<8x128xf32>
    %270 = arith.mulf %267, %231 : vector<8x128xf32>
    %271 = arith.mulf %266, %268 : vector<8x128xf32>
    %272 = arith.addf %270, %271 : vector<8x128xf32>
    %273 = math.tanh %272 : vector<8x128xf32>
    %274 = arith.mulf %269, %273 : vector<8x128xf32>
    %275 = vector.extract_strided_slice %91 {offsets = [32, 0], sizes = [8, 128], strides = [1, 1]} : vector<64x128xf32> to vector<8x128xf32>
    %cst_82 = arith.constant dense<0.000000e+00> : vector<8x128xf32>
    %276 = tpu.matmul %253, %104, %cst_82 {dimension_numbers = #tpu.dot_dimension_numbers<[1], [0], [0], [1], [0, 0, 1, 1], [], []>} : vector<8x128xf32>, vector<128x128xf32>, vector<8x128xf32> -> vector<8x128xf32>
    %277 = arith.addf %275, %276 : vector<8x128xf32>
    %278 = arith.negf %277 : vector<8x128xf32>
    %279 = math.exp %278 : vector<8x128xf32>
    %cst_83 = arith.constant 1.000000e+00 : f32
    %280 = vector.broadcast %cst_83 : f32 to vector<8x128xf32>
    %281 = arith.addf %280, %279 : vector<8x128xf32>
    %282 = arith.divf %280, %281 : vector<8x128xf32>
    %283 = vector.broadcast %100 : vector<1x128xf32> to vector<8x128xf32>
    %284 = arith.mulf %282, %283 : vector<8x128xf32>
    %285 = vector.broadcast %103 : vector<1x128xf32> to vector<8x128xf32>
    %286 = arith.addf %284, %285 : vector<8x128xf32>
    %c96_i32_84 = arith.constant 96 : i32
    %287 = tpu.dynamic_rotate %286 by %c96_i32_84 dim 1 : vector<8x128xf32>, i32 -> vector<8x128xf32>
    %c64_i32_85 = arith.constant 64 : i32
    %288 = tpu.dynamic_rotate %286 by %c64_i32_85 dim 1 : vector<8x128xf32>, i32 -> vector<8x128xf32>
    %c32_i32_86 = arith.constant 32 : i32
    %289 = tpu.dynamic_rotate %286 by %c32_i32_86 dim 1 : vector<8x128xf32>, i32 -> vector<8x128xf32>
    %290 = arith.mulf %287, %251 : vector<8x128xf32>
    %291 = arith.mulf %286, %288 : vector<8x128xf32>
    %292 = arith.addf %290, %291 : vector<8x128xf32>
    %293 = math.tanh %292 : vector<8x128xf32>
    %294 = arith.mulf %289, %293 : vector<8x128xf32>
    %295 = tpu.concatenate %294, %274 in 1 : vector<8x128xf32>, vector<8x128xf32> -> vector<8x256xf32>
    %cst_87 = arith.constant dense<0.000000e+00> : vector<8x128xf32>
    %296 = tpu.matmul %295, %105, %cst_87 {dimension_numbers = #tpu.dot_dimension_numbers<[1], [0], [0], [1], [0, 0, 1, 1], [], []>} : vector<8x256xf32>, vector<256x128xf32>, vector<8x128xf32> -> vector<8x128xf32>
    %297 = vector.broadcast %106 : vector<1x128xf32> to vector<8x128xf32>
    %298 = arith.addf %296, %297 : vector<8x128xf32>
    %299 = arith.negf %298 : vector<8x128xf32>
    %300 = math.exp %299 : vector<8x128xf32>
    %cst_88 = arith.constant 1.000000e+00 : f32
    %301 = vector.broadcast %cst_88 : f32 to vector<8x128xf32>
    %302 = arith.addf %301, %300 : vector<8x128xf32>
    %303 = arith.divf %301, %302 : vector<8x128xf32>
    %304 = vector.broadcast %100 : vector<1x128xf32> to vector<8x128xf32>
    %305 = arith.mulf %303, %304 : vector<8x128xf32>
    %306 = vector.broadcast %103 : vector<1x128xf32> to vector<8x128xf32>
    %307 = arith.addf %305, %306 : vector<8x128xf32>
    %c96_i32_89 = arith.constant 96 : i32
    %308 = tpu.dynamic_rotate %307 by %c96_i32_89 dim 1 : vector<8x128xf32>, i32 -> vector<8x128xf32>
    %c64_i32_90 = arith.constant 64 : i32
    %309 = tpu.dynamic_rotate %307 by %c64_i32_90 dim 1 : vector<8x128xf32>, i32 -> vector<8x128xf32>
    %c32_i32_91 = arith.constant 32 : i32
    %310 = tpu.dynamic_rotate %307 by %c32_i32_91 dim 1 : vector<8x128xf32>, i32 -> vector<8x128xf32>
    %311 = arith.mulf %308, %272 : vector<8x128xf32>
    %312 = arith.mulf %307, %309 : vector<8x128xf32>
    %313 = arith.addf %311, %312 : vector<8x128xf32>
    %314 = math.tanh %313 : vector<8x128xf32>
    %315 = arith.mulf %310, %314 : vector<8x128xf32>
    %316 = vector.extract_strided_slice %91 {offsets = [40, 0], sizes = [8, 128], strides = [1, 1]} : vector<64x128xf32> to vector<8x128xf32>
    %cst_92 = arith.constant dense<0.000000e+00> : vector<8x128xf32>
    %317 = tpu.matmul %294, %104, %cst_92 {dimension_numbers = #tpu.dot_dimension_numbers<[1], [0], [0], [1], [0, 0, 1, 1], [], []>} : vector<8x128xf32>, vector<128x128xf32>, vector<8x128xf32> -> vector<8x128xf32>
    %318 = arith.addf %316, %317 : vector<8x128xf32>
    %319 = arith.negf %318 : vector<8x128xf32>
    %320 = math.exp %319 : vector<8x128xf32>
    %cst_93 = arith.constant 1.000000e+00 : f32
    %321 = vector.broadcast %cst_93 : f32 to vector<8x128xf32>
    %322 = arith.addf %321, %320 : vector<8x128xf32>
    %323 = arith.divf %321, %322 : vector<8x128xf32>
    %324 = vector.broadcast %100 : vector<1x128xf32> to vector<8x128xf32>
    %325 = arith.mulf %323, %324 : vector<8x128xf32>
    %326 = vector.broadcast %103 : vector<1x128xf32> to vector<8x128xf32>
    %327 = arith.addf %325, %326 : vector<8x128xf32>
    %c96_i32_94 = arith.constant 96 : i32
    %328 = tpu.dynamic_rotate %327 by %c96_i32_94 dim 1 : vector<8x128xf32>, i32 -> vector<8x128xf32>
    %c64_i32_95 = arith.constant 64 : i32
    %329 = tpu.dynamic_rotate %327 by %c64_i32_95 dim 1 : vector<8x128xf32>, i32 -> vector<8x128xf32>
    %c32_i32_96 = arith.constant 32 : i32
    %330 = tpu.dynamic_rotate %327 by %c32_i32_96 dim 1 : vector<8x128xf32>, i32 -> vector<8x128xf32>
    %331 = arith.mulf %328, %292 : vector<8x128xf32>
    %332 = arith.mulf %327, %329 : vector<8x128xf32>
    %333 = arith.addf %331, %332 : vector<8x128xf32>
    %334 = math.tanh %333 : vector<8x128xf32>
    %335 = arith.mulf %330, %334 : vector<8x128xf32>
    %336 = tpu.concatenate %335, %315 in 1 : vector<8x128xf32>, vector<8x128xf32> -> vector<8x256xf32>
    %cst_97 = arith.constant dense<0.000000e+00> : vector<8x128xf32>
    %337 = tpu.matmul %336, %105, %cst_97 {dimension_numbers = #tpu.dot_dimension_numbers<[1], [0], [0], [1], [0, 0, 1, 1], [], []>} : vector<8x256xf32>, vector<256x128xf32>, vector<8x128xf32> -> vector<8x128xf32>
    %338 = vector.broadcast %106 : vector<1x128xf32> to vector<8x128xf32>
    %339 = arith.addf %337, %338 : vector<8x128xf32>
    %340 = arith.negf %339 : vector<8x128xf32>
    %341 = math.exp %340 : vector<8x128xf32>
    %cst_98 = arith.constant 1.000000e+00 : f32
    %342 = vector.broadcast %cst_98 : f32 to vector<8x128xf32>
    %343 = arith.addf %342, %341 : vector<8x128xf32>
    %344 = arith.divf %342, %343 : vector<8x128xf32>
    %345 = vector.broadcast %100 : vector<1x128xf32> to vector<8x128xf32>
    %346 = arith.mulf %344, %345 : vector<8x128xf32>
    %347 = vector.broadcast %103 : vector<1x128xf32> to vector<8x128xf32>
    %348 = arith.addf %346, %347 : vector<8x128xf32>
    %c96_i32_99 = arith.constant 96 : i32
    %349 = tpu.dynamic_rotate %348 by %c96_i32_99 dim 1 : vector<8x128xf32>, i32 -> vector<8x128xf32>
    %c64_i32_100 = arith.constant 64 : i32
    %350 = tpu.dynamic_rotate %348 by %c64_i32_100 dim 1 : vector<8x128xf32>, i32 -> vector<8x128xf32>
    %c32_i32_101 = arith.constant 32 : i32
    %351 = tpu.dynamic_rotate %348 by %c32_i32_101 dim 1 : vector<8x128xf32>, i32 -> vector<8x128xf32>
    %352 = arith.mulf %349, %313 : vector<8x128xf32>
    %353 = arith.mulf %348, %350 : vector<8x128xf32>
    %354 = arith.addf %352, %353 : vector<8x128xf32>
    %355 = math.tanh %354 : vector<8x128xf32>
    %356 = arith.mulf %351, %355 : vector<8x128xf32>
    %357 = vector.extract_strided_slice %91 {offsets = [48, 0], sizes = [8, 128], strides = [1, 1]} : vector<64x128xf32> to vector<8x128xf32>
    %cst_102 = arith.constant dense<0.000000e+00> : vector<8x128xf32>
    %358 = tpu.matmul %335, %104, %cst_102 {dimension_numbers = #tpu.dot_dimension_numbers<[1], [0], [0], [1], [0, 0, 1, 1], [], []>} : vector<8x128xf32>, vector<128x128xf32>, vector<8x128xf32> -> vector<8x128xf32>
    %359 = arith.addf %357, %358 : vector<8x128xf32>
    %360 = arith.negf %359 : vector<8x128xf32>
    %361 = math.exp %360 : vector<8x128xf32>
    %cst_103 = arith.constant 1.000000e+00 : f32
    %362 = vector.broadcast %cst_103 : f32 to vector<8x128xf32>
    %363 = arith.addf %362, %361 : vector<8x128xf32>
    %364 = arith.divf %362, %363 : vector<8x128xf32>
    %365 = vector.broadcast %100 : vector<1x128xf32> to vector<8x128xf32>
    %366 = arith.mulf %364, %365 : vector<8x128xf32>
    %367 = vector.broadcast %103 : vector<1x128xf32> to vector<8x128xf32>
    %368 = arith.addf %366, %367 : vector<8x128xf32>
    %c96_i32_104 = arith.constant 96 : i32
    %369 = tpu.dynamic_rotate %368 by %c96_i32_104 dim 1 : vector<8x128xf32>, i32 -> vector<8x128xf32>
    %c64_i32_105 = arith.constant 64 : i32
    %370 = tpu.dynamic_rotate %368 by %c64_i32_105 dim 1 : vector<8x128xf32>, i32 -> vector<8x128xf32>
    %c32_i32_106 = arith.constant 32 : i32
    %371 = tpu.dynamic_rotate %368 by %c32_i32_106 dim 1 : vector<8x128xf32>, i32 -> vector<8x128xf32>
    %372 = arith.mulf %369, %333 : vector<8x128xf32>
    %373 = arith.mulf %368, %370 : vector<8x128xf32>
    %374 = arith.addf %372, %373 : vector<8x128xf32>
    %375 = math.tanh %374 : vector<8x128xf32>
    %376 = arith.mulf %371, %375 : vector<8x128xf32>
    %377 = tpu.concatenate %376, %356 in 1 : vector<8x128xf32>, vector<8x128xf32> -> vector<8x256xf32>
    %cst_107 = arith.constant dense<0.000000e+00> : vector<8x128xf32>
    %378 = tpu.matmul %377, %105, %cst_107 {dimension_numbers = #tpu.dot_dimension_numbers<[1], [0], [0], [1], [0, 0, 1, 1], [], []>} : vector<8x256xf32>, vector<256x128xf32>, vector<8x128xf32> -> vector<8x128xf32>
    %379 = vector.broadcast %106 : vector<1x128xf32> to vector<8x128xf32>
    %380 = arith.addf %378, %379 : vector<8x128xf32>
    %381 = arith.negf %380 : vector<8x128xf32>
    %382 = math.exp %381 : vector<8x128xf32>
    %cst_108 = arith.constant 1.000000e+00 : f32
    %383 = vector.broadcast %cst_108 : f32 to vector<8x128xf32>
    %384 = arith.addf %383, %382 : vector<8x128xf32>
    %385 = arith.divf %383, %384 : vector<8x128xf32>
    %386 = vector.broadcast %100 : vector<1x128xf32> to vector<8x128xf32>
    %387 = arith.mulf %385, %386 : vector<8x128xf32>
    %388 = vector.broadcast %103 : vector<1x128xf32> to vector<8x128xf32>
    %389 = arith.addf %387, %388 : vector<8x128xf32>
    %c96_i32_109 = arith.constant 96 : i32
    %390 = tpu.dynamic_rotate %389 by %c96_i32_109 dim 1 : vector<8x128xf32>, i32 -> vector<8x128xf32>
    %c64_i32_110 = arith.constant 64 : i32
    %391 = tpu.dynamic_rotate %389 by %c64_i32_110 dim 1 : vector<8x128xf32>, i32 -> vector<8x128xf32>
    %c32_i32_111 = arith.constant 32 : i32
    %392 = tpu.dynamic_rotate %389 by %c32_i32_111 dim 1 : vector<8x128xf32>, i32 -> vector<8x128xf32>
    %393 = arith.mulf %390, %354 : vector<8x128xf32>
    %394 = arith.mulf %389, %391 : vector<8x128xf32>
    %395 = arith.addf %393, %394 : vector<8x128xf32>
    %396 = math.tanh %395 : vector<8x128xf32>
    %397 = arith.mulf %392, %396 : vector<8x128xf32>
    %398 = vector.extract_strided_slice %91 {offsets = [56, 0], sizes = [8, 128], strides = [1, 1]} : vector<64x128xf32> to vector<8x128xf32>
    %cst_112 = arith.constant dense<0.000000e+00> : vector<8x128xf32>
    %399 = tpu.matmul %376, %104, %cst_112 {dimension_numbers = #tpu.dot_dimension_numbers<[1], [0], [0], [1], [0, 0, 1, 1], [], []>} : vector<8x128xf32>, vector<128x128xf32>, vector<8x128xf32> -> vector<8x128xf32>
    %400 = arith.addf %398, %399 : vector<8x128xf32>
    %401 = arith.negf %400 : vector<8x128xf32>
    %402 = math.exp %401 : vector<8x128xf32>
    %cst_113 = arith.constant 1.000000e+00 : f32
    %403 = vector.broadcast %cst_113 : f32 to vector<8x128xf32>
    %404 = arith.addf %403, %402 : vector<8x128xf32>
    %405 = arith.divf %403, %404 : vector<8x128xf32>
    %406 = vector.broadcast %100 : vector<1x128xf32> to vector<8x128xf32>
    %407 = arith.mulf %405, %406 : vector<8x128xf32>
    %408 = vector.broadcast %103 : vector<1x128xf32> to vector<8x128xf32>
    %409 = arith.addf %407, %408 : vector<8x128xf32>
    %c96_i32_114 = arith.constant 96 : i32
    %410 = tpu.dynamic_rotate %409 by %c96_i32_114 dim 1 : vector<8x128xf32>, i32 -> vector<8x128xf32>
    %c64_i32_115 = arith.constant 64 : i32
    %411 = tpu.dynamic_rotate %409 by %c64_i32_115 dim 1 : vector<8x128xf32>, i32 -> vector<8x128xf32>
    %c32_i32_116 = arith.constant 32 : i32
    %412 = tpu.dynamic_rotate %409 by %c32_i32_116 dim 1 : vector<8x128xf32>, i32 -> vector<8x128xf32>
    %413 = arith.mulf %410, %374 : vector<8x128xf32>
    %414 = arith.mulf %409, %411 : vector<8x128xf32>
    %415 = arith.addf %413, %414 : vector<8x128xf32>
    %416 = math.tanh %415 : vector<8x128xf32>
    %417 = arith.mulf %412, %416 : vector<8x128xf32>
    %418 = tpu.concatenate %417, %397 in 1 : vector<8x128xf32>, vector<8x128xf32> -> vector<8x256xf32>
    %cst_117 = arith.constant dense<0.000000e+00> : vector<8x128xf32>
    %419 = tpu.matmul %418, %105, %cst_117 {dimension_numbers = #tpu.dot_dimension_numbers<[1], [0], [0], [1], [0, 0, 1, 1], [], []>} : vector<8x256xf32>, vector<256x128xf32>, vector<8x128xf32> -> vector<8x128xf32>
    %420 = vector.broadcast %106 : vector<1x128xf32> to vector<8x128xf32>
    %421 = arith.addf %419, %420 : vector<8x128xf32>
    %422 = arith.negf %421 : vector<8x128xf32>
    %423 = math.exp %422 : vector<8x128xf32>
    %cst_118 = arith.constant 1.000000e+00 : f32
    %424 = vector.broadcast %cst_118 : f32 to vector<8x128xf32>
    %425 = arith.addf %424, %423 : vector<8x128xf32>
    %426 = arith.divf %424, %425 : vector<8x128xf32>
    %427 = vector.broadcast %100 : vector<1x128xf32> to vector<8x128xf32>
    %428 = arith.mulf %426, %427 : vector<8x128xf32>
    %429 = vector.broadcast %103 : vector<1x128xf32> to vector<8x128xf32>
    %430 = arith.addf %428, %429 : vector<8x128xf32>
    %c96_i32_119 = arith.constant 96 : i32
    %431 = tpu.dynamic_rotate %430 by %c96_i32_119 dim 1 : vector<8x128xf32>, i32 -> vector<8x128xf32>
    %c64_i32_120 = arith.constant 64 : i32
    %432 = tpu.dynamic_rotate %430 by %c64_i32_120 dim 1 : vector<8x128xf32>, i32 -> vector<8x128xf32>
    %c32_i32_121 = arith.constant 32 : i32
    %433 = tpu.dynamic_rotate %430 by %c32_i32_121 dim 1 : vector<8x128xf32>, i32 -> vector<8x128xf32>
    %434 = arith.mulf %431, %395 : vector<8x128xf32>
    %435 = arith.mulf %430, %432 : vector<8x128xf32>
    %436 = arith.addf %434, %435 : vector<8x128xf32>
    %437 = math.tanh %436 : vector<8x128xf32>
    %438 = arith.mulf %433, %437 : vector<8x128xf32>
    %439 = vector.extract_strided_slice %417 {offsets = [0, 0], sizes = [2, 32], strides = [1, 1]} : vector<8x128xf32> to vector<2x32xf32>
    %c0_122 = arith.constant 0 : index
    %c0_123 = arith.constant 0 : index
    %c0_124 = arith.constant 0 : index
    %440 = vector.load %arg10[%c0_122, %c0_123, %c0_124] : memref<2x2x32xf32, #tpu.memory_space<vmem>>, vector<1x2x32xf32>
    %441 = vector.shape_cast %440 : vector<1x2x32xf32> to vector<2x32xf32>
    %442 = vector.shape_cast %439 : vector<2x32xf32> to vector<1x2x32xf32>
    tpu.vector_store %arg10[%c0_122, %c0_123, %c0_124], %442 {strides = array<i32>} : memref<2x2x32xf32, #tpu.memory_space<vmem>>, vector<1x2x32xf32>,
    %443 = vector.extract_strided_slice %415 {offsets = [0, 0], sizes = [2, 32], strides = [1, 1]} : vector<8x128xf32> to vector<2x32xf32>
    %c0_125 = arith.constant 0 : index
    %c0_126 = arith.constant 0 : index
    %c0_127 = arith.constant 0 : index
    %444 = vector.load %arg11[%c0_125, %c0_126, %c0_127] : memref<2x2x32xf32, #tpu.memory_space<vmem>>, vector<1x2x32xf32>
    %445 = vector.shape_cast %444 : vector<1x2x32xf32> to vector<2x32xf32>
    %446 = vector.shape_cast %443 : vector<2x32xf32> to vector<1x2x32xf32>
    tpu.vector_store %arg11[%c0_125, %c0_126, %c0_127], %446 {strides = array<i32>} : memref<2x2x32xf32, #tpu.memory_space<vmem>>, vector<1x2x32xf32>,
    %447 = vector.extract_strided_slice %438 {offsets = [0, 0], sizes = [2, 32], strides = [1, 1]} : vector<8x128xf32> to vector<2x32xf32>
    %c1_128 = arith.constant 1 : index
    %c0_129 = arith.constant 0 : index
    %c0_130 = arith.constant 0 : index
    %448 = vector.load %arg10[%c1_128, %c0_129, %c0_130] : memref<2x2x32xf32, #tpu.memory_space<vmem>>, vector<1x2x32xf32>
    %449 = vector.shape_cast %448 : vector<1x2x32xf32> to vector<2x32xf32>
    %450 = vector.shape_cast %447 : vector<2x32xf32> to vector<1x2x32xf32>
    tpu.vector_store %arg10[%c1_128, %c0_129, %c0_130], %450 {strides = array<i32>} : memref<2x2x32xf32, #tpu.memory_space<vmem>>, vector<1x2x32xf32>,
    %451 = vector.extract_strided_slice %436 {offsets = [0, 0], sizes = [2, 32], strides = [1, 1]} : vector<8x128xf32> to vector<2x32xf32>
    %c1_131 = arith.constant 1 : index
    %c0_132 = arith.constant 0 : index
    %c0_133 = arith.constant 0 : index
    %452 = vector.load %arg11[%c1_131, %c0_132, %c0_133] : memref<2x2x32xf32, #tpu.memory_space<vmem>>, vector<1x2x32xf32>
    %453 = vector.shape_cast %452 : vector<1x2x32xf32> to vector<2x32xf32>
    %454 = vector.shape_cast %451 : vector<2x32xf32> to vector<1x2x32xf32>
    tpu.vector_store %arg11[%c1_131, %c0_132, %c0_133], %454 {strides = array<i32>} : memref<2x2x32xf32, #tpu.memory_space<vmem>>, vector<1x2x32xf32>,
    %c0_134 = arith.constant 0 : index
    %c0_135 = arith.constant 0 : index
    %455 = vector.load %arg7[%c0_134, %c0_135] : memref<128x64xf32, #tpu.memory_space<vmem>>, vector<128x64xf32>
    %cst_136 = arith.constant dense<0.000000e+00> : vector<8x64xf32>
    %456 = tpu.matmul %438, %455, %cst_136 {dimension_numbers = #tpu.dot_dimension_numbers<[1], [0], [0], [1], [0, 0, 1, 1], [], []>} : vector<8x128xf32>, vector<128x64xf32>, vector<8x64xf32> -> vector<8x64xf32>
    %c0_137 = arith.constant 0 : index
    %c0_138 = arith.constant 0 : index
    %457 = vector.load %arg8[%c0_137, %c0_138] : memref<1x64xf32, #tpu.memory_space<vmem>>, vector<1x64xf32>
    %458 = vector.broadcast %457 : vector<1x64xf32> to vector<8x64xf32>
    %459 = arith.addf %456, %458 : vector<8x64xf32>
    %460 = vector.extract_strided_slice %459 {offsets = [0, 0], sizes = [2, 64], strides = [1, 1]} : vector<8x64xf32> to vector<2x64xf32>
    %c0_139 = arith.constant 0 : index
    %c0_140 = arith.constant 0 : index
    %461 = vector.load %arg9[%c0_139, %c0_140] : memref<2x64xf32, #tpu.memory_space<vmem>>, vector<2x64xf32>
    tpu.vector_store %arg9[%c0_139, %c0_140], %460 {strides = array<i32>} : memref<2x64xf32, #tpu.memory_space<vmem>>, vector<2x64xf32>,
    return
  }
  func.func @transform_0(%arg0: i32, %arg1: memref<2x8xi32, #tpu.memory_space<smem>>) -> (i32, i32) {
    %c0_i32 = arith.constant 0 : i32
    %c0_i32_0 = arith.constant 0 : i32
    %c0_i32_1 = arith.constant 0 : i32
    return %c0_i32, %c0_i32_0 : i32, i32
  }
  func.func @transform_1(%arg0: i32, %arg1: memref<2x8xi32, #tpu.memory_space<smem>>) -> (i32, i32) {
    %c0_i32 = arith.constant 0 : i32
    %c0_i32_0 = arith.constant 0 : i32
    %c0_i32_1 = arith.constant 0 : i32
    return %c0_i32, %c0_i32_0 : i32, i32
  }
  func.func @transform_2(%arg0: i32, %arg1: memref<2x8xi32, #tpu.memory_space<smem>>) -> (i32, i32) {
    %c0_i32 = arith.constant 0 : i32
    %c0_i32_0 = arith.constant 0 : i32
    %c0_i32_1 = arith.constant 0 : i32
    return %c0_i32, %c0_i32_0 : i32, i32
  }
  func.func @transform_3(%arg0: i32, %arg1: memref<2x8xi32, #tpu.memory_space<smem>>) -> (i32, i32) {
    %c0_i32 = arith.constant 0 : i32
    %c0_i32_0 = arith.constant 0 : i32
    %c0_i32_1 = arith.constant 0 : i32
    return %c0_i32, %c0_i32_0 : i32, i32
  }
  func.func @transform_4(%arg0: i32, %arg1: memref<2x8xi32, #tpu.memory_space<smem>>) -> (i32, i32) {
    %c0_i32 = arith.constant 0 : i32
    %c0_i32_0 = arith.constant 0 : i32
    %c0_i32_1 = arith.constant 0 : i32
    return %c0_i32, %c0_i32_0 : i32, i32
  }
  func.func @transform_5(%arg0: i32, %arg1: memref<2x8xi32, #tpu.memory_space<smem>>) -> (i32, i32) {
    %c0_i32 = arith.constant 0 : i32
    %c0_i32_0 = arith.constant 0 : i32
    %c0_i32_1 = arith.constant 0 : i32
    return %c0_i32, %c0_i32_0 : i32, i32
  }
  func.func @transform_6(%arg0: i32, %arg1: memref<2x8xi32, #tpu.memory_space<smem>>) -> (i32, i32) {
    %c0_i32 = arith.constant 0 : i32
    %c0_i32_0 = arith.constant 0 : i32
    %c0_i32_1 = arith.constant 0 : i32
    return %c0_i32, %c0_i32_0 : i32, i32
  }
  func.func @transform_7(%arg0: i32, %arg1: memref<2x8xi32, #tpu.memory_space<smem>>) -> (i32, i32) {
    %c0_i32 = arith.constant 0 : i32
    %c0_i32_0 = arith.constant 0 : i32
    %c0_i32_1 = arith.constant 0 : i32
    return %c0_i32, %c0_i32_0 : i32, i32
  }
  func.func @transform_8(%arg0: i32, %arg1: memref<2x8xi32, #tpu.memory_space<smem>>) -> (i32, i32, i32) {
    %c0_i32 = arith.constant 0 : i32
    %c0_i32_0 = arith.constant 0 : i32
    %c0_i32_1 = arith.constant 0 : i32
    %c0_i32_2 = arith.constant 0 : i32
    return %c0_i32, %c0_i32_0, %c0_i32_1 : i32, i32, i32
  }
  func.func @transform_9(%arg0: i32, %arg1: memref<2x8xi32, #tpu.memory_space<smem>>) -> (i32, i32, i32) {
    %c0_i32 = arith.constant 0 : i32
    %c0_i32_0 = arith.constant 0 : i32
    %c0_i32_1 = arith.constant 0 : i32
    %c0_i32_2 = arith.constant 0 : i32
    return %c0_i32, %c0_i32_0, %c0_i32_1 : i32, i32, i32
  }
}

</mosaic_0001>

<llo_original>
// kernel: charrnn_forward.1
$region0: #{charrnn_forward.1}
  #allocation0 [shape = 'u32[]', space=smem, size = 0x4, offset = 0x4, fixed_abs, tag = 'smem constant byte address 0x4 - core index']
  #allocation1 [shape = 'u32[144,128]{1,0:T(1,128)}', space=vmem, size = 0x12000, scoped, tag = 'internal scratch']
  #allocation2 [shape = 's32[1]{0}', space=sflag, size = 0x4, scoped, tag = 'scoped memory for charrnn_forward.1']
  #allocation3 [shape = 'u8[1024]{0}', space=smem, size = 0x400, scoped, tag = 'prefetched SMEM operand 0']
  %s0 = inlined_call_operand.vmem [shape: s32[2,8], index: 0, kind: input, shape index: {}]
  %s1 = inlined_call_operand.vmem [shape: f32[64,128], index: 1, kind: input, shape index: {}]
  %s2 = inlined_call_operand.vmem [shape: f32[1,128], index: 2, kind: input, shape index: {}]
  %s3 = inlined_call_operand.vmem [shape: f32[128,128], index: 3, kind: input, shape index: {}]
  %s4 = inlined_call_operand.hbm [shape: f32[256,128], index: 4, kind: input, shape index: {}]
  %s5 = inlined_call_operand.vmem [shape: f32[1,128], index: 5, kind: input, shape index: {}]
  %s6 = inlined_call_operand.vmem [shape: f32[128,64], index: 6, kind: input, shape index: {}]
  %s7 = inlined_call_operand.vmem [shape: f32[1,64], index: 7, kind: input, shape index: {}]
  %s8 = inlined_call_operand.hbm [shape: f32[2,64], index: 8, kind: output, shape index: {0}]
  %s9 = inlined_call_operand.hbm [shape: f32[2,2,32], index: 9, kind: output, shape index: {1}]
  %s10 = inlined_call_operand.hbm [shape: f32[2,2,32], index: 10, kind: output, shape index: {2}]
  %11 = xla_tuple %s8, %s9, %s10
  %s12 = sld [smem:[#allocation0]]
  $region58: #{charrnn_forward.1} parent=0
    _
  %s14 = ssub.s32 1, %s12
  %s15 = scalar_select 0, %s14, %s12
  %s16 = sshll.u32 %s0, 4
  %s17 = int_to_ptr.vmem [resolvable:$true] %s16
  %19 = dma.vmem_to_smem %s17, 32, [#allocation3], [#allocation2]
  %20 = dma.done [#allocation2], 32
  %21 = sfence
  $region1: #{charrnn_forward.1} parent=0
    #allocation4 [shape = 'u8[131072]{0}', space=vmem, size = 0x20000, scoped, tag = 'input window, operand 4, single buffered']
    #allocation5 [shape = 's32[1]{0}', space=sflag, size = 0x4, scoped, tag = 'scoped memory for charrnn_forward.1']
    #allocation6 [shape = 's32[1]{0}', space=sflag, size = 0x4, scoped, tag = 'scoped memory for charrnn_forward.1']
    #allocation7 [shape = 'u8[1024]{0}', space=vmem, size = 0x400, scoped, tag = 'output window, operand 0, single buffered']
    #allocation8 [shape = 'u8[2048]{0}', space=vmem, size = 0x800, scoped, tag = 'output window, operand 1, single buffered']
    #allocation9 [shape = 's32[1]{0}', space=sflag, size = 0x4, scoped, tag = 'scoped memory for charrnn_forward.1']
    #allocation10 [shape = 'u8[2048]{0}', space=vmem, size = 0x800, scoped, tag = 'output window, operand 2, single buffered']
    %22 = vsyncpa [#allocation5], 0
    %23 = vsyncpa [#allocation6], 0
    %24 = vsyncpa [#allocation9], 0
    // Predicated region
    $region2: #{charrnn_forward.1} parent=1 // pred_check
      _
    $region3: #{charrnn_forward.1} parent=1 // pred_check_branch
      %26 = sbr.rel (0) target = $region5
    $region4: #{charrnn_forward.1} parent=1 // pred_region
      _
    $region5: #{charrnn_forward.1} parent=1 // pred_fallthru
      _
    // Predicated region
    $region6: #{charrnn_forward.1} parent=1 // pred_check
      _
    $region7: #{charrnn_forward.1} parent=1 // pred_check_branch
      %28 = sbr.rel (0) target = $region9
    $region8: #{charrnn_forward.1} parent=1 // pred_region
      _
    $region9: #{charrnn_forward.1} parent=1 // pred_fallthru
      _
    // Predicated region
    $region10: #{charrnn_forward.1} parent=1 // pred_check
      _
    $region11: #{charrnn_forward.1} parent=1 // pred_check_branch
      %30 = sbr.rel (0) target = $region13
    $region12: #{charrnn_forward.1} parent=1 // pred_region
      _
    $region13: #{charrnn_forward.1} parent=1 // pred_fallthru
      _
    // Predicated region
    $region14: #{charrnn_forward.1} parent=1 // pred_check
      _
    $region15: #{charrnn_forward.1} parent=1 // pred_check_branch
      %32 = sbr.rel (0) target = $region17
    $region16: #{charrnn_forward.1} parent=1 // pred_region
      %s34 = ssub.s32 4096, 4096
      %35 = vsyncadd [#allocation5], %s34
      %s36 = sshll.u32 [#allocation4], 4
      %s37 = int_to_ptr.vmem [resolvable:$true] %s36
      %42 = dma.hbm_to_vmem [thread:$0]  %s4, 4096, %s37, [#allocation5], 128, 128, 8
    $region17: #{charrnn_forward.1} parent=1 // pred_fallthru
      _
    // Predicated region
    $region18: #{charrnn_forward.1} parent=1 // pred_check
      _
    $region19: #{charrnn_forward.1} parent=1 // pred_check_branch
      %44 = sbr.rel (0) target = $region21
    $region20: #{charrnn_forward.1} parent=1 // pred_region
      _
    $region21: #{charrnn_forward.1} parent=1 // pred_fallthru
      _
    // Predicated region
    $region22: #{charrnn_forward.1} parent=1 // pred_check
      _
    $region23: #{charrnn_forward.1} parent=1 // pred_check_branch
      %46 = sbr.rel (0) target = $region25
    $region24: #{charrnn_forward.1} parent=1 // pred_region
      _
    $region25: #{charrnn_forward.1} parent=1 // pred_fallthru
      _
    // Predicated region
    $region26: #{charrnn_forward.1} parent=1 // pred_check
      _
    $region27: #{charrnn_forward.1} parent=1 // pred_check_branch
      %48 = sbr.rel (0) target = $region29
    $region28: #{charrnn_forward.1} parent=1 // pred_region
      _
    $region29: #{charrnn_forward.1} parent=1 // pred_fallthru
      _
    // Predicated region
    $region30: #{charrnn_forward.1} parent=1 // pred_check
      _
    $region31: #{charrnn_forward.1} parent=1 // pred_check_branch
      %50 = sbr.rel (0) target = $region33
    $region32: #{charrnn_forward.1} parent=1 // pred_region
      %51 = dma.done [#allocation5], 4096
    $region33: #{charrnn_forward.1} parent=1 // pred_fallthru
      _
    %v52 = vlaneseq
    %v53 = vshrl.u32 %v52, 7
    %v54 = vadd.s32 %v53, 8
    %v55 = vadd.s32 %v53, 16
    %v56 = vadd.s32 %v53, 24
    %v57 = vadd.s32 %v53, 32
    %v58 = vadd.s32 %v53, 40
    %v59 = vadd.s32 %v53, 48
    %v60 = vadd.s32 %v53, 56
    %vm61 = vcmp.eq.s32.totalorder %v53, 0
    %vm62 = vcmp.eq.s32.totalorder %v54, 0
    %vm63 = vcmp.eq.s32.totalorder %v55, 0
    %vm64 = vcmp.eq.s32.totalorder %v56, 0
    %vm65 = vcmp.eq.s32.totalorder %v57, 0
    %vm66 = vcmp.eq.s32.totalorder %v58, 0
    %vm67 = vcmp.eq.s32.totalorder %v59, 0
    %vm68 = vcmp.eq.s32.totalorder %v60, 0
    %s69 = sld [smem:[#allocation3]]
    %v70 = vstv %s69
    %v71 = vsel %vm61, %v70, 4294967295
    %v72 = vsel %vm62, %v70, 4294967295
    %v73 = vsel %vm63, %v70, 4294967295
    %v74 = vsel %vm64, %v70, 4294967295
    %v75 = vsel %vm65, %v70, 4294967295
    %v76 = vsel %vm66, %v70, 4294967295
    %v77 = vsel %vm67, %v70, 4294967295
    %v78 = vsel %vm68, %v70, 4294967295
    %vm79 = vcmp.eq.s32.totalorder %v53, 1
    %vm80 = vcmp.eq.s32.totalorder %v54, 1
    %vm81 = vcmp.eq.s32.totalorder %v55, 1
    %vm82 = vcmp.eq.s32.totalorder %v56, 1
    %vm83 = vcmp.eq.s32.totalorder %v57, 1
    %vm84 = vcmp.eq.s32.totalorder %v58, 1
    %vm85 = vcmp.eq.s32.totalorder %v59, 1
    %vm86 = vcmp.eq.s32.totalorder %v60, 1
    %s87 = sld [smem:[#allocation3 + $0x80]]
    %v88 = vstv %s87
    %v89 = vsel %vm79, %v88, %v71
    %v90 = vsel %vm80, %v88, %v72
    %v91 = vsel %vm81, %v88, %v73
    %v92 = vsel %vm82, %v88, %v74
    %v93 = vsel %vm83, %v88, %v75
    %v94 = vsel %vm84, %v88, %v76
    %v95 = vsel %vm85, %v88, %v77
    %v96 = vsel %vm86, %v88, %v78
    %vm97 = vcmp.eq.s32.totalorder %v53, 8
    %vm98 = vcmp.eq.s32.totalorder %v54, 8
    %vm99 = vcmp.eq.s32.totalorder %v55, 8
    %vm100 = vcmp.eq.s32.totalorder %v56, 8
    %vm101 = vcmp.eq.s32.totalorder %v57, 8
    %vm102 = vcmp.eq.s32.totalorder %v58, 8
    %vm103 = vcmp.eq.s32.totalorder %v59, 8
    %vm104 = vcmp.eq.s32.totalorder %v60, 8
    %s105 = sld [smem:[#allocation3 + $0x1]]
    %v106 = vstv %s105
    %v107 = vsel %vm97, %v106, %v89
    %v108 = vsel %vm98, %v106, %v90
    %v109 = vsel %vm99, %v106, %v91
    %v110 = vsel %vm100, %v106, %v92
    %v111 = vsel %vm101, %v106, %v93
    %v112 = vsel %vm102, %v106, %v94
    %v113 = vsel %vm103, %v106, %v95
    %v114 = vsel %vm104, %v106, %v96
    %vm115 = vcmp.eq.s32.totalorder %v53, 9
    %vm116 = vcmp.eq.s32.totalorder %v54, 9
    %vm117 = vcmp.eq.s32.totalorder %v55, 9
    %vm118 = vcmp.eq.s32.totalorder %v56, 9
    %vm119 = vcmp.eq.s32.totalorder %v57, 9
    %vm120 = vcmp.eq.s32.totalorder %v58, 9
    %vm121 = vcmp.eq.s32.totalorder %v59, 9
    %vm122 = vcmp.eq.s32.totalorder %v60, 9
    %s123 = sld [smem:[#allocation3 + $0x81]]
    %v124 = vstv %s123
    %v125 = vsel %vm115, %v124, %v107
    %v126 = vsel %vm116, %v124, %v108
    %v127 = vsel %vm117, %v124, %v109
    %v128 = vsel %vm118, %v124, %v110
    %v129 = vsel %vm119, %v124, %v111
    %v130 = vsel %vm120, %v124, %v112
    %v131 = vsel %vm121, %v124, %v113
    %v132 = vsel %vm122, %v124, %v114
    %vm133 = vcmp.eq.s32.totalorder %v53, 16
    %vm134 = vcmp.eq.s32.totalorder %v54, 16
    %vm135 = vcmp.eq.s32.totalorder %v55, 16
    %vm136 = vcmp.eq.s32.totalorder %v56, 16
    %vm137 = vcmp.eq.s32.totalorder %v57, 16
    %vm138 = vcmp.eq.s32.totalorder %v58, 16
    %vm139 = vcmp.eq.s32.totalorder %v59, 16
    %vm140 = vcmp.eq.s32.totalorder %v60, 16
    %s141 = sld [smem:[#allocation3 + $0x2]]
    %v142 = vstv %s141
    %v143 = vsel %vm133, %v142, %v125
    %v144 = vsel %vm134, %v142, %v126
    %v145 = vsel %vm135, %v142, %v127
    %v146 = vsel %vm136, %v142, %v128
    %v147 = vsel %vm137, %v142, %v129
    %v148 = vsel %vm138, %v142, %v130
    %v149 = vsel %vm139, %v142, %v131
    %v150 = vsel %vm140, %v142, %v132
    %vm151 = vcmp.eq.s32.totalorder %v53, 17
    %vm152 = vcmp.eq.s32.totalorder %v54, 17
    %vm153 = vcmp.eq.s32.totalorder %v55, 17
    %vm154 = vcmp.eq.s32.totalorder %v56, 17
    %vm155 = vcmp.eq.s32.totalorder %v57, 17
    %vm156 = vcmp.eq.s32.totalorder %v58, 17
    %vm157 = vcmp.eq.s32.totalorder %v59, 17
    %vm158 = vcmp.eq.s32.totalorder %v60, 17
    %s159 = sld [smem:[#allocation3 + $0x82]]
    %v160 = vstv %s159
    %v161 = vsel %vm151, %v160, %v143
    %v162 = vsel %vm152, %v160, %v144
    %v163 = vsel %vm153, %v160, %v145
    %v164 = vsel %vm154, %v160, %v146
    %v165 = vsel %vm155, %v160, %v147
    %v166 = vsel %vm156, %v160, %v148
    %v167 = vsel %vm157, %v160, %v149
    %v168 = vsel %vm158, %v160, %v150
    %vm169 = vcmp.eq.s32.totalorder %v53, 24
    %vm170 = vcmp.eq.s32.totalorder %v54, 24
    %vm171 = vcmp.eq.s32.totalorder %v55, 24
    %vm172 = vcmp.eq.s32.totalorder %v56, 24
    %vm173 = vcmp.eq.s32.totalorder %v57, 24
    %vm174 = vcmp.eq.s32.totalorder %v58, 24
    %vm175 = vcmp.eq.s32.totalorder %v59, 24
    %vm176 = vcmp.eq.s32.totalorder %v60, 24
    %s177 = sld [smem:[#allocation3 + $0x3]]
    %v178 = vstv %s177
    %v179 = vsel %vm169, %v178, %v161
    %v180 = vsel %vm170, %v178, %v162
    %v181 = vsel %vm171, %v178, %v163
    %v182 = vsel %vm172, %v178, %v164
    %v183 = vsel %vm173, %v178, %v165
    %v184 = vsel %vm174, %v178, %v166
    %v185 = vsel %vm175, %v178, %v167
    %v186 = vsel %vm176, %v178, %v168
    %vm187 = vcmp.eq.s32.totalorder %v53, 25
    %vm188 = vcmp.eq.s32.totalorder %v54, 25
    %vm189 = vcmp.eq.s32.totalorder %v55, 25
    %vm190 = vcmp.eq.s32.totalorder %v56, 25
    %vm191 = vcmp.eq.s32.totalorder %v57, 25
    %vm192 = vcmp.eq.s32.totalorder %v58, 25
    %vm193 = vcmp.eq.s32.totalorder %v59, 25
    %vm194 = vcmp.eq.s32.totalorder %v60, 25
    %s195 = sld [smem:[#allocation3 + $0x83]]
    %v196 = vstv %s195
    %v197 = vsel %vm187, %v196, %v179
    %v198 = vsel %vm188, %v196, %v180
    %v199 = vsel %vm189, %v196, %v181
    %v200 = vsel %vm190, %v196, %v182
    %v201 = vsel %vm191, %v196, %v183
    %v202 = vsel %vm192, %v196, %v184
    %v203 = vsel %vm193, %v196, %v185
    %v204 = vsel %vm194, %v196, %v186
    %vm205 = vcmp.eq.s32.totalorder %v53, 32
    %vm206 = vcmp.eq.s32.totalorder %v54, 32
    %vm207 = vcmp.eq.s32.totalorder %v55, 32
    %vm208 = vcmp.eq.s32.totalorder %v56, 32
    %vm209 = vcmp.eq.s32.totalorder %v57, 32
    %vm210 = vcmp.eq.s32.totalorder %v58, 32
    %vm211 = vcmp.eq.s32.totalorder %v59, 32
    %vm212 = vcmp.eq.s32.totalorder %v60, 32
    %s213 = sld [smem:[#allocation3 + $0x4]]
    %v214 = vstv %s213
    %v215 = vsel %vm205, %v214, %v197
    %v216 = vsel %vm206, %v214, %v198
    %v217 = vsel %vm207, %v214, %v199
    %v218 = vsel %vm208, %v214, %v200
    %v219 = vsel %vm209, %v214, %v201
    %v220 = vsel %vm210, %v214, %v202
    %v221 = vsel %vm211, %v214, %v203
    %v222 = vsel %vm212, %v214, %v204
    %vm223 = vcmp.eq.s32.totalorder %v53, 33
    %vm224 = vcmp.eq.s32.totalorder %v54, 33
    %vm225 = vcmp.eq.s32.totalorder %v55, 33
    %vm226 = vcmp.eq.s32.totalorder %v56, 33
    %vm227 = vcmp.eq.s32.totalorder %v57, 33
    %vm228 = vcmp.eq.s32.totalorder %v58, 33
    %vm229 = vcmp.eq.s32.totalorder %v59, 33
    %vm230 = vcmp.eq.s32.totalorder %v60, 33
    %s231 = sld [smem:[#allocation3 + $0x84]]
    %v232 = vstv %s231
    %v233 = vsel %vm223, %v232, %v215
    %v234 = vsel %vm224, %v232, %v216
    %v235 = vsel %vm225, %v232, %v217
    %v236 = vsel %vm226, %v232, %v218
    %v237 = vsel %vm227, %v232, %v219
    %v238 = vsel %vm228, %v232, %v220
    %v239 = vsel %vm229, %v232, %v221
    %v240 = vsel %vm230, %v232, %v222
    %vm241 = vcmp.eq.s32.totalorder %v53, 40
    %vm242 = vcmp.eq.s32.totalorder %v54, 40
    %vm243 = vcmp.eq.s32.totalorder %v55, 40
    %vm244 = vcmp.eq.s32.totalorder %v56, 40
    %vm245 = vcmp.eq.s32.totalorder %v57, 40
    %vm246 = vcmp.eq.s32.totalorder %v58, 40
    %vm247 = vcmp.eq.s32.totalorder %v59, 40
    %vm248 = vcmp.eq.s32.totalorder %v60, 40
    %s249 = sld [smem:[#allocation3 + $0x5]]
    %v250 = vstv %s249
    %v251 = vsel %vm241, %v250, %v233
    %v252 = vsel %vm242, %v250, %v234
    %v253 = vsel %vm243, %v250, %v235
    %v254 = vsel %vm244, %v250, %v236
    %v255 = vsel %vm245, %v250, %v237
    %v256 = vsel %vm246, %v250, %v238
    %v257 = vsel %vm247, %v250, %v239
    %v258 = vsel %vm248, %v250, %v240
    %vm259 = vcmp.eq.s32.totalorder %v53, 41
    %vm260 = vcmp.eq.s32.totalorder %v54, 41
    %vm261 = vcmp.eq.s32.totalorder %v55, 41
    %vm262 = vcmp.eq.s32.totalorder %v56, 41
    %vm263 = vcmp.eq.s32.totalorder %v57, 41
    %vm264 = vcmp.eq.s32.totalorder %v58, 41
    %vm265 = vcmp.eq.s32.totalorder %v59, 41
    %vm266 = vcmp.eq.s32.totalorder %v60, 41
    %s267 = sld [smem:[#allocation3 + $0x85]]
    %v268 = vstv %s267
    %v269 = vsel %vm259, %v268, %v251
    %v270 = vsel %vm260, %v268, %v252
    %v271 = vsel %vm261, %v268, %v253
    %v272 = vsel %vm262, %v268, %v254
    %v273 = vsel %vm263, %v268, %v255
    %v274 = vsel %vm264, %v268, %v256
    %v275 = vsel %vm265, %v268, %v257
    %v276 = vsel %vm266, %v268, %v258
    %vm277 = vcmp.eq.s32.totalorder %v53, 48
    %vm278 = vcmp.eq.s32.totalorder %v54, 48
    %vm279 = vcmp.eq.s32.totalorder %v55, 48
    %vm280 = vcmp.eq.s32.totalorder %v56, 48
    %vm281 = vcmp.eq.s32.totalorder %v57, 48
    %vm282 = vcmp.eq.s32.totalorder %v58, 48
    %vm283 = vcmp.eq.s32.totalorder %v59, 48
    %vm284 = vcmp.eq.s32.totalorder %v60, 48
    %s285 = sld [smem:[#allocation3 + $0x6]]
    %v286 = vstv %s285
    %v287 = vsel %vm277, %v286, %v269
    %v288 = vsel %vm278, %v286, %v270
    %v289 = vsel %vm279, %v286, %v271
    %v290 = vsel %vm280, %v286, %v272
    %v291 = vsel %vm281, %v286, %v273
    %v292 = vsel %vm282, %v286, %v274
    %v293 = vsel %vm283, %v286, %v275
    %v294 = vsel %vm284, %v286, %v276
    %vm295 = vcmp.eq.s32.totalorder %v53, 49
    %vm296 = vcmp.eq.s32.totalorder %v54, 49
    %vm297 = vcmp.eq.s32.totalorder %v55, 49
    %vm298 = vcmp.eq.s32.totalorder %v56, 49
    %vm299 = vcmp.eq.s32.totalorder %v57, 49
    %vm300 = vcmp.eq.s32.totalorder %v58, 49
    %vm301 = vcmp.eq.s32.totalorder %v59, 49
    %vm302 = vcmp.eq.s32.totalorder %v60, 49
    %s303 = sld [smem:[#allocation3 + $0x86]]
    %v304 = vstv %s303
    %v305 = vsel %vm295, %v304, %v287
    %v306 = vsel %vm296, %v304, %v288
    %v307 = vsel %vm297, %v304, %v289
    %v308 = vsel %vm298, %v304, %v290
    %v309 = vsel %vm299, %v304, %v291
    %v310 = vsel %vm300, %v304, %v292
    %v311 = vsel %vm301, %v304, %v293
    %v312 = vsel %vm302, %v304, %v294
    %vm313 = vcmp.eq.s32.totalorder %v53, 56
    %vm314 = vcmp.eq.s32.totalorder %v54, 56
    %vm315 = vcmp.eq.s32.totalorder %v55, 56
    %vm316 = vcmp.eq.s32.totalorder %v56, 56
    %vm317 = vcmp.eq.s32.totalorder %v57, 56
    %vm318 = vcmp.eq.s32.totalorder %v58, 56
    %vm319 = vcmp.eq.s32.totalorder %v59, 56
    %vm320 = vcmp.eq.s32.totalorder %v60, 56
    %s321 = sld [smem:[#allocation3 + $0x7]]
    %v322 = vstv %s321
    %v323 = vsel %vm313, %v322, %v305
    %v324 = vsel %vm314, %v322, %v306
    %v325 = vsel %vm315, %v322, %v307
    %v326 = vsel %vm316, %v322, %v308
    %v327 = vsel %vm317, %v322, %v309
    %v328 = vsel %vm318, %v322, %v310
    %v329 = vsel %vm319, %v322, %v311
    %v330 = vsel %vm320, %v322, %v312
    %vm331 = vcmp.eq.s32.totalorder %v53, 57
    %vm332 = vcmp.eq.s32.totalorder %v54, 57
    %vm333 = vcmp.eq.s32.totalorder %v55, 57
    %vm334 = vcmp.eq.s32.totalorder %v56, 57
    %vm335 = vcmp.eq.s32.totalorder %v57, 57
    %vm336 = vcmp.eq.s32.totalorder %v58, 57
    %vm337 = vcmp.eq.s32.totalorder %v59, 57
    %vm338 = vcmp.eq.s32.totalorder %v60, 57
    %s339 = sld [smem:[#allocation3 + $0x87]]
    %v340 = vstv %s339
    %v341 = vsel %vm331, %v340, %v323
    %v342 = vsel %vm332, %v340, %v324
    %v343 = vsel %vm333, %v340, %v325
    %v344 = vsel %vm334, %v340, %v326
    %v345 = vsel %vm335, %v340, %v327
    %v346 = vsel %vm336, %v340, %v328
    %v347 = vsel %vm337, %v340, %v329
    %v348 = vsel %vm338, %v340, %v330
    %v349 = vlaneseq
    %v350 = vand.u32 %v349, 127
    %vm351 = vcmp.eq.s32.totalorder %v341, %v350
    %vm352 = vcmp.eq.s32.totalorder %v342, %v350
    %vm353 = vcmp.eq.s32.totalorder %v343, %v350
    %vm354 = vcmp.eq.s32.totalorder %v344, %v350
    %vm355 = vcmp.eq.s32.totalorder %v345, %v350
    %vm356 = vcmp.eq.s32.totalorder %v346, %v350
    %vm357 = vcmp.eq.s32.totalorder %v347, %v350
    %vm358 = vcmp.eq.s32.totalorder %v348, %v350
    %v359 = vsel %vm351, 1, 0
    %v360 = vsel %vm352, 1, 0
    %v361 = vsel %vm353, 1, 0
    %v362 = vsel %vm354, 1, 0
    %v363 = vsel %vm355, 1, 0
    %v364 = vsel %vm356, 1, 0
    %v365 = vsel %vm357, 1, 0
    %v366 = vsel %vm358, 1, 0
    %v367 = vcvt.s32.f32 %v359
    %v368 = vcvt.s32.f32 %v360
    %v369 = vcvt.s32.f32 %v361
    %v370 = vcvt.s32.f32 %v362
    %v371 = vcvt.s32.f32 %v363
    %v372 = vcvt.s32.f32 %v364
    %v373 = vcvt.s32.f32 %v365
    %v374 = vcvt.s32.f32 %v366
    %v375 = vld [vmem:[%s1] sm:$0xff]
    %v376 = vld [vmem:[%s1 + $0x8] sm:$0xff]
    %v377 = vld [vmem:[%s1 + $0x10] sm:$0xff]
    %v378 = vld [vmem:[%s1 + $0x18] sm:$0xff]
    %v379 = vld [vmem:[%s1 + $0x20] sm:$0xff]
    %v380 = vld [vmem:[%s1 + $0x28] sm:$0xff]
    %v381 = vld [vmem:[%s1 + $0x30] sm:$0xff]
    %v382 = vld [vmem:[%s1 + $0x38] sm:$0xff]
    %v383 = vld [vmem:[%s2] sm:$0x1]
    %v385 = vlaneseq
    %v386 = vshrl.u32 %v385, 7
    %v387 = vsub.s32 0, %v386
    %v388 = vrot.slane %v383, %v387
    %vm390 = vcmask 523264
    %v392 = vsel %vm390, %v367, 0
    %v395 = vsel %vm390, %v368, 0
    %v398 = vsel %vm390, %v369, 0
    %v401 = vsel %vm390, %v370, 0
    %v404 = vsel %vm390, %v371, 0
    %v407 = vsel %vm390, %v372, 0
    %v410 = vsel %vm390, %v373, 0
    %v413 = vsel %vm390, %v374, 0
    %415 = vmatprep.subr.mxu0 0.0
    %416 = vmatpush1.msra.mxu0 0.0
    %417 = vmatprep.subr.mxu0 0.0
    %418 = vmatpush1.msra.mxu0 0.0
    %419 = vmatprep.subr.mxu0 0.0
    %420 = vmatpush1.msra.mxu0 0.0
    %421 = vmatprep.subr.mxu0 0.0
    %422 = vmatpush1.msra.mxu0 0.0
    %423 = vmatprep.subr.mxu0 0.0
    %424 = vmatpush1.msra.mxu0 0.0
    %425 = vmatprep.subr.mxu0 0.0
    %426 = vmatpush1.msra.mxu0 0.0
    %427 = vmatprep.subr.mxu0 0.0
    %428 = vmatpush1.msra.mxu0 0.0
    %429 = vmatprep.subr.mxu0 0.0
    %430 = vmatpush1.msra.mxu0 0.0
    %431 = vmatprep.subr.mxu0 0.0
    %432 = vmatpush1.msra.mxu0 %v382
    %433 = vmatprep.subr.mxu0 0.0
    %434 = vmatpush1.msra.mxu0 %v381
    %435 = vmatprep.subr.mxu0 0.0
    %436 = vmatpush1.msra.mxu0 %v380
    %437 = vmatprep.subr.mxu0 0.0
    %438 = vmatpush1.msra.mxu0 %v379
    %439 = vmatprep.subr.mxu0 0.0
    %440 = vmatpush1.msra.mxu0 %v378
    %441 = vmatprep.subr.mxu0 0.0
    %442 = vmatpush1.msra.mxu0 %v377
    %443 = vmatprep.subr.mxu0 0.0
    %444 = vmatpush1.msra.mxu0 %v376
    %445 = vmatprep.subr.mxu0 0.0
    %446 = vmatpush1.msra.mxu0 %v375
    %447 = vmatprep.subr.mxu0 0.0
    %448 = vmatpush2.msra.mxu0 0.0
    %449 = vmatprep.subr.mxu0 0.0
    %450 = vmatpush2.msra.mxu0 0.0
    %451 = vmatprep.subr.mxu0 0.0
    %452 = vmatpush2.msra.mxu0 0.0
    %453 = vmatprep.subr.mxu0 0.0
    %454 = vmatpush2.msra.mxu0 0.0
    %455 = vmatprep.subr.mxu0 0.0
    %456 = vmatpush2.msra.mxu0 0.0
    %457 = vmatprep.subr.mxu0 0.0
    %458 = vmatpush2.msra.mxu0 0.0
    %459 = vmatprep.subr.mxu0 0.0
    %460 = vmatpush2.msra.mxu0 0.0
    %461 = vmatprep.subr.mxu0 0.0
    %462 = vmatpush2.msra.mxu0 0.0
    %463 = vmatprep.subr.mxu0 0.0
    %464 = vmatpush2.msra.mxu0 0.0
    %465 = vmatprep.subr.mxu0 0.0
    %466 = vmatpush2.msra.mxu0 0.0
    %467 = vmatprep.subr.mxu0 0.0
    %468 = vmatpush2.msra.mxu0 0.0
    %469 = vmatprep.subr.mxu0 0.0
    %470 = vmatpush2.msra.mxu0 0.0
    %471 = vmatprep.subr.mxu0 0.0
    %472 = vmatpush2.msra.mxu0 0.0
    %473 = vmatprep.subr.mxu0 0.0
    %474 = vmatpush2.msra.mxu0 0.0
    %475 = vmatprep.subr.mxu0 0.0
    %476 = vmatpush2.msra.mxu0 0.0
    %477 = vmatprep.subr.mxu0 0.0
    %478 = vmatpush2.msra.mxu0 0.0
    %479 = vmatprep.mubr.f32.mxu0 0.0
    %480 = vmatmul.mubr.f32.gmra.mxu0 %v392
    %v481 = vpop.f32.mrf.mxu0
    %v482 = vadd.f32 %v388, %v481
    %v483 = vpop.f32.mrf.mxu0
    %484 = vmatprep.mubr.f32.mxu0 0.0
    %485 = vmatmul.mubr.f32.gmra.mxu0 %v395
    %v486 = vpop.f32.mrf.mxu0
    %v487 = vadd.f32 %v388, %v486
    %v488 = vpop.f32.mrf.mxu0
    %489 = vmatprep.mubr.f32.mxu0 0.0
    %490 = vmatmul.mubr.f32.gmra.mxu0 %v398
    %v491 = vpop.f32.mrf.mxu0
    %v492 = vadd.f32 %v388, %v491
    %v493 = vpop.f32.mrf.mxu0
    %494 = vmatprep.mubr.f32.mxu0 0.0
    %495 = vmatmul.mubr.f32.gmra.mxu0 %v401
    %v496 = vpop.f32.mrf.mxu0
    %v497 = vadd.f32 %v388, %v496
    %v498 = vpop.f32.mrf.mxu0
    %499 = vmatprep.mubr.f32.mxu0 0.0
    %500 = vmatmul.mubr.f32.gmra.mxu0 %v404
    %v501 = vpop.f32.mrf.mxu0
    %v502 = vadd.f32 %v388, %v501
    %v503 = vpop.f32.mrf.mxu0
    %504 = vmatprep.mubr.f32.mxu0 0.0
    %505 = vmatmul.mubr.f32.gmra.mxu0 %v407
    %v506 = vpop.f32.mrf.mxu0
    %v507 = vadd.f32 %v388, %v506
    %v508 = vpop.f32.mrf.mxu0
    %509 = vmatprep.mubr.f32.mxu0 0.0
    %510 = vmatmul.mubr.f32.gmra.mxu0 %v410
    %v511 = vpop.f32.mrf.mxu0
    %v512 = vadd.f32 %v388, %v511
    %v513 = vpop.f32.mrf.mxu0
    %514 = vmatprep.mubr.f32.mxu0 0.0
    %515 = vmatmul.mubr.f32.gmra.mxu0 %v413
    %v516 = vpop.f32.mrf.mxu0
    %v517 = vadd.f32 %v388, %v516
    %v518 = vpop.f32.mrf.mxu0
    %519 = vdwg.mxu0
    %vm520 = vcmp.ge.s32.totalorder %v350, 64
    %vm521 = vcmp.lt.s32.totalorder %v350, 96
    %vm522 = vmand %vm520, %vm521
    %v523 = vsel %vm522, 2.0, 1.0
    %v524 = vsel %vm522, -1.0, 0.0
    %v525 = vld [vmem:[%s3] sm:$0xff]
    %v526 = vld [vmem:[%s3 + $0x8] sm:$0xff]
    %v527 = vld [vmem:[%s3 + $0x10] sm:$0xff]
    %v528 = vld [vmem:[%s3 + $0x18] sm:$0xff]
    %v529 = vld [vmem:[%s3 + $0x20] sm:$0xff]
    %v530 = vld [vmem:[%s3 + $0x28] sm:$0xff]
    %v531 = vld [vmem:[%s3 + $0x30] sm:$0xff]
    %v532 = vld [vmem:[%s3 + $0x38] sm:$0xff]
    %v533 = vld [vmem:[%s3 + $0x40] sm:$0xff]
    %v534 = vld [vmem:[%s3 + $0x48] sm:$0xff]
    %v535 = vld [vmem:[%s3 + $0x50] sm:$0xff]
    %v536 = vld [vmem:[%s3 + $0x58] sm:$0xff]
    %v537 = vld [vmem:[%s3 + $0x60] sm:$0xff]
    %v538 = vld [vmem:[%s3 + $0x68] sm:$0xff]
    %v539 = vld [vmem:[%s3 + $0x70] sm:$0xff]
    %v540 = vld [vmem:[%s3 + $0x78] sm:$0xff]
    %v541 = vld [vmem:[#allocation4] sm:$0xff]
    %v542 = vld [vmem:[#allocation4 + $0x8] sm:$0xff]
    %v543 = vld [vmem:[#allocation4 + $0x10] sm:$0xff]
    %v544 = vld [vmem:[#allocation4 + $0x18] sm:$0xff]
    %v545 = vld [vmem:[#allocation4 + $0x20] sm:$0xff]
    %v546 = vld [vmem:[#allocation4 + $0x28] sm:$0xff]
    %v547 = vld [vmem:[#allocation4 + $0x30] sm:$0xff]
    %v548 = vld [vmem:[#allocation4 + $0x38] sm:$0xff]
    %v549 = vld [vmem:[#allocation4 + $0x40] sm:$0xff]
    %v550 = vld [vmem:[#allocation4 + $0x48] sm:$0xff]
    %v551 = vld [vmem:[#allocation4 + $0x50] sm:$0xff]
    %v552 = vld [vmem:[#allocation4 + $0x58] sm:$0xff]
    %v553 = vld [vmem:[#allocation4 + $0x60] sm:$0xff]
    %v554 = vld [vmem:[#allocation4 + $0x68] sm:$0xff]
    %v555 = vld [vmem:[#allocation4 + $0x70] sm:$0xff]
    %v556 = vld [vmem:[#allocation4 + $0x78] sm:$0xff]
    %v557 = vld [vmem:[#allocation4 + $0x80] sm:$0xff]
    %v558 = vld [vmem:[#allocation4 + $0x88] sm:$0xff]
    %v559 = vld [vmem:[#allocation4 + $0x90] sm:$0xff]
    %v560 = vld [vmem:[#allocation4 + $0x98] sm:$0xff]
    %v561 = vld [vmem:[#allocation4 + $0xa0] sm:$0xff]
    %v562 = vld [vmem:[#allocation4 + $0xa8] sm:$0xff]
    %v563 = vld [vmem:[#allocation4 + $0xb0] sm:$0xff]
    %v564 = vld [vmem:[#allocation4 + $0xb8] sm:$0xff]
    %v565 = vld [vmem:[#allocation4 + $0xc0] sm:$0xff]
    %v566 = vld [vmem:[#allocation4 + $0xc8] sm:$0xff]
    %v567 = vld [vmem:[#allocation4 + $0xd0] sm:$0xff]
    %v568 = vld [vmem:[#allocation4 + $0xd8] sm:$0xff]
    %v569 = vld [vmem:[#allocation4 + $0xe0] sm:$0xff]
    %v570 = vld [vmem:[#allocation4 + $0xe8] sm:$0xff]
    %v571 = vld [vmem:[#allocation4 + $0xf0] sm:$0xff]
    %v572 = vld [vmem:[#allocation4 + $0xf8] sm:$0xff]
    %v573 = vld [vmem:[%s5] sm:$0x1]
    %574 = vmatprep.subr.mxu0 0.0
    %575 = vmatpush1.msra.mxu0 %v540
    %576 = vmatprep.subr.mxu0 0.0
    %577 = vmatpush1.msra.mxu0 %v539
    %578 = vmatprep.subr.mxu0 0.0
    %579 = vmatpush1.msra.mxu0 %v538
    %580 = vmatprep.subr.mxu0 0.0
    %581 = vmatpush1.msra.mxu0 %v537
    %582 = vmatprep.subr.mxu0 0.0
    %583 = vmatpush1.msra.mxu0 %v536
    %584 = vmatprep.subr.mxu0 0.0
    %585 = vmatpush1.msra.mxu0 %v535
    %586 = vmatprep.subr.mxu0 0.0
    %587 = vmatpush1.msra.mxu0 %v534
    %588 = vmatprep.subr.mxu0 0.0
    %589 = vmatpush1.msra.mxu0 %v533
    %590 = vmatprep.subr.mxu0 0.0
    %591 = vmatpush1.msra.mxu0 %v532
    %592 = vmatprep.subr.mxu0 0.0
    %593 = vmatpush1.msra.mxu0 %v531
    %594 = vmatprep.subr.mxu0 0.0
    %595 = vmatpush1.msra.mxu0 %v530
    %596 = vmatprep.subr.mxu0 0.0
    %597 = vmatpush1.msra.mxu0 %v529
    %598 = vmatprep.subr.mxu0 0.0
    %599 = vmatpush1.msra.mxu0 %v528
    %600 = vmatprep.subr.mxu0 0.0
    %601 = vmatpush1.msra.mxu0 %v527
    %602 = vmatprep.subr.mxu0 0.0
    %603 = vmatpush1.msra.mxu0 %v526
    %604 = vmatprep.subr.mxu0 0.0
    %605 = vmatpush1.msra.mxu0 %v525
    %606 = vmatprep.subr.mxu0 0.0
    %607 = vmatpush2.msra.mxu0 0.0
    %608 = vmatprep.subr.mxu0 0.0
    %609 = vmatpush2.msra.mxu0 0.0
    %610 = vmatprep.subr.mxu0 0.0
    %611 = vmatpush2.msra.mxu0 0.0
    %612 = vmatprep.subr.mxu0 0.0
    %613 = vmatpush2.msra.mxu0 0.0
    %614 = vmatprep.subr.mxu0 0.0
    %615 = vmatpush2.msra.mxu0 0.0
    %616 = vmatprep.subr.mxu0 0.0
    %617 = vmatpush2.msra.mxu0 0.0
    %618 = vmatprep.subr.mxu0 0.0
    %619 = vmatpush2.msra.mxu0 0.0
    %620 = vmatprep.subr.mxu0 0.0
    %621 = vmatpush2.msra.mxu0 0.0
    %622 = vmatprep.subr.mxu0 0.0
    %623 = vmatpush2.msra.mxu0 0.0
    %624 = vmatprep.subr.mxu0 0.0
    %625 = vmatpush2.msra.mxu0 0.0
    %626 = vmatprep.subr.mxu0 0.0
    %627 = vmatpush2.msra.mxu0 0.0
    %628 = vmatprep.subr.mxu0 0.0
    %629 = vmatpush2.msra.mxu0 0.0
    %630 = vmatprep.subr.mxu0 0.0
    %631 = vmatpush2.msra.mxu0 0.0
    %632 = vmatprep.subr.mxu0 0.0
    %633 = vmatpush2.msra.mxu0 0.0
    %634 = vmatprep.subr.mxu0 0.0
    %635 = vmatpush2.msra.mxu0 0.0
    %636 = vmatprep.subr.mxu0 0.0
    %637 = vmatpush2.msra.mxu0 0.0
    %638 = vmatprep.mubr.f32.mxu0 0.0
    %639 = vmatmul.mubr.f32.gmra.mxu0 0.0
    %v640 = vpop.f32.mrf.mxu0
    %v641 = vadd.f32 0.0, %v640
    %v642 = vpop.f32.mrf.mxu0
    %643 = vdwg.mxu0
    %v644 = vadd.f32 %v482, %v641
    %v645 = vxor.u32 %v644, 2147483648
    %v646 = vmul.f32 %v645, 1.442695
    %v647 = vpow.pop %v646
    %v648 = vadd.f32 %v647, 1.0
    %v649 = vrcp.pop %v648
    %v650 = vmul.f32 1.0, %v649
    %v651 = vmul.f32 %v650, %v523
    %v652 = vadd.f32 %v651, %v524
    %653 = vrot.lane.b32.xlu0 %v652, 96
    %v654 = vpop.permute.xlu0 %653
    %655 = vrot.lane.b32.xlu0 %v652, 64
    %v656 = vpop.permute.xlu0 %655
    %657 = vrot.lane.b32.xlu0 %v652, 32
    %v658 = vpop.permute.xlu0 %657
    %v659 = vmul.f32 %v654, 0.0
    %v660 = vmul.f32 %v652, %v656
    %v661 = vadd.f32 %v659, %v660
    %v662 = vtanh.pop %v661
    %v663 = vmul.f32 %v658, %v662
    %v665 = vlaneseq
    %v666 = vshrl.u32 %v665, 7
    %v667 = vsub.s32 0, %v666
    %v668 = vrot.slane %v573, %v667
    %670 = vmatprep.subr.mxu0 0.0
    %671 = vmatpush1.msra.mxu0 %v556
    %672 = vmatprep.subr.mxu0 0.0
    %673 = vmatpush1.msra.mxu0 %v555
    %674 = vmatprep.subr.mxu0 0.0
    %675 = vmatpush1.msra.mxu0 %v554
    %676 = vmatprep.subr.mxu0 0.0
    %677 = vmatpush1.msra.mxu0 %v553
    %678 = vmatprep.subr.mxu0 0.0
    %679 = vmatpush1.msra.mxu0 %v552
    %680 = vmatprep.subr.mxu0 0.0
    %681 = vmatpush1.msra.mxu0 %v551
    %682 = vmatprep.subr.mxu0 0.0
    %683 = vmatpush1.msra.mxu0 %v550
    %684 = vmatprep.subr.mxu0 0.0
    %685 = vmatpush1.msra.mxu0 %v549
    %686 = vmatprep.subr.mxu0 0.0
    %687 = vmatpush1.msra.mxu0 %v548
    %688 = vmatprep.subr.mxu0 0.0
    %689 = vmatpush1.msra.mxu0 %v547
    %690 = vmatprep.subr.mxu0 0.0
    %691 = vmatpush1.msra.mxu0 %v546
    %692 = vmatprep.subr.mxu0 0.0
    %693 = vmatpush1.msra.mxu0 %v545
    %694 = vmatprep.subr.mxu0 0.0
    %695 = vmatpush1.msra.mxu0 %v544
    %696 = vmatprep.subr.mxu0 0.0
    %697 = vmatpush1.msra.mxu0 %v543
    %698 = vmatprep.subr.mxu0 0.0
    %699 = vmatpush1.msra.mxu0 %v542
    %700 = vmatprep.subr.mxu0 0.0
    %701 = vmatpush1.msra.mxu0 %v541
    %702 = vmatprep.subr.mxu0 0.0
    %703 = vmatpush2.msra.mxu0 %v572
    %704 = vmatprep.subr.mxu0 0.0
    %705 = vmatpush2.msra.mxu0 %v571
    %706 = vmatprep.subr.mxu0 0.0
    %707 = vmatpush2.msra.mxu0 %v570
    %708 = vmatprep.subr.mxu0 0.0
    %709 = vmatpush2.msra.mxu0 %v569
    %710 = vmatprep.subr.mxu0 0.0
    %711 = vmatpush2.msra.mxu0 %v568
    %712 = vmatprep.subr.mxu0 0.0
    %713 = vmatpush2.msra.mxu0 %v567
    %714 = vmatprep.subr.mxu0 0.0
    %715 = vmatpush2.msra.mxu0 %v566
    %716 = vmatprep.subr.mxu0 0.0
    %717 = vmatpush2.msra.mxu0 %v565
    %718 = vmatprep.subr.mxu0 0.0
    %719 = vmatpush2.msra.mxu0 %v564
    %720 = vmatprep.subr.mxu0 0.0
    %721 = vmatpush2.msra.mxu0 %v563
    %722 = vmatprep.subr.mxu0 0.0
    %723 = vmatpush2.msra.mxu0 %v562
    %724 = vmatprep.subr.mxu0 0.0
    %725 = vmatpush2.msra.mxu0 %v561
    %726 = vmatprep.subr.mxu0 0.0
    %727 = vmatpush2.msra.mxu0 %v560
    %728 = vmatprep.subr.mxu0 0.0
    %729 = vmatpush2.msra.mxu0 %v559
    %730 = vmatprep.subr.mxu0 0.0
    %731 = vmatpush2.msra.mxu0 %v558
    %732 = vmatprep.subr.mxu0 0.0
    %733 = vmatpush2.msra.mxu0 %v557
    %734 = vmatprep.mubr.f32.mxu0 0.0
    %735 = vmatmul.mubr.f32.gmra.mxu0 %v663
    %v736 = vpop.f32.mrf.mxu0
    %v737 = vadd.f32 %v668, %v736
    %v738 = vpop.f32.mrf.mxu0
    %739 = vdwg.mxu0
    %v740 = vxor.u32 %v737, 2147483648
    %v741 = vmul.f32 %v740, 1.442695
    %v742 = vpow.pop %v741
    %v743 = vadd.f32 %v742, 1.0
    %v744 = vrcp.pop %v743
    %v745 = vmul.f32 1.0, %v744
    %v746 = vmul.f32 %v745, %v523
    %v747 = vadd.f32 %v746, %v524
    %748 = vrot.lane.b32.xlu0 %v747, 96
    %v749 = vpop.permute.xlu0 %748
    %750 = vrot.lane.b32.xlu0 %v747, 64
    %v751 = vpop.permute.xlu0 %750
    %752 = vrot.lane.b32.xlu0 %v747, 32
    %v753 = vpop.permute.xlu0 %752
    %v754 = vmul.f32 %v749, 0.0
    %v755 = vmul.f32 %v747, %v751
    %v756 = vadd.f32 %v754, %v755
    %v757 = vtanh.pop %v756
    %v758 = vmul.f32 %v753, %v757
    %759 = vmatprep.subr.mxu0 0.0
    %760 = vmatpush1.msra.mxu0 %v540
    %761 = vmatprep.subr.mxu0 0.0
    %762 = vmatpush1.msra.mxu0 %v539
    %763 = vmatprep.subr.mxu0 0.0
    %764 = vmatpush1.msra.mxu0 %v538
    %765 = vmatprep.subr.mxu0 0.0
    %766 = vmatpush1.msra.mxu0 %v537
    %767 = vmatprep.subr.mxu0 0.0
    %768 = vmatpush1.msra.mxu0 %v536
    %769 = vmatprep.subr.mxu0 0.0
    %770 = vmatpush1.msra.mxu0 %v535
    %771 = vmatprep.subr.mxu0 0.0
    %772 = vmatpush1.msra.mxu0 %v534
    %773 = vmatprep.subr.mxu0 0.0
    %774 = vmatpush1.msra.mxu0 %v533
    %775 = vmatprep.subr.mxu0 0.0
    %776 = vmatpush1.msra.mxu0 %v532
    %777 = vmatprep.subr.mxu0 0.0
    %778 = vmatpush1.msra.mxu0 %v531
    %779 = vmatprep.subr.mxu0 0.0
    %780 = vmatpush1.msra.mxu0 %v530
    %781 = vmatprep.subr.mxu0 0.0
    %782 = vmatpush1.msra.mxu0 %v529
    %783 = vmatprep.subr.mxu0 0.0
    %784 = vmatpush1.msra.mxu0 %v528
    %785 = vmatprep.subr.mxu0 0.0
    %786 = vmatpush1.msra.mxu0 %v527
    %787 = vmatprep.subr.mxu0 0.0
    %788 = vmatpush1.msra.mxu0 %v526
    %789 = vmatprep.subr.mxu0 0.0
    %790 = vmatpush1.msra.mxu0 %v525
    %791 = vmatprep.subr.mxu0 0.0
    %792 = vmatpush2.msra.mxu0 0.0
    %793 = vmatprep.subr.mxu0 0.0
    %794 = vmatpush2.msra.mxu0 0.0
    %795 = vmatprep.subr.mxu0 0.0
    %796 = vmatpush2.msra.mxu0 0.0
    %797 = vmatprep.subr.mxu0 0.0
    %798 = vmatpush2.msra.mxu0 0.0
    %799 = vmatprep.subr.mxu0 0.0
    %800 = vmatpush2.msra.mxu0 0.0
    %801 = vmatprep.subr.mxu0 0.0
    %802 = vmatpush2.msra.mxu0 0.0
    %803 = vmatprep.subr.mxu0 0.0
    %804 = vmatpush2.msra.mxu0 0.0
    %805 = vmatprep.subr.mxu0 0.0
    %806 = vmatpush2.msra.mxu0 0.0
    %807 = vmatprep.subr.mxu0 0.0
    %808 = vmatpush2.msra.mxu0 0.0
    %809 = vmatprep.subr.mxu0 0.0
    %810 = vmatpush2.msra.mxu0 0.0
    %811 = vmatprep.subr.mxu0 0.0
    %812 = vmatpush2.msra.mxu0 0.0
    %813 = vmatprep.subr.mxu0 0.0
    %814 = vmatpush2.msra.mxu0 0.0
    %815 = vmatprep.subr.mxu0 0.0
    %816 = vmatpush2.msra.mxu0 0.0
    %817 = vmatprep.subr.mxu0 0.0
    %818 = vmatpush2.msra.mxu0 0.0
    %819 = vmatprep.subr.mxu0 0.0
    %820 = vmatpush2.msra.mxu0 0.0
    %821 = vmatprep.subr.mxu0 0.0
    %822 = vmatpush2.msra.mxu0 0.0
    %823 = vmatprep.mubr.f32.mxu0 0.0
    %824 = vmatmul.mubr.f32.gmra.mxu0 %v663
    %v825 = vpop.f32.mrf.mxu0
    %v826 = vadd.f32 0.0, %v825
    %v827 = vpop.f32.mrf.mxu0
    %828 = vdwg.mxu0
    %v829 = vadd.f32 %v487, %v826
    %v830 = vxor.u32 %v829, 2147483648
    %v831 = vmul.f32 %v830, 1.442695
    %v832 = vpow.pop %v831
    %v833 = vadd.f32 %v832, 1.0
    %v834 = vrcp.pop %v833
    %v835 = vmul.f32 1.0, %v834
    %v836 = vmul.f32 %v835, %v523
    %v837 = vadd.f32 %v836, %v524
    %838 = vrot.lane.b32.xlu0 %v837, 96
    %v839 = vpop.permute.xlu0 %838
    %840 = vrot.lane.b32.xlu0 %v837, 64
    %v841 = vpop.permute.xlu0 %840
    %842 = vrot.lane.b32.xlu0 %v837, 32
    %v843 = vpop.permute.xlu0 %842
    %v844 = vmul.f32 %v839, %v661
    %v845 = vmul.f32 %v837, %v841
    %v846 = vadd.f32 %v844, %v845
    %v847 = vtanh.pop %v846
    %v848 = vmul.f32 %v843, %v847
    %849 = vmatprep.subr.mxu0 0.0
    %850 = vmatpush1.msra.mxu0 %v556
    %851 = vmatprep.subr.mxu0 0.0
    %852 = vmatpush1.msra.mxu0 %v555
    %853 = vmatprep.subr.mxu0 0.0
    %854 = vmatpush1.msra.mxu0 %v554
    %855 = vmatprep.subr.mxu0 0.0
    %856 = vmatpush1.msra.mxu0 %v553
    %857 = vmatprep.subr.mxu0 0.0
    %858 = vmatpush1.msra.mxu0 %v552
    %859 = vmatprep.subr.mxu0 0.0
    %860 = vmatpush1.msra.mxu0 %v551
    %861 = vmatprep.subr.mxu0 0.0
    %862 = vmatpush1.msra.mxu0 %v550
    %863 = vmatprep.subr.mxu0 0.0
    %864 = vmatpush1.msra.mxu0 %v549
    %865 = vmatprep.subr.mxu0 0.0
    %866 = vmatpush1.msra.mxu0 %v548
    %867 = vmatprep.subr.mxu0 0.0
    %868 = vmatpush1.msra.mxu0 %v547
    %869 = vmatprep.subr.mxu0 0.0
    %870 = vmatpush1.msra.mxu0 %v546
    %871 = vmatprep.subr.mxu0 0.0
    %872 = vmatpush1.msra.mxu0 %v545
    %873 = vmatprep.subr.mxu0 0.0
    %874 = vmatpush1.msra.mxu0 %v544
    %875 = vmatprep.subr.mxu0 0.0
    %876 = vmatpush1.msra.mxu0 %v543
    %877 = vmatprep.subr.mxu0 0.0
    %878 = vmatpush1.msra.mxu0 %v542
    %879 = vmatprep.subr.mxu0 0.0
    %880 = vmatpush1.msra.mxu0 %v541
    %881 = vmatprep.subr.mxu0 0.0
    %882 = vmatpush2.msra.mxu0 %v572
    %883 = vmatprep.subr.mxu0 0.0
    %884 = vmatpush2.msra.mxu0 %v571
    %885 = vmatprep.subr.mxu0 0.0
    %886 = vmatpush2.msra.mxu0 %v570
    %887 = vmatprep.subr.mxu0 0.0
    %888 = vmatpush2.msra.mxu0 %v569
    %889 = vmatprep.subr.mxu0 0.0
    %890 = vmatpush2.msra.mxu0 %v568
    %891 = vmatprep.subr.mxu0 0.0
    %892 = vmatpush2.msra.mxu0 %v567
    %893 = vmatprep.subr.mxu0 0.0
    %894 = vmatpush2.msra.mxu0 %v566
    %895 = vmatprep.subr.mxu0 0.0
    %896 = vmatpush2.msra.mxu0 %v565
    %897 = vmatprep.subr.mxu0 0.0
    %898 = vmatpush2.msra.mxu0 %v564
    %899 = vmatprep.subr.mxu0 0.0
    %900 = vmatpush2.msra.mxu0 %v563
    %901 = vmatprep.subr.mxu0 0.0
    %902 = vmatpush2.msra.mxu0 %v562
    %903 = vmatprep.subr.mxu0 0.0
    %904 = vmatpush2.msra.mxu0 %v561
    %905 = vmatprep.subr.mxu0 0.0
    %906 = vmatpush2.msra.mxu0 %v560
    %907 = vmatprep.subr.mxu0 0.0
    %908 = vmatpush2.msra.mxu0 %v559
    %909 = vmatprep.subr.mxu0 0.0
    %910 = vmatpush2.msra.mxu0 %v558
    %911 = vmatprep.subr.mxu0 0.0
    %912 = vmatpush2.msra.mxu0 %v557
    %913 = vmatprep.mubr.f32.mxu0 %v758
    %914 = vmatmul.mubr.f32.gmra.mxu0 %v848
    %v915 = vpop.f32.mrf.mxu0
    %v916 = vadd.f32 %v668, %v915
    %v917 = vpop.f32.mrf.mxu0
    %918 = vdwg.mxu0
    %v919 = vxor.u32 %v916, 2147483648
    %v920 = vmul.f32 %v919, 1.442695
    %v921 = vpow.pop %v920
    %v922 = vadd.f32 %v921, 1.0
    %v923 = vrcp.pop %v922
    %v924 = vmul.f32 1.0, %v923
    %v925 = vmul.f32 %v924, %v523
    %v926 = vadd.f32 %v925, %v524
    %927 = vrot.lane.b32.xlu0 %v926, 96
    %v928 = vpop.permute.xlu0 %927
    %929 = vrot.lane.b32.xlu0 %v926, 64
    %v930 = vpop.permute.xlu0 %929
    %931 = vrot.lane.b32.xlu0 %v926, 32
    %v932 = vpop.permute.xlu0 %931
    %v933 = vmul.f32 %v928, %v756
    %v934 = vmul.f32 %v926, %v930
    %v935 = vadd.f32 %v933, %v934
    %v936 = vtanh.pop %v935
    %v937 = vmul.f32 %v932, %v936
    %938 = vmatprep.subr.mxu0 0.0
    %939 = vmatpush1.msra.mxu0 %v540
    %940 = vmatprep.subr.mxu0 0.0
    %941 = vmatpush1.msra.mxu0 %v539
    %942 = vmatprep.subr.mxu0 0.0
    %943 = vmatpush1.msra.mxu0 %v538
    %944 = vmatprep.subr.mxu0 0.0
    %945 = vmatpush1.msra.mxu0 %v537
    %946 = vmatprep.subr.mxu0 0.0
    %947 = vmatpush1.msra.mxu0 %v536
    %948 = vmatprep.subr.mxu0 0.0
    %949 = vmatpush1.msra.mxu0 %v535
    %950 = vmatprep.subr.mxu0 0.0
    %951 = vmatpush1.msra.mxu0 %v534
    %952 = vmatprep.subr.mxu0 0.0
    %953 = vmatpush1.msra.mxu0 %v533
    %954 = vmatprep.subr.mxu0 0.0
    %955 = vmatpush1.msra.mxu0 %v532
    %956 = vmatprep.subr.mxu0 0.0
    %957 = vmatpush1.msra.mxu0 %v531
    %958 = vmatprep.subr.mxu0 0.0
    %959 = vmatpush1.msra.mxu0 %v530
    %960 = vmatprep.subr.mxu0 0.0
    %961 = vmatpush1.msra.mxu0 %v529
    %962 = vmatprep.subr.mxu0 0.0
    %963 = vmatpush1.msra.mxu0 %v528
    %964 = vmatprep.subr.mxu0 0.0
    %965 = vmatpush1.msra.mxu0 %v527
    %966 = vmatprep.subr.mxu0 0.0
    %967 = vmatpush1.msra.mxu0 %v526
    %968 = vmatprep.subr.mxu0 0.0
    %969 = vmatpush1.msra.mxu0 %v525
    %970 = vmatprep.subr.mxu0 0.0
    %971 = vmatpush2.msra.mxu0 0.0
    %972 = vmatprep.subr.mxu0 0.0
    %973 = vmatpush2.msra.mxu0 0.0
    %974 = vmatprep.subr.mxu0 0.0
    %975 = vmatpush2.msra.mxu0 0.0
    %976 = vmatprep.subr.mxu0 0.0
    %977 = vmatpush2.msra.mxu0 0.0
    %978 = vmatprep.subr.mxu0 0.0
    %979 = vmatpush2.msra.mxu0 0.0
    %980 = vmatprep.subr.mxu0 0.0
    %981 = vmatpush2.msra.mxu0 0.0
    %982 = vmatprep.subr.mxu0 0.0
    %983 = vmatpush2.msra.mxu0 0.0
    %984 = vmatprep.subr.mxu0 0.0
    %985 = vmatpush2.msra.mxu0 0.0
    %986 = vmatprep.subr.mxu0 0.0
    %987 = vmatpush2.msra.mxu0 0.0
    %988 = vmatprep.subr.mxu0 0.0
    %989 = vmatpush2.msra.mxu0 0.0
    %990 = vmatprep.subr.mxu0 0.0
    %991 = vmatpush2.msra.mxu0 0.0
    %992 = vmatprep.subr.mxu0 0.0
    %993 = vmatpush2.msra.mxu0 0.0
    %994 = vmatprep.subr.mxu0 0.0
    %995 = vmatpush2.msra.mxu0 0.0
    %996 = vmatprep.subr.mxu0 0.0
    %997 = vmatpush2.msra.mxu0 0.0
    %998 = vmatprep.subr.mxu0 0.0
    %999 = vmatpush2.msra.mxu0 0.0
    %1000 = vmatprep.subr.mxu0 0.0
    %1001 = vmatpush2.msra.mxu0 0.0
    %1002 = vmatprep.mubr.f32.mxu0 0.0
    %1003 = vmatmul.mubr.f32.gmra.mxu0 %v848
    %v1004 = vpop.f32.mrf.mxu0
    %v1005 = vadd.f32 0.0, %v1004
    %v1006 = vpop.f32.mrf.mxu0
    %1007 = vdwg.mxu0
    %v1008 = vadd.f32 %v492, %v1005
    %v1009 = vxor.u32 %v1008, 2147483648
    %v1010 = vmul.f32 %v1009, 1.442695
    %v1011 = vpow.pop %v1010
    %v1012 = vadd.f32 %v1011, 1.0
    %v1013 = vrcp.pop %v1012
    %v1014 = vmul.f32 1.0, %v1013
    %v1015 = vmul.f32 %v1014, %v523
    %v1016 = vadd.f32 %v1015, %v524
    %1017 = vrot.lane.b32.xlu0 %v1016, 96
    %v1018 = vpop.permute.xlu0 %1017
    %1019 = vrot.lane.b32.xlu0 %v1016, 64
    %v1020 = vpop.permute.xlu0 %1019
    %1021 = vrot.lane.b32.xlu0 %v1016, 32
    %v1022 = vpop.permute.xlu0 %1021
    %v1023 = vmul.f32 %v1018, %v846
    %v1024 = vmul.f32 %v1016, %v1020
    %v1025 = vadd.f32 %v1023, %v1024
    %v1026 = vtanh.pop %v1025
    %v1027 = vmul.f32 %v1022, %v1026
    %1028 = vmatprep.subr.mxu0 0.0
    %1029 = vmatpush1.msra.mxu0 %v556
    %1030 = vmatprep.subr.mxu0 0.0
    %1031 = vmatpush1.msra.mxu0 %v555
    %1032 = vmatprep.subr.mxu0 0.0
    %1033 = vmatpush1.msra.mxu0 %v554
    %1034 = vmatprep.subr.mxu0 0.0
    %1035 = vmatpush1.msra.mxu0 %v553
    %1036 = vmatprep.subr.mxu0 0.0
    %1037 = vmatpush1.msra.mxu0 %v552
    %1038 = vmatprep.subr.mxu0 0.0
    %1039 = vmatpush1.msra.mxu0 %v551
    %1040 = vmatprep.subr.mxu0 0.0
    %1041 = vmatpush1.msra.mxu0 %v550
    %1042 = vmatprep.subr.mxu0 0.0
    %1043 = vmatpush1.msra.mxu0 %v549
    %1044 = vmatprep.subr.mxu0 0.0
    %1045 = vmatpush1.msra.mxu0 %v548
    %1046 = vmatprep.subr.mxu0 0.0
    %1047 = vmatpush1.msra.mxu0 %v547
    %1048 = vmatprep.subr.mxu0 0.0
    %1049 = vmatpush1.msra.mxu0 %v546
    %1050 = vmatprep.subr.mxu0 0.0
    %1051 = vmatpush1.msra.mxu0 %v545
    %1052 = vmatprep.subr.mxu0 0.0
    %1053 = vmatpush1.msra.mxu0 %v544
    %1054 = vmatprep.subr.mxu0 0.0
    %1055 = vmatpush1.msra.mxu0 %v543
    %1056 = vmatprep.subr.mxu0 0.0
    %1057 = vmatpush1.msra.mxu0 %v542
    %1058 = vmatprep.subr.mxu0 0.0
    %1059 = vmatpush1.msra.mxu0 %v541
    %1060 = vmatprep.subr.mxu0 0.0
    %1061 = vmatpush2.msra.mxu0 %v572
    %1062 = vmatprep.subr.mxu0 0.0
    %1063 = vmatpush2.msra.mxu0 %v571
    %1064 = vmatprep.subr.mxu0 0.0
    %1065 = vmatpush2.msra.mxu0 %v570
    %1066 = vmatprep.subr.mxu0 0.0
    %1067 = vmatpush2.msra.mxu0 %v569
    %1068 = vmatprep.subr.mxu0 0.0
    %1069 = vmatpush2.msra.mxu0 %v568
    %1070 = vmatprep.subr.mxu0 0.0
    %1071 = vmatpush2.msra.mxu0 %v567
    %1072 = vmatprep.subr.mxu0 0.0
    %1073 = vmatpush2.msra.mxu0 %v566
    %1074 = vmatprep.subr.mxu0 0.0
    %1075 = vmatpush2.msra.mxu0 %v565
    %1076 = vmatprep.subr.mxu0 0.0
    %1077 = vmatpush2.msra.mxu0 %v564
    %1078 = vmatprep.subr.mxu0 0.0
    %1079 = vmatpush2.msra.mxu0 %v563
    %1080 = vmatprep.subr.mxu0 0.0
    %1081 = vmatpush2.msra.mxu0 %v562
    %1082 = vmatprep.subr.mxu0 0.0
    %1083 = vmatpush2.msra.mxu0 %v561
    %1084 = vmatprep.subr.mxu0 0.0
    %1085 = vmatpush2.msra.mxu0 %v560
    %1086 = vmatprep.subr.mxu0 0.0
    %1087 = vmatpush2.msra.mxu0 %v559
    %1088 = vmatprep.subr.mxu0 0.0
    %1089 = vmatpush2.msra.mxu0 %v558
    %1090 = vmatprep.subr.mxu0 0.0
    %1091 = vmatpush2.msra.mxu0 %v557
    %1092 = vmatprep.mubr.f32.mxu0 %v937
    %1093 = vmatmul.mubr.f32.gmra.mxu0 %v1027
    %v1094 = vpop.f32.mrf.mxu0
    %v1095 = vadd.f32 %v668, %v1094
    %v1096 = vpop.f32.mrf.mxu0
    %1097 = vdwg.mxu0
    %v1098 = vxor.u32 %v1095, 2147483648
    %v1099 = vmul.f32 %v1098, 1.442695
    %v1100 = vpow.pop %v1099
    %v1101 = vadd.f32 %v1100, 1.0
    %v1102 = vrcp.pop %v1101
    %v1103 = vmul.f32 1.0, %v1102
    %v1104 = vmul.f32 %v1103, %v523
    %v1105 = vadd.f32 %v1104, %v524
    %1106 = vrot.lane.b32.xlu0 %v1105, 96
    %v1107 = vpop.permute.xlu0 %1106
    %1108 = vrot.lane.b32.xlu0 %v1105, 64
    %v1109 = vpop.permute.xlu0 %1108
    %1110 = vrot.lane.b32.xlu0 %v1105, 32
    %v1111 = vpop.permute.xlu0 %1110
    %v1112 = vmul.f32 %v1107, %v935
    %v1113 = vmul.f32 %v1105, %v1109
    %v1114 = vadd.f32 %v1112, %v1113
    %v1115 = vtanh.pop %v1114
    %v1116 = vmul.f32 %v1111, %v1115
    %1117 = vmatprep.subr.mxu0 0.0
    %1118 = vmatpush1.msra.mxu0 %v540
    %1119 = vmatprep.subr.mxu0 0.0
    %1120 = vmatpush1.msra.mxu0 %v539
    %1121 = vmatprep.subr.mxu0 0.0
    %1122 = vmatpush1.msra.mxu0 %v538
    %1123 = vmatprep.subr.mxu0 0.0
    %1124 = vmatpush1.msra.mxu0 %v537
    %1125 = vmatprep.subr.mxu0 0.0
    %1126 = vmatpush1.msra.mxu0 %v536
    %1127 = vmatprep.subr.mxu0 0.0
    %1128 = vmatpush1.msra.mxu0 %v535
    %1129 = vmatprep.subr.mxu0 0.0
    %1130 = vmatpush1.msra.mxu0 %v534
    %1131 = vmatprep.subr.mxu0 0.0
    %1132 = vmatpush1.msra.mxu0 %v533
    %1133 = vmatprep.subr.mxu0 0.0
    %1134 = vmatpush1.msra.mxu0 %v532
    %1135 = vmatprep.subr.mxu0 0.0
    %1136 = vmatpush1.msra.mxu0 %v531
    %1137 = vmatprep.subr.mxu0 0.0
    %1138 = vmatpush1.msra.mxu0 %v530
    %1139 = vmatprep.subr.mxu0 0.0
    %1140 = vmatpush1.msra.mxu0 %v529
    %1141 = vmatprep.subr.mxu0 0.0
    %1142 = vmatpush1.msra.mxu0 %v528
    %1143 = vmatprep.subr.mxu0 0.0
    %1144 = vmatpush1.msra.mxu0 %v527
    %1145 = vmatprep.subr.mxu0 0.0
    %1146 = vmatpush1.msra.mxu0 %v526
    %1147 = vmatprep.subr.mxu0 0.0
    %1148 = vmatpush1.msra.mxu0 %v525
    %1149 = vmatprep.subr.mxu0 0.0
    %1150 = vmatpush2.msra.mxu0 0.0
    %1151 = vmatprep.subr.mxu0 0.0
    %1152 = vmatpush2.msra.mxu0 0.0
    %1153 = vmatprep.subr.mxu0 0.0
    %1154 = vmatpush2.msra.mxu0 0.0
    %1155 = vmatprep.subr.mxu0 0.0
    %1156 = vmatpush2.msra.mxu0 0.0
    %1157 = vmatprep.subr.mxu0 0.0
    %1158 = vmatpush2.msra.mxu0 0.0
    %1159 = vmatprep.subr.mxu0 0.0
    %1160 = vmatpush2.msra.mxu0 0.0
    %1161 = vmatprep.subr.mxu0 0.0
    %1162 = vmatpush2.msra.mxu0 0.0
    %1163 = vmatprep.subr.mxu0 0.0
    %1164 = vmatpush2.msra.mxu0 0.0
    %1165 = vmatprep.subr.mxu0 0.0
    %1166 = vmatpush2.msra.mxu0 0.0
    %1167 = vmatprep.subr.mxu0 0.0
    %1168 = vmatpush2.msra.mxu0 0.0
    %1169 = vmatprep.subr.mxu0 0.0
    %1170 = vmatpush2.msra.mxu0 0.0
    %1171 = vmatprep.subr.mxu0 0.0
    %1172 = vmatpush2.msra.mxu0 0.0
    %1173 = vmatprep.subr.mxu0 0.0
    %1174 = vmatpush2.msra.mxu0 0.0
    %1175 = vmatprep.subr.mxu0 0.0
    %1176 = vmatpush2.msra.mxu0 0.0
    %1177 = vmatprep.subr.mxu0 0.0
    %1178 = vmatpush2.msra.mxu0 0.0
    %1179 = vmatprep.subr.mxu0 0.0
    %1180 = vmatpush2.msra.mxu0 0.0
    %1181 = vmatprep.mubr.f32.mxu0 0.0
    %1182 = vmatmul.mubr.f32.gmra.mxu0 %v1027
    %v1183 = vpop.f32.mrf.mxu0
    %v1184 = vadd.f32 0.0, %v1183
    %v1185 = vpop.f32.mrf.mxu0
    %1186 = vdwg.mxu0
    %v1187 = vadd.f32 %v497, %v1184
    %v1188 = vxor.u32 %v1187, 2147483648
    %v1189 = vmul.f32 %v1188, 1.442695
    %v1190 = vpow.pop %v1189
    %v1191 = vadd.f32 %v1190, 1.0
    %v1192 = vrcp.pop %v1191
    %v1193 = vmul.f32 1.0, %v1192
    %v1194 = vmul.f32 %v1193, %v523
    %v1195 = vadd.f32 %v1194, %v524
    %1196 = vrot.lane.b32.xlu0 %v1195, 96
    %v1197 = vpop.permute.xlu0 %1196
    %1198 = vrot.lane.b32.xlu0 %v1195, 64
    %v1199 = vpop.permute.xlu0 %1198
    %1200 = vrot.lane.b32.xlu0 %v1195, 32
    %v1201 = vpop.permute.xlu0 %1200
    %v1202 = vmul.f32 %v1197, %v1025
    %v1203 = vmul.f32 %v1195, %v1199
    %v1204 = vadd.f32 %v1202, %v1203
    %v1205 = vtanh.pop %v1204
    %v1206 = vmul.f32 %v1201, %v1205
    %1207 = vmatprep.subr.mxu0 0.0
    %1208 = vmatpush1.msra.mxu0 %v556
    %1209 = vmatprep.subr.mxu0 0.0
    %1210 = vmatpush1.msra.mxu0 %v555
    %1211 = vmatprep.subr.mxu0 0.0
    %1212 = vmatpush1.msra.mxu0 %v554
    %1213 = vmatprep.subr.mxu0 0.0
    %1214 = vmatpush1.msra.mxu0 %v553
    %1215 = vmatprep.subr.mxu0 0.0
    %1216 = vmatpush1.msra.mxu0 %v552
    %1217 = vmatprep.subr.mxu0 0.0
    %1218 = vmatpush1.msra.mxu0 %v551
    %1219 = vmatprep.subr.mxu0 0.0
    %1220 = vmatpush1.msra.mxu0 %v550
    %1221 = vmatprep.subr.mxu0 0.0
    %1222 = vmatpush1.msra.mxu0 %v549
    %1223 = vmatprep.subr.mxu0 0.0
    %1224 = vmatpush1.msra.mxu0 %v548
    %1225 = vmatprep.subr.mxu0 0.0
    %1226 = vmatpush1.msra.mxu0 %v547
    %1227 = vmatprep.subr.mxu0 0.0
    %1228 = vmatpush1.msra.mxu0 %v546
    %1229 = vmatprep.subr.mxu0 0.0
    %1230 = vmatpush1.msra.mxu0 %v545
    %1231 = vmatprep.subr.mxu0 0.0
    %1232 = vmatpush1.msra.mxu0 %v544
    %1233 = vmatprep.subr.mxu0 0.0
    %1234 = vmatpush1.msra.mxu0 %v543
    %1235 = vmatprep.subr.mxu0 0.0
    %1236 = vmatpush1.msra.mxu0 %v542
    %1237 = vmatprep.subr.mxu0 0.0
    %1238 = vmatpush1.msra.mxu0 %v541
    %1239 = vmatprep.subr.mxu0 0.0
    %1240 = vmatpush2.msra.mxu0 %v572
    %1241 = vmatprep.subr.mxu0 0.0
    %1242 = vmatpush2.msra.mxu0 %v571
    %1243 = vmatprep.subr.mxu0 0.0
    %1244 = vmatpush2.msra.mxu0 %v570
    %1245 = vmatprep.subr.mxu0 0.0
    %1246 = vmatpush2.msra.mxu0 %v569
    %1247 = vmatprep.subr.mxu0 0.0
    %1248 = vmatpush2.msra.mxu0 %v568
    %1249 = vmatprep.subr.mxu0 0.0
    %1250 = vmatpush2.msra.mxu0 %v567
    %1251 = vmatprep.subr.mxu0 0.0
    %1252 = vmatpush2.msra.mxu0 %v566
    %1253 = vmatprep.subr.mxu0 0.0
    %1254 = vmatpush2.msra.mxu0 %v565
    %1255 = vmatprep.subr.mxu0 0.0
    %1256 = vmatpush2.msra.mxu0 %v564
    %1257 = vmatprep.subr.mxu0 0.0
    %1258 = vmatpush2.msra.mxu0 %v563
    %1259 = vmatprep.subr.mxu0 0.0
    %1260 = vmatpush2.msra.mxu0 %v562
    %1261 = vmatprep.subr.mxu0 0.0
    %1262 = vmatpush2.msra.mxu0 %v561
    %1263 = vmatprep.subr.mxu0 0.0
    %1264 = vmatpush2.msra.mxu0 %v560
    %1265 = vmatprep.subr.mxu0 0.0
    %1266 = vmatpush2.msra.mxu0 %v559
    %1267 = vmatprep.subr.mxu0 0.0
    %1268 = vmatpush2.msra.mxu0 %v558
    %1269 = vmatprep.subr.mxu0 0.0
    %1270 = vmatpush2.msra.mxu0 %v557
    %1271 = vmatprep.mubr.f32.mxu0 %v1116
    %1272 = vmatmul.mubr.f32.gmra.mxu0 %v1206
    %v1273 = vpop.f32.mrf.mxu0
    %v1274 = vadd.f32 %v668, %v1273
    %v1275 = vpop.f32.mrf.mxu0
    %1276 = vdwg.mxu0
    %v1277 = vxor.u32 %v1274, 2147483648
    %v1278 = vmul.f32 %v1277, 1.442695
    %v1279 = vpow.pop %v1278
    %v1280 = vadd.f32 %v1279, 1.0
    %v1281 = vrcp.pop %v1280
    %v1282 = vmul.f32 1.0, %v1281
    %v1283 = vmul.f32 %v1282, %v523
    %v1284 = vadd.f32 %v1283, %v524
    %1285 = vrot.lane.b32.xlu0 %v1284, 96
    %v1286 = vpop.permute.xlu0 %1285
    %1287 = vrot.lane.b32.xlu0 %v1284, 64
    %v1288 = vpop.permute.xlu0 %1287
    %1289 = vrot.lane.b32.xlu0 %v1284, 32
    %v1290 = vpop.permute.xlu0 %1289
    %v1291 = vmul.f32 %v1286, %v1114
    %v1292 = vmul.f32 %v1284, %v1288
    %v1293 = vadd.f32 %v1291, %v1292
    %v1294 = vtanh.pop %v1293
    %v1295 = vmul.f32 %v1290, %v1294
    %1296 = vmatprep.subr.mxu0 0.0
    %1297 = vmatpush1.msra.mxu0 %v540
    %1298 = vmatprep.subr.mxu0 0.0
    %1299 = vmatpush1.msra.mxu0 %v539
    %1300 = vmatprep.subr.mxu0 0.0
    %1301 = vmatpush1.msra.mxu0 %v538
    %1302 = vmatprep.subr.mxu0 0.0
    %1303 = vmatpush1.msra.mxu0 %v537
    %1304 = vmatprep.subr.mxu0 0.0
    %1305 = vmatpush1.msra.mxu0 %v536
    %1306 = vmatprep.subr.mxu0 0.0
    %1307 = vmatpush1.msra.mxu0 %v535
    %1308 = vmatprep.subr.mxu0 0.0
    %1309 = vmatpush1.msra.mxu0 %v534
    %1310 = vmatprep.subr.mxu0 0.0
    %1311 = vmatpush1.msra.mxu0 %v533
    %1312 = vmatprep.subr.mxu0 0.0
    %1313 = vmatpush1.msra.mxu0 %v532
    %1314 = vmatprep.subr.mxu0 0.0
    %1315 = vmatpush1.msra.mxu0 %v531
    %1316 = vmatprep.subr.mxu0 0.0
    %1317 = vmatpush1.msra.mxu0 %v530
    %1318 = vmatprep.subr.mxu0 0.0
    %1319 = vmatpush1.msra.mxu0 %v529
    %1320 = vmatprep.subr.mxu0 0.0
    %1321 = vmatpush1.msra.mxu0 %v528
    %1322 = vmatprep.subr.mxu0 0.0
    %1323 = vmatpush1.msra.mxu0 %v527
    %1324 = vmatprep.subr.mxu0 0.0
    %1325 = vmatpush1.msra.mxu0 %v526
    %1326 = vmatprep.subr.mxu0 0.0
    %1327 = vmatpush1.msra.mxu0 %v525
    %1328 = vmatprep.subr.mxu0 0.0
    %1329 = vmatpush2.msra.mxu0 0.0
    %1330 = vmatprep.subr.mxu0 0.0
    %1331 = vmatpush2.msra.mxu0 0.0
    %1332 = vmatprep.subr.mxu0 0.0
    %1333 = vmatpush2.msra.mxu0 0.0
    %1334 = vmatprep.subr.mxu0 0.0
    %1335 = vmatpush2.msra.mxu0 0.0
    %1336 = vmatprep.subr.mxu0 0.0
    %1337 = vmatpush2.msra.mxu0 0.0
    %1338 = vmatprep.subr.mxu0 0.0
    %1339 = vmatpush2.msra.mxu0 0.0
    %1340 = vmatprep.subr.mxu0 0.0
    %1341 = vmatpush2.msra.mxu0 0.0
    %1342 = vmatprep.subr.mxu0 0.0
    %1343 = vmatpush2.msra.mxu0 0.0
    %1344 = vmatprep.subr.mxu0 0.0
    %1345 = vmatpush2.msra.mxu0 0.0
    %1346 = vmatprep.subr.mxu0 0.0
    %1347 = vmatpush2.msra.mxu0 0.0
    %1348 = vmatprep.subr.mxu0 0.0
    %1349 = vmatpush2.msra.mxu0 0.0
    %1350 = vmatprep.subr.mxu0 0.0
    %1351 = vmatpush2.msra.mxu0 0.0
    %1352 = vmatprep.subr.mxu0 0.0
    %1353 = vmatpush2.msra.mxu0 0.0
    %1354 = vmatprep.subr.mxu0 0.0
    %1355 = vmatpush2.msra.mxu0 0.0
    %1356 = vmatprep.subr.mxu0 0.0
    %1357 = vmatpush2.msra.mxu0 0.0
    %1358 = vmatprep.subr.mxu0 0.0
    %1359 = vmatpush2.msra.mxu0 0.0
    %1360 = vmatprep.mubr.f32.mxu0 0.0
    %1361 = vmatmul.mubr.f32.gmra.mxu0 %v1206
    %v1362 = vpop.f32.mrf.mxu0
    %v1363 = vadd.f32 0.0, %v1362
    %v1364 = vpop.f32.mrf.mxu0
    %1365 = vdwg.mxu0
    %v1366 = vadd.f32 %v502, %v1363
    %v1367 = vxor.u32 %v1366, 2147483648
    %v1368 = vmul.f32 %v1367, 1.442695
    %v1369 = vpow.pop %v1368
    %v1370 = vadd.f32 %v1369, 1.0
    %v1371 = vrcp.pop %v1370
    %v1372 = vmul.f32 1.0, %v1371
    %v1373 = vmul.f32 %v1372, %v523
    %v1374 = vadd.f32 %v1373, %v524
    %1375 = vrot.lane.b32.xlu0 %v1374, 96
    %v1376 = vpop.permute.xlu0 %1375
    %1377 = vrot.lane.b32.xlu0 %v1374, 64
    %v1378 = vpop.permute.xlu0 %1377
    %1379 = vrot.lane.b32.xlu0 %v1374, 32
    %v1380 = vpop.permute.xlu0 %1379
    %v1381 = vmul.f32 %v1376, %v1204
    %v1382 = vmul.f32 %v1374, %v1378
    %v1383 = vadd.f32 %v1381, %v1382
    %v1384 = vtanh.pop %v1383
    %v1385 = vmul.f32 %v1380, %v1384
    %1386 = vmatprep.subr.mxu0 0.0
    %1387 = vmatpush1.msra.mxu0 %v556
    %1388 = vmatprep.subr.mxu0 0.0
    %1389 = vmatpush1.msra.mxu0 %v555
    %1390 = vmatprep.subr.mxu0 0.0
    %1391 = vmatpush1.msra.mxu0 %v554
    %1392 = vmatprep.subr.mxu0 0.0
    %1393 = vmatpush1.msra.mxu0 %v553
    %1394 = vmatprep.subr.mxu0 0.0
    %1395 = vmatpush1.msra.mxu0 %v552
    %1396 = vmatprep.subr.mxu0 0.0
    %1397 = vmatpush1.msra.mxu0 %v551
    %1398 = vmatprep.subr.mxu0 0.0
    %1399 = vmatpush1.msra.mxu0 %v550
    %1400 = vmatprep.subr.mxu0 0.0
    %1401 = vmatpush1.msra.mxu0 %v549
    %1402 = vmatprep.subr.mxu0 0.0
    %1403 = vmatpush1.msra.mxu0 %v548
    %1404 = vmatprep.subr.mxu0 0.0
    %1405 = vmatpush1.msra.mxu0 %v547
    %1406 = vmatprep.subr.mxu0 0.0
    %1407 = vmatpush1.msra.mxu0 %v546
    %1408 = vmatprep.subr.mxu0 0.0
    %1409 = vmatpush1.msra.mxu0 %v545
    %1410 = vmatprep.subr.mxu0 0.0
    %1411 = vmatpush1.msra.mxu0 %v544
    %1412 = vmatprep.subr.mxu0 0.0
    %1413 = vmatpush1.msra.mxu0 %v543
    %1414 = vmatprep.subr.mxu0 0.0
    %1415 = vmatpush1.msra.mxu0 %v542
    %1416 = vmatprep.subr.mxu0 0.0
    %1417 = vmatpush1.msra.mxu0 %v541
    %1418 = vmatprep.subr.mxu0 0.0
    %1419 = vmatpush2.msra.mxu0 %v572
    %1420 = vmatprep.subr.mxu0 0.0
    %1421 = vmatpush2.msra.mxu0 %v571
    %1422 = vmatprep.subr.mxu0 0.0
    %1423 = vmatpush2.msra.mxu0 %v570
    %1424 = vmatprep.subr.mxu0 0.0
    %1425 = vmatpush2.msra.mxu0 %v569
    %1426 = vmatprep.subr.mxu0 0.0
    %1427 = vmatpush2.msra.mxu0 %v568
    %1428 = vmatprep.subr.mxu0 0.0
    %1429 = vmatpush2.msra.mxu0 %v567
    %1430 = vmatprep.subr.mxu0 0.0
    %1431 = vmatpush2.msra.mxu0 %v566
    %1432 = vmatprep.subr.mxu0 0.0
    %1433 = vmatpush2.msra.mxu0 %v565
    %1434 = vmatprep.subr.mxu0 0.0
    %1435 = vmatpush2.msra.mxu0 %v564
    %1436 = vmatprep.subr.mxu0 0.0
    %1437 = vmatpush2.msra.mxu0 %v563
    %1438 = vmatprep.subr.mxu0 0.0
    %1439 = vmatpush2.msra.mxu0 %v562
    %1440 = vmatprep.subr.mxu0 0.0
    %1441 = vmatpush2.msra.mxu0 %v561
    %1442 = vmatprep.subr.mxu0 0.0
    %1443 = vmatpush2.msra.mxu0 %v560
    %1444 = vmatprep.subr.mxu0 0.0
    %1445 = vmatpush2.msra.mxu0 %v559
    %1446 = vmatprep.subr.mxu0 0.0
    %1447 = vmatpush2.msra.mxu0 %v558
    %1448 = vmatprep.subr.mxu0 0.0
    %1449 = vmatpush2.msra.mxu0 %v557
    %1450 = vmatprep.mubr.f32.mxu0 %v1295
    %1451 = vmatmul.mubr.f32.gmra.mxu0 %v1385
    %v1452 = vpop.f32.mrf.mxu0
    %v1453 = vadd.f32 %v668, %v1452
    %v1454 = vpop.f32.mrf.mxu0
    %1455 = vdwg.mxu0
    %v1456 = vxor.u32 %v1453, 2147483648
    %v1457 = vmul.f32 %v1456, 1.442695
    %v1458 = vpow.pop %v1457
    %v1459 = vadd.f32 %v1458, 1.0
    %v1460 = vrcp.pop %v1459
    %v1461 = vmul.f32 1.0, %v1460
    %v1462 = vmul.f32 %v1461, %v523
    %v1463 = vadd.f32 %v1462, %v524
    %1464 = vrot.lane.b32.xlu0 %v1463, 96
    %v1465 = vpop.permute.xlu0 %1464
    %1466 = vrot.lane.b32.xlu0 %v1463, 64
    %v1467 = vpop.permute.xlu0 %1466
    %1468 = vrot.lane.b32.xlu0 %v1463, 32
    %v1469 = vpop.permute.xlu0 %1468
    %v1470 = vmul.f32 %v1465, %v1293
    %v1471 = vmul.f32 %v1463, %v1467
    %v1472 = vadd.f32 %v1470, %v1471
    %v1473 = vtanh.pop %v1472
    %v1474 = vmul.f32 %v1469, %v1473
    %1475 = vmatprep.subr.mxu0 0.0
    %1476 = vmatpush1.msra.mxu0 %v540
    %1477 = vmatprep.subr.mxu0 0.0
    %1478 = vmatpush1.msra.mxu0 %v539
    %1479 = vmatprep.subr.mxu0 0.0
    %1480 = vmatpush1.msra.mxu0 %v538
    %1481 = vmatprep.subr.mxu0 0.0
    %1482 = vmatpush1.msra.mxu0 %v537
    %1483 = vmatprep.subr.mxu0 0.0
    %1484 = vmatpush1.msra.mxu0 %v536
    %1485 = vmatprep.subr.mxu0 0.0
    %1486 = vmatpush1.msra.mxu0 %v535
    %1487 = vmatprep.subr.mxu0 0.0
    %1488 = vmatpush1.msra.mxu0 %v534
    %1489 = vmatprep.subr.mxu0 0.0
    %1490 = vmatpush1.msra.mxu0 %v533
    %1491 = vmatprep.subr.mxu0 0.0
    %1492 = vmatpush1.msra.mxu0 %v532
    %1493 = vmatprep.subr.mxu0 0.0
    %1494 = vmatpush1.msra.mxu0 %v531
    %1495 = vmatprep.subr.mxu0 0.0
    %1496 = vmatpush1.msra.mxu0 %v530
    %1497 = vmatprep.subr.mxu0 0.0
    %1498 = vmatpush1.msra.mxu0 %v529
    %1499 = vmatprep.subr.mxu0 0.0
    %1500 = vmatpush1.msra.mxu0 %v528
    %1501 = vmatprep.subr.mxu0 0.0
    %1502 = vmatpush1.msra.mxu0 %v527
    %1503 = vmatprep.subr.mxu0 0.0
    %1504 = vmatpush1.msra.mxu0 %v526
    %1505 = vmatprep.subr.mxu0 0.0
    %1506 = vmatpush1.msra.mxu0 %v525
    %1507 = vmatprep.subr.mxu0 0.0
    %1508 = vmatpush2.msra.mxu0 0.0
    %1509 = vmatprep.subr.mxu0 0.0
    %1510 = vmatpush2.msra.mxu0 0.0
    %1511 = vmatprep.subr.mxu0 0.0
    %1512 = vmatpush2.msra.mxu0 0.0
    %1513 = vmatprep.subr.mxu0 0.0
    %1514 = vmatpush2.msra.mxu0 0.0
    %1515 = vmatprep.subr.mxu0 0.0
    %1516 = vmatpush2.msra.mxu0 0.0
    %1517 = vmatprep.subr.mxu0 0.0
    %1518 = vmatpush2.msra.mxu0 0.0
    %1519 = vmatprep.subr.mxu0 0.0
    %1520 = vmatpush2.msra.mxu0 0.0
    %1521 = vmatprep.subr.mxu0 0.0
    %1522 = vmatpush2.msra.mxu0 0.0
    %1523 = vmatprep.subr.mxu0 0.0
    %1524 = vmatpush2.msra.mxu0 0.0
    %1525 = vmatprep.subr.mxu0 0.0
    %1526 = vmatpush2.msra.mxu0 0.0
    %1527 = vmatprep.subr.mxu0 0.0
    %1528 = vmatpush2.msra.mxu0 0.0
    %1529 = vmatprep.subr.mxu0 0.0
    %1530 = vmatpush2.msra.mxu0 0.0
    %1531 = vmatprep.subr.mxu0 0.0
    %1532 = vmatpush2.msra.mxu0 0.0
    %1533 = vmatprep.subr.mxu0 0.0
    %1534 = vmatpush2.msra.mxu0 0.0
    %1535 = vmatprep.subr.mxu0 0.0
    %1536 = vmatpush2.msra.mxu0 0.0
    %1537 = vmatprep.subr.mxu0 0.0
    %1538 = vmatpush2.msra.mxu0 0.0
    %1539 = vmatprep.mubr.f32.mxu0 0.0
    %1540 = vmatmul.mubr.f32.gmra.mxu0 %v1385
    %v1541 = vpop.f32.mrf.mxu0
    %v1542 = vadd.f32 0.0, %v1541
    %v1543 = vpop.f32.mrf.mxu0
    %1544 = vdwg.mxu0
    %v1545 = vadd.f32 %v507, %v1542
    %v1546 = vxor.u32 %v1545, 2147483648
    %v1547 = vmul.f32 %v1546, 1.442695
    %v1548 = vpow.pop %v1547
    %v1549 = vadd.f32 %v1548, 1.0
    %v1550 = vrcp.pop %v1549
    %v1551 = vmul.f32 1.0, %v1550
    %v1552 = vmul.f32 %v1551, %v523
    %v1553 = vadd.f32 %v1552, %v524
    %1554 = vrot.lane.b32.xlu0 %v1553, 96
    %v1555 = vpop.permute.xlu0 %1554
    %1556 = vrot.lane.b32.xlu0 %v1553, 64
    %v1557 = vpop.permute.xlu0 %1556
    %1558 = vrot.lane.b32.xlu0 %v1553, 32
    %v1559 = vpop.permute.xlu0 %1558
    %v1560 = vmul.f32 %v1555, %v1383
    %v1561 = vmul.f32 %v1553, %v1557
    %v1562 = vadd.f32 %v1560, %v1561
    %v1563 = vtanh.pop %v1562
    %v1564 = vmul.f32 %v1559, %v1563
    %1565 = vmatprep.subr.mxu0 0.0
    %1566 = vmatpush1.msra.mxu0 %v556
    %1567 = vmatprep.subr.mxu0 0.0
    %1568 = vmatpush1.msra.mxu0 %v555
    %1569 = vmatprep.subr.mxu0 0.0
    %1570 = vmatpush1.msra.mxu0 %v554
    %1571 = vmatprep.subr.mxu0 0.0
    %1572 = vmatpush1.msra.mxu0 %v553
    %1573 = vmatprep.subr.mxu0 0.0
    %1574 = vmatpush1.msra.mxu0 %v552
    %1575 = vmatprep.subr.mxu0 0.0
    %1576 = vmatpush1.msra.mxu0 %v551
    %1577 = vmatprep.subr.mxu0 0.0
    %1578 = vmatpush1.msra.mxu0 %v550
    %1579 = vmatprep.subr.mxu0 0.0
    %1580 = vmatpush1.msra.mxu0 %v549
    %1581 = vmatprep.subr.mxu0 0.0
    %1582 = vmatpush1.msra.mxu0 %v548
    %1583 = vmatprep.subr.mxu0 0.0
    %1584 = vmatpush1.msra.mxu0 %v547
    %1585 = vmatprep.subr.mxu0 0.0
    %1586 = vmatpush1.msra.mxu0 %v546
    %1587 = vmatprep.subr.mxu0 0.0
    %1588 = vmatpush1.msra.mxu0 %v545
    %1589 = vmatprep.subr.mxu0 0.0
    %1590 = vmatpush1.msra.mxu0 %v544
    %1591 = vmatprep.subr.mxu0 0.0
    %1592 = vmatpush1.msra.mxu0 %v543
    %1593 = vmatprep.subr.mxu0 0.0
    %1594 = vmatpush1.msra.mxu0 %v542
    %1595 = vmatprep.subr.mxu0 0.0
    %1596 = vmatpush1.msra.mxu0 %v541
    %1597 = vmatprep.subr.mxu0 0.0
    %1598 = vmatpush2.msra.mxu0 %v572
    %1599 = vmatprep.subr.mxu0 0.0
    %1600 = vmatpush2.msra.mxu0 %v571
    %1601 = vmatprep.subr.mxu0 0.0
    %1602 = vmatpush2.msra.mxu0 %v570
    %1603 = vmatprep.subr.mxu0 0.0
    %1604 = vmatpush2.msra.mxu0 %v569
    %1605 = vmatprep.subr.mxu0 0.0
    %1606 = vmatpush2.msra.mxu0 %v568
    %1607 = vmatprep.subr.mxu0 0.0
    %1608 = vmatpush2.msra.mxu0 %v567
    %1609 = vmatprep.subr.mxu0 0.0
    %1610 = vmatpush2.msra.mxu0 %v566
    %1611 = vmatprep.subr.mxu0 0.0
    %1612 = vmatpush2.msra.mxu0 %v565
    %1613 = vmatprep.subr.mxu0 0.0
    %1614 = vmatpush2.msra.mxu0 %v564
    %1615 = vmatprep.subr.mxu0 0.0
    %1616 = vmatpush2.msra.mxu0 %v563
    %1617 = vmatprep.subr.mxu0 0.0
    %1618 = vmatpush2.msra.mxu0 %v562
    %1619 = vmatprep.subr.mxu0 0.0
    %1620 = vmatpush2.msra.mxu0 %v561
    %1621 = vmatprep.subr.mxu0 0.0
    %1622 = vmatpush2.msra.mxu0 %v560
    %1623 = vmatprep.subr.mxu0 0.0
    %1624 = vmatpush2.msra.mxu0 %v559
    %1625 = vmatprep.subr.mxu0 0.0
    %1626 = vmatpush2.msra.mxu0 %v558
    %1627 = vmatprep.subr.mxu0 0.0
    %1628 = vmatpush2.msra.mxu0 %v557
    %1629 = vmatprep.mubr.f32.mxu0 %v1474
    %1630 = vmatmul.mubr.f32.gmra.mxu0 %v1564
    %v1631 = vpop.f32.mrf.mxu0
    %v1632 = vadd.f32 %v668, %v1631
    %v1633 = vpop.f32.mrf.mxu0
    %1634 = vdwg.mxu0
    %v1635 = vxor.u32 %v1632, 2147483648
    %v1636 = vmul.f32 %v1635, 1.442695
    %v1637 = vpow.pop %v1636
    %v1638 = vadd.f32 %v1637, 1.0
    %v1639 = vrcp.pop %v1638
    %v1640 = vmul.f32 1.0, %v1639
    %v1641 = vmul.f32 %v1640, %v523
    %v1642 = vadd.f32 %v1641, %v524
    %1643 = vrot.lane.b32.xlu0 %v1642, 96
    %v1644 = vpop.permute.xlu0 %1643
    %1645 = vrot.lane.b32.xlu0 %v1642, 64
    %v1646 = vpop.permute.xlu0 %1645
    %1647 = vrot.lane.b32.xlu0 %v1642, 32
    %v1648 = vpop.permute.xlu0 %1647
    %v1649 = vmul.f32 %v1644, %v1472
    %v1650 = vmul.f32 %v1642, %v1646
    %v1651 = vadd.f32 %v1649, %v1650
    %v1652 = vtanh.pop %v1651
    %v1653 = vmul.f32 %v1648, %v1652
    %1654 = vmatprep.subr.mxu0 0.0
    %1655 = vmatpush1.msra.mxu0 %v540
    %1656 = vmatprep.subr.mxu0 0.0
    %1657 = vmatpush1.msra.mxu0 %v539
    %1658 = vmatprep.subr.mxu0 0.0
    %1659 = vmatpush1.msra.mxu0 %v538
    %1660 = vmatprep.subr.mxu0 0.0
    %1661 = vmatpush1.msra.mxu0 %v537
    %1662 = vmatprep.subr.mxu0 0.0
    %1663 = vmatpush1.msra.mxu0 %v536
    %1664 = vmatprep.subr.mxu0 0.0
    %1665 = vmatpush1.msra.mxu0 %v535
    %1666 = vmatprep.subr.mxu0 0.0
    %1667 = vmatpush1.msra.mxu0 %v534
    %1668 = vmatprep.subr.mxu0 0.0
    %1669 = vmatpush1.msra.mxu0 %v533
    %1670 = vmatprep.subr.mxu0 0.0
    %1671 = vmatpush1.msra.mxu0 %v532
    %1672 = vmatprep.subr.mxu0 0.0
    %1673 = vmatpush1.msra.mxu0 %v531
    %1674 = vmatprep.subr.mxu0 0.0
    %1675 = vmatpush1.msra.mxu0 %v530
    %1676 = vmatprep.subr.mxu0 0.0
    %1677 = vmatpush1.msra.mxu0 %v529
    %1678 = vmatprep.subr.mxu0 0.0
    %1679 = vmatpush1.msra.mxu0 %v528
    %1680 = vmatprep.subr.mxu0 0.0
    %1681 = vmatpush1.msra.mxu0 %v527
    %1682 = vmatprep.subr.mxu0 0.0
    %1683 = vmatpush1.msra.mxu0 %v526
    %1684 = vmatprep.subr.mxu0 0.0
    %1685 = vmatpush1.msra.mxu0 %v525
    %1686 = vmatprep.subr.mxu0 0.0
    %1687 = vmatpush2.msra.mxu0 0.0
    %1688 = vmatprep.subr.mxu0 0.0
    %1689 = vmatpush2.msra.mxu0 0.0
    %1690 = vmatprep.subr.mxu0 0.0
    %1691 = vmatpush2.msra.mxu0 0.0
    %1692 = vmatprep.subr.mxu0 0.0
    %1693 = vmatpush2.msra.mxu0 0.0
    %1694 = vmatprep.subr.mxu0 0.0
    %1695 = vmatpush2.msra.mxu0 0.0
    %1696 = vmatprep.subr.mxu0 0.0
    %1697 = vmatpush2.msra.mxu0 0.0
    %1698 = vmatprep.subr.mxu0 0.0
    %1699 = vmatpush2.msra.mxu0 0.0
    %1700 = vmatprep.subr.mxu0 0.0
    %1701 = vmatpush2.msra.mxu0 0.0
    %1702 = vmatprep.subr.mxu0 0.0
    %1703 = vmatpush2.msra.mxu0 0.0
    %1704 = vmatprep.subr.mxu0 0.0
    %1705 = vmatpush2.msra.mxu0 0.0
    %1706 = vmatprep.subr.mxu0 0.0
    %1707 = vmatpush2.msra.mxu0 0.0
    %1708 = vmatprep.subr.mxu0 0.0
    %1709 = vmatpush2.msra.mxu0 0.0
    %1710 = vmatprep.subr.mxu0 0.0
    %1711 = vmatpush2.msra.mxu0 0.0
    %1712 = vmatprep.subr.mxu0 0.0
    %1713 = vmatpush2.msra.mxu0 0.0
    %1714 = vmatprep.subr.mxu0 0.0
    %1715 = vmatpush2.msra.mxu0 0.0
    %1716 = vmatprep.subr.mxu0 0.0
    %1717 = vmatpush2.msra.mxu0 0.0
    %1718 = vmatprep.mubr.f32.mxu0 0.0
    %1719 = vmatmul.mubr.f32.gmra.mxu0 %v1564
    %v1720 = vpop.f32.mrf.mxu0
    %v1721 = vadd.f32 0.0, %v1720
    %v1722 = vpop.f32.mrf.mxu0
    %1723 = vdwg.mxu0
    %v1724 = vadd.f32 %v512, %v1721
    %v1725 = vxor.u32 %v1724, 2147483648
    %v1726 = vmul.f32 %v1725, 1.442695
    %v1727 = vpow.pop %v1726
    %v1728 = vadd.f32 %v1727, 1.0
    %v1729 = vrcp.pop %v1728
    %v1730 = vmul.f32 1.0, %v1729
    %v1731 = vmul.f32 %v1730, %v523
    %v1732 = vadd.f32 %v1731, %v524
    %1733 = vrot.lane.b32.xlu0 %v1732, 96
    %v1734 = vpop.permute.xlu0 %1733
    %1735 = vrot.lane.b32.xlu0 %v1732, 64
    %v1736 = vpop.permute.xlu0 %1735
    %1737 = vrot.lane.b32.xlu0 %v1732, 32
    %v1738 = vpop.permute.xlu0 %1737
    %v1739 = vmul.f32 %v1734, %v1562
    %v1740 = vmul.f32 %v1732, %v1736
    %v1741 = vadd.f32 %v1739, %v1740
    %v1742 = vtanh.pop %v1741
    %v1743 = vmul.f32 %v1738, %v1742
    %1744 = vmatprep.subr.mxu0 0.0
    %1745 = vmatpush1.msra.mxu0 %v556
    %1746 = vmatprep.subr.mxu0 0.0
    %1747 = vmatpush1.msra.mxu0 %v555
    %1748 = vmatprep.subr.mxu0 0.0
    %1749 = vmatpush1.msra.mxu0 %v554
    %1750 = vmatprep.subr.mxu0 0.0
    %1751 = vmatpush1.msra.mxu0 %v553
    %1752 = vmatprep.subr.mxu0 0.0
    %1753 = vmatpush1.msra.mxu0 %v552
    %1754 = vmatprep.subr.mxu0 0.0
    %1755 = vmatpush1.msra.mxu0 %v551
    %1756 = vmatprep.subr.mxu0 0.0
    %1757 = vmatpush1.msra.mxu0 %v550
    %1758 = vmatprep.subr.mxu0 0.0
    %1759 = vmatpush1.msra.mxu0 %v549
    %1760 = vmatprep.subr.mxu0 0.0
    %1761 = vmatpush1.msra.mxu0 %v548
    %1762 = vmatprep.subr.mxu0 0.0
    %1763 = vmatpush1.msra.mxu0 %v547
    %1764 = vmatprep.subr.mxu0 0.0
    %1765 = vmatpush1.msra.mxu0 %v546
    %1766 = vmatprep.subr.mxu0 0.0
    %1767 = vmatpush1.msra.mxu0 %v545
    %1768 = vmatprep.subr.mxu0 0.0
    %1769 = vmatpush1.msra.mxu0 %v544
    %1770 = vmatprep.subr.mxu0 0.0
    %1771 = vmatpush1.msra.mxu0 %v543
    %1772 = vmatprep.subr.mxu0 0.0
    %1773 = vmatpush1.msra.mxu0 %v542
    %1774 = vmatprep.subr.mxu0 0.0
    %1775 = vmatpush1.msra.mxu0 %v541
    %1776 = vmatprep.subr.mxu0 0.0
    %1777 = vmatpush2.msra.mxu0 %v572
    %1778 = vmatprep.subr.mxu0 0.0
    %1779 = vmatpush2.msra.mxu0 %v571
    %1780 = vmatprep.subr.mxu0 0.0
    %1781 = vmatpush2.msra.mxu0 %v570
    %1782 = vmatprep.subr.mxu0 0.0
    %1783 = vmatpush2.msra.mxu0 %v569
    %1784 = vmatprep.subr.mxu0 0.0
    %1785 = vmatpush2.msra.mxu0 %v568
    %1786 = vmatprep.subr.mxu0 0.0
    %1787 = vmatpush2.msra.mxu0 %v567
    %1788 = vmatprep.subr.mxu0 0.0
    %1789 = vmatpush2.msra.mxu0 %v566
    %1790 = vmatprep.subr.mxu0 0.0
    %1791 = vmatpush2.msra.mxu0 %v565
    %1792 = vmatprep.subr.mxu0 0.0
    %1793 = vmatpush2.msra.mxu0 %v564
    %1794 = vmatprep.subr.mxu0 0.0
    %1795 = vmatpush2.msra.mxu0 %v563
    %1796 = vmatprep.subr.mxu0 0.0
    %1797 = vmatpush2.msra.mxu0 %v562
    %1798 = vmatprep.subr.mxu0 0.0
    %1799 = vmatpush2.msra.mxu0 %v561
    %1800 = vmatprep.subr.mxu0 0.0
    %1801 = vmatpush2.msra.mxu0 %v560
    %1802 = vmatprep.subr.mxu0 0.0
    %1803 = vmatpush2.msra.mxu0 %v559
    %1804 = vmatprep.subr.mxu0 0.0
    %1805 = vmatpush2.msra.mxu0 %v558
    %1806 = vmatprep.subr.mxu0 0.0
    %1807 = vmatpush2.msra.mxu0 %v557
    %1808 = vmatprep.mubr.f32.mxu0 %v1653
    %1809 = vmatmul.mubr.f32.gmra.mxu0 %v1743
    %v1810 = vpop.f32.mrf.mxu0
    %v1811 = vadd.f32 %v668, %v1810
    %v1812 = vpop.f32.mrf.mxu0
    %1813 = vdwg.mxu0
    %v1814 = vxor.u32 %v1811, 2147483648
    %v1815 = vmul.f32 %v1814, 1.442695
    %v1816 = vpow.pop %v1815
    %v1817 = vadd.f32 %v1816, 1.0
    %v1818 = vrcp.pop %v1817
    %v1819 = vmul.f32 1.0, %v1818
    %v1820 = vmul.f32 %v1819, %v523
    %v1821 = vadd.f32 %v1820, %v524
    %1822 = vrot.lane.b32.xlu0 %v1821, 96
    %v1823 = vpop.permute.xlu0 %1822
    %1824 = vrot.lane.b32.xlu0 %v1821, 64
    %v1825 = vpop.permute.xlu0 %1824
    %1826 = vrot.lane.b32.xlu0 %v1821, 32
    %v1827 = vpop.permute.xlu0 %1826
    %v1828 = vmul.f32 %v1823, %v1651
    %v1829 = vmul.f32 %v1821, %v1825
    %v1830 = vadd.f32 %v1828, %v1829
    %v1831 = vtanh.pop %v1830
    %v1832 = vmul.f32 %v1827, %v1831
    %1833 = vmatprep.subr.mxu0 0.0
    %1834 = vmatpush1.msra.mxu0 %v540
    %1835 = vmatprep.subr.mxu0 0.0
    %1836 = vmatpush1.msra.mxu0 %v539
    %1837 = vmatprep.subr.mxu0 0.0
    %1838 = vmatpush1.msra.mxu0 %v538
    %1839 = vmatprep.subr.mxu0 0.0
    %1840 = vmatpush1.msra.mxu0 %v537
    %1841 = vmatprep.subr.mxu0 0.0
    %1842 = vmatpush1.msra.mxu0 %v536
    %1843 = vmatprep.subr.mxu0 0.0
    %1844 = vmatpush1.msra.mxu0 %v535
    %1845 = vmatprep.subr.mxu0 0.0
    %1846 = vmatpush1.msra.mxu0 %v534
    %1847 = vmatprep.subr.mxu0 0.0
    %1848 = vmatpush1.msra.mxu0 %v533
    %1849 = vmatprep.subr.mxu0 0.0
    %1850 = vmatpush1.msra.mxu0 %v532
    %1851 = vmatprep.subr.mxu0 0.0
    %1852 = vmatpush1.msra.mxu0 %v531
    %1853 = vmatprep.subr.mxu0 0.0
    %1854 = vmatpush1.msra.mxu0 %v530
    %1855 = vmatprep.subr.mxu0 0.0
    %1856 = vmatpush1.msra.mxu0 %v529
    %1857 = vmatprep.subr.mxu0 0.0
    %1858 = vmatpush1.msra.mxu0 %v528
    %1859 = vmatprep.subr.mxu0 0.0
    %1860 = vmatpush1.msra.mxu0 %v527
    %1861 = vmatprep.subr.mxu0 0.0
    %1862 = vmatpush1.msra.mxu0 %v526
    %1863 = vmatprep.subr.mxu0 0.0
    %1864 = vmatpush1.msra.mxu0 %v525
    %1865 = vmatprep.subr.mxu0 0.0
    %1866 = vmatpush2.msra.mxu0 0.0
    %1867 = vmatprep.subr.mxu0 0.0
    %1868 = vmatpush2.msra.mxu0 0.0
    %1869 = vmatprep.subr.mxu0 0.0
    %1870 = vmatpush2.msra.mxu0 0.0
    %1871 = vmatprep.subr.mxu0 0.0
    %1872 = vmatpush2.msra.mxu0 0.0
    %1873 = vmatprep.subr.mxu0 0.0
    %1874 = vmatpush2.msra.mxu0 0.0
    %1875 = vmatprep.subr.mxu0 0.0
    %1876 = vmatpush2.msra.mxu0 0.0
    %1877 = vmatprep.subr.mxu0 0.0
    %1878 = vmatpush2.msra.mxu0 0.0
    %1879 = vmatprep.subr.mxu0 0.0
    %1880 = vmatpush2.msra.mxu0 0.0
    %1881 = vmatprep.subr.mxu0 0.0
    %1882 = vmatpush2.msra.mxu0 0.0
    %1883 = vmatprep.subr.mxu0 0.0
    %1884 = vmatpush2.msra.mxu0 0.0
    %1885 = vmatprep.subr.mxu0 0.0
    %1886 = vmatpush2.msra.mxu0 0.0
    %1887 = vmatprep.subr.mxu0 0.0
    %1888 = vmatpush2.msra.mxu0 0.0
    %1889 = vmatprep.subr.mxu0 0.0
    %1890 = vmatpush2.msra.mxu0 0.0
    %1891 = vmatprep.subr.mxu0 0.0
    %1892 = vmatpush2.msra.mxu0 0.0
    %1893 = vmatprep.subr.mxu0 0.0
    %1894 = vmatpush2.msra.mxu0 0.0
    %1895 = vmatprep.subr.mxu0 0.0
    %1896 = vmatpush2.msra.mxu0 0.0
    %1897 = vmatprep.mubr.f32.mxu0 0.0
    %1898 = vmatmul.mubr.f32.gmra.mxu0 %v1743
    %v1899 = vpop.f32.mrf.mxu0
    %v1900 = vadd.f32 0.0, %v1899
    %v1901 = vpop.f32.mrf.mxu0
    %1902 = vdwg.mxu0
    %v1903 = vadd.f32 %v517, %v1900
    %v1904 = vxor.u32 %v1903, 2147483648
    %v1905 = vmul.f32 %v1904, 1.442695
    %v1906 = vpow.pop %v1905
    %v1907 = vadd.f32 %v1906, 1.0
    %v1908 = vrcp.pop %v1907
    %v1909 = vmul.f32 1.0, %v1908
    %v1910 = vmul.f32 %v1909, %v523
    %v1911 = vadd.f32 %v1910, %v524
    %1912 = vrot.lane.b32.xlu0 %v1911, 96
    %v1913 = vpop.permute.xlu0 %1912
    %1914 = vrot.lane.b32.xlu0 %v1911, 64
    %v1915 = vpop.permute.xlu0 %1914
    %1916 = vrot.lane.b32.xlu0 %v1911, 32
    %v1917 = vpop.permute.xlu0 %1916
    %v1918 = vmul.f32 %v1913, %v1741
    %v1919 = vmul.f32 %v1911, %v1915
    %v1920 = vadd.f32 %v1918, %v1919
    %v1921 = vtanh.pop %v1920
    %v1922 = vmul.f32 %v1917, %v1921
    %1923 = vmatprep.subr.mxu0 0.0
    %1924 = vmatpush1.msra.mxu0 %v556
    %1925 = vmatprep.subr.mxu0 0.0
    %1926 = vmatpush1.msra.mxu0 %v555
    %1927 = vmatprep.subr.mxu0 0.0
    %1928 = vmatpush1.msra.mxu0 %v554
    %1929 = vmatprep.subr.mxu0 0.0
    %1930 = vmatpush1.msra.mxu0 %v553
    %1931 = vmatprep.subr.mxu0 0.0
    %1932 = vmatpush1.msra.mxu0 %v552
    %1933 = vmatprep.subr.mxu0 0.0
    %1934 = vmatpush1.msra.mxu0 %v551
    %1935 = vmatprep.subr.mxu0 0.0
    %1936 = vmatpush1.msra.mxu0 %v550
    %1937 = vmatprep.subr.mxu0 0.0
    %1938 = vmatpush1.msra.mxu0 %v549
    %1939 = vmatprep.subr.mxu0 0.0
    %1940 = vmatpush1.msra.mxu0 %v548
    %1941 = vmatprep.subr.mxu0 0.0
    %1942 = vmatpush1.msra.mxu0 %v547
    %1943 = vmatprep.subr.mxu0 0.0
    %1944 = vmatpush1.msra.mxu0 %v546
    %1945 = vmatprep.subr.mxu0 0.0
    %1946 = vmatpush1.msra.mxu0 %v545
    %1947 = vmatprep.subr.mxu0 0.0
    %1948 = vmatpush1.msra.mxu0 %v544
    %1949 = vmatprep.subr.mxu0 0.0
    %1950 = vmatpush1.msra.mxu0 %v543
    %1951 = vmatprep.subr.mxu0 0.0
    %1952 = vmatpush1.msra.mxu0 %v542
    %1953 = vmatprep.subr.mxu0 0.0
    %1954 = vmatpush1.msra.mxu0 %v541
    %1955 = vmatprep.subr.mxu0 0.0
    %1956 = vmatpush2.msra.mxu0 %v572
    %1957 = vmatprep.subr.mxu0 0.0
    %1958 = vmatpush2.msra.mxu0 %v571
    %1959 = vmatprep.subr.mxu0 0.0
    %1960 = vmatpush2.msra.mxu0 %v570
    %1961 = vmatprep.subr.mxu0 0.0
    %1962 = vmatpush2.msra.mxu0 %v569
    %1963 = vmatprep.subr.mxu0 0.0
    %1964 = vmatpush2.msra.mxu0 %v568
    %1965 = vmatprep.subr.mxu0 0.0
    %1966 = vmatpush2.msra.mxu0 %v567
    %1967 = vmatprep.subr.mxu0 0.0
    %1968 = vmatpush2.msra.mxu0 %v566
    %1969 = vmatprep.subr.mxu0 0.0
    %1970 = vmatpush2.msra.mxu0 %v565
    %1971 = vmatprep.subr.mxu0 0.0
    %1972 = vmatpush2.msra.mxu0 %v564
    %1973 = vmatprep.subr.mxu0 0.0
    %1974 = vmatpush2.msra.mxu0 %v563
    %1975 = vmatprep.subr.mxu0 0.0
    %1976 = vmatpush2.msra.mxu0 %v562
    %1977 = vmatprep.subr.mxu0 0.0
    %1978 = vmatpush2.msra.mxu0 %v561
    %1979 = vmatprep.subr.mxu0 0.0
    %1980 = vmatpush2.msra.mxu0 %v560
    %1981 = vmatprep.subr.mxu0 0.0
    %1982 = vmatpush2.msra.mxu0 %v559
    %1983 = vmatprep.subr.mxu0 0.0
    %1984 = vmatpush2.msra.mxu0 %v558
    %1985 = vmatprep.subr.mxu0 0.0
    %1986 = vmatpush2.msra.mxu0 %v557
    %1987 = vmatprep.mubr.f32.mxu0 %v1832
    %1988 = vmatmul.mubr.f32.gmra.mxu0 %v1922
    %v1989 = vpop.f32.mrf.mxu0
    %v1990 = vadd.f32 %v668, %v1989
    %v1991 = vpop.f32.mrf.mxu0
    %1992 = vdwg.mxu0
    %v1993 = vxor.u32 %v1990, 2147483648
    %v1994 = vmul.f32 %v1993, 1.442695
    %v1995 = vpow.pop %v1994
    %v1996 = vadd.f32 %v1995, 1.0
    %v1997 = vrcp.pop %v1996
    %v1998 = vmul.f32 1.0, %v1997
    %v1999 = vmul.f32 %v1998, %v523
    %v2000 = vadd.f32 %v1999, %v524
    %2001 = vrot.lane.b32.xlu0 %v2000, 96
    %v2002 = vpop.permute.xlu0 %2001
    %2003 = vrot.lane.b32.xlu0 %v2000, 64
    %v2004 = vpop.permute.xlu0 %2003
    %2005 = vrot.lane.b32.xlu0 %v2000, 32
    %v2006 = vpop.permute.xlu0 %2005
    %v2007 = vmul.f32 %v2002, %v1830
    %v2008 = vmul.f32 %v2000, %v2004
    %v2009 = vadd.f32 %v2007, %v2008
    %v2010 = vtanh.pop %v2009
    %v2011 = vmul.f32 %v2006, %v2010
    %vm2012 = vcmask 254976
    %2013 = vst.msk [vmem:[#allocation8] sm:$0x3] %vm2012, %v1922
    %2014 = vst.msk [vmem:[#allocation10] sm:$0x3] %vm2012, %v1920
    %s2015 = scalar_lea.vmem [#allocation8], 2
    %2016 = vst.msk [vmem:[%s2015] sm:$0x3] %vm2012, %v2011
    %s2017 = scalar_lea.vmem [#allocation10], 2
    %2018 = vst.msk [vmem:[%s2017] sm:$0x3] %vm2012, %v2009
    %v2019 = vld [vmem:[%s6] sm:$0xff]
    %v2020 = vld [vmem:[%s6 + $0x8] sm:$0xff]
    %v2021 = vld [vmem:[%s6 + $0x10] sm:$0xff]
    %v2022 = vld [vmem:[%s6 + $0x18] sm:$0xff]
    %v2023 = vld [vmem:[%s6 + $0x20] sm:$0xff]
    %v2024 = vld [vmem:[%s6 + $0x28] sm:$0xff]
    %v2025 = vld [vmem:[%s6 + $0x30] sm:$0xff]
    %v2026 = vld [vmem:[%s6 + $0x38] sm:$0xff]
    %v2027 = vld [vmem:[%s6 + $0x40] sm:$0xff]
    %v2028 = vld [vmem:[%s6 + $0x48] sm:$0xff]
    %v2029 = vld [vmem:[%s6 + $0x50] sm:$0xff]
    %v2030 = vld [vmem:[%s6 + $0x58] sm:$0xff]
    %v2031 = vld [vmem:[%s6 + $0x60] sm:$0xff]
    %v2032 = vld [vmem:[%s6 + $0x68] sm:$0xff]
    %v2033 = vld [vmem:[%s6 + $0x70] sm:$0xff]
    %v2034 = vld [vmem:[%s6 + $0x78] sm:$0xff]
    %v2035 = vld [vmem:[%s7] sm:$0x1]
    %v2037 = vlaneseq
    %v2038 = vshrl.u32 %v2037, 7
    %v2039 = vsub.s32 0, %v2038
    %v2040 = vrot.slane %v2035, %v2039
    %2042 = vmatprep.subr.mxu0 0.0
    %2043 = vmatpush1.msra.mxu0 %v2034
    %2044 = vmatprep.subr.mxu0 0.0
    %2045 = vmatpush1.msra.mxu0 %v2033
    %2046 = vmatprep.subr.mxu0 0.0
    %2047 = vmatpush1.msra.mxu0 %v2032
    %2048 = vmatprep.subr.mxu0 0.0
    %2049 = vmatpush1.msra.mxu0 %v2031
    %2050 = vmatprep.subr.mxu0 0.0
    %2051 = vmatpush1.msra.mxu0 %v2030
    %2052 = vmatprep.subr.mxu0 0.0
    %2053 = vmatpush1.msra.mxu0 %v2029
    %2054 = vmatprep.subr.mxu0 0.0
    %2055 = vmatpush1.msra.mxu0 %v2028
    %2056 = vmatprep.subr.mxu0 0.0
    %2057 = vmatpush1.msra.mxu0 %v2027
    %2058 = vmatprep.subr.mxu0 0.0
    %2059 = vmatpush1.msra.mxu0 %v2026
    %2060 = vmatprep.subr.mxu0 0.0
    %2061 = vmatpush1.msra.mxu0 %v2025
    %2062 = vmatprep.subr.mxu0 0.0
    %2063 = vmatpush1.msra.mxu0 %v2024
    %2064 = vmatprep.subr.mxu0 0.0
    %2065 = vmatpush1.msra.mxu0 %v2023
    %2066 = vmatprep.subr.mxu0 0.0
    %2067 = vmatpush1.msra.mxu0 %v2022
    %2068 = vmatprep.subr.mxu0 0.0
    %2069 = vmatpush1.msra.mxu0 %v2021
    %2070 = vmatprep.subr.mxu0 0.0
    %2071 = vmatpush1.msra.mxu0 %v2020
    %2072 = vmatprep.subr.mxu0 0.0
    %2073 = vmatpush1.msra.mxu0 %v2019
    %2074 = vmatprep.subr.mxu0 0.0
    %2075 = vmatpush2.msra.mxu0 0.0
    %2076 = vmatprep.subr.mxu0 0.0
    %2077 = vmatpush2.msra.mxu0 0.0
    %2078 = vmatprep.subr.mxu0 0.0
    %2079 = vmatpush2.msra.mxu0 0.0
    %2080 = vmatprep.subr.mxu0 0.0
    %2081 = vmatpush2.msra.mxu0 0.0
    %2082 = vmatprep.subr.mxu0 0.0
    %2083 = vmatpush2.msra.mxu0 0.0
    %2084 = vmatprep.subr.mxu0 0.0
    %2085 = vmatpush2.msra.mxu0 0.0
    %2086 = vmatprep.subr.mxu0 0.0
    %2087 = vmatpush2.msra.mxu0 0.0
    %2088 = vmatprep.subr.mxu0 0.0
    %2089 = vmatpush2.msra.mxu0 0.0
    %2090 = vmatprep.subr.mxu0 0.0
    %2091 = vmatpush2.msra.mxu0 0.0
    %2092 = vmatprep.subr.mxu0 0.0
    %2093 = vmatpush2.msra.mxu0 0.0
    %2094 = vmatprep.subr.mxu0 0.0
    %2095 = vmatpush2.msra.mxu0 0.0
    %2096 = vmatprep.subr.mxu0 0.0
    %2097 = vmatpush2.msra.mxu0 0.0
    %2098 = vmatprep.subr.mxu0 0.0
    %2099 = vmatpush2.msra.mxu0 0.0
    %2100 = vmatprep.subr.mxu0 0.0
    %2101 = vmatpush2.msra.mxu0 0.0
    %2102 = vmatprep.subr.mxu0 0.0
    %2103 = vmatpush2.msra.mxu0 0.0
    %2104 = vmatprep.subr.mxu0 0.0
    %2105 = vmatpush2.msra.mxu0 0.0
    %2106 = vmatprep.mubr.f32.mxu0 0.0
    %2107 = vmatmul.mubr.f32.gmra.mxu0 %v2011
    %v2108 = vpop.f32.mrf.mxu0
    %v2109 = vadd.f32 %v2040, %v2108
    %v2110 = vpop.f32.mrf.mxu0
    %2111 = vdwg.mxu0
    %vm2112 = vcmask 517120
    %2113 = vst.msk [vmem:[#allocation7] sm:$0x3] %vm2112, %v2109
    // Predicated region
    $region34: #{charrnn_forward.1} parent=1 // pred_check
      _
    $region35: #{charrnn_forward.1} parent=1 // pred_check_branch
      %2115 = sbr.rel (0) target = $region37
    $region36: #{charrnn_forward.1} parent=1 // pred_region
      %s2117 = ssub.s32 32, 32
      %2118 = vsyncadd [#allocation6], %s2117
      %s2120 = sshll.u32 [#allocation7], 4
      %s2121 = int_to_ptr.vmem [resolvable:$true] %s2120
      %2123 = dma.vmem_to_hbm [thread:$0]  %s2121, 32, %s8, [#allocation6]
    $region37: #{charrnn_forward.1} parent=1 // pred_fallthru
      _
    // Predicated region
    $region38: #{charrnn_forward.1} parent=1 // pred_check
      _
    $region39: #{charrnn_forward.1} parent=1 // pred_check_branch
      %2125 = sbr.rel (0) target = $region41
    $region40: #{charrnn_forward.1} parent=1 // pred_region
      %s2127 = ssub.s32 64, 64
      %2128 = vsyncadd [#allocation9], %s2127
      %s2129 = sshll.u32 [#allocation8], 4
      %s2130 = int_to_ptr.vmem [resolvable:$true] %s2129
      %2135 = dma.vmem_to_hbm [thread:$0]  %s2130, 64, %s9, [#allocation9], 32, 32, 2
    $region41: #{charrnn_forward.1} parent=1 // pred_fallthru
      _
    // Predicated region
    $region42: #{charrnn_forward.1} parent=1 // pred_check
      _
    $region43: #{charrnn_forward.1} parent=1 // pred_check_branch
      %2137 = sbr.rel (0) target = $region45
    $region44: #{charrnn_forward.1} parent=1 // pred_region
      %s2139 = ssub.s32 64, 64
      %2140 = vsyncadd [#allocation9], %s2139
      %s2141 = sshll.u32 [#allocation10], 4
      %s2142 = int_to_ptr.vmem [resolvable:$true] %s2141
      %2147 = dma.vmem_to_hbm [thread:$0]  %s2142, 64, %s10, [#allocation9], 32, 32, 2
    $region45: #{charrnn_forward.1} parent=1 // pred_fallthru
      _
    // Predicated region
    $region46: #{charrnn_forward.1} parent=1 // pred_check
      _
    $region47: #{charrnn_forward.1} parent=1 // pred_check_branch
      %2149 = sbr.rel (0) target = $region49
    $region48: #{charrnn_forward.1} parent=1 // pred_region
      %2150 = dma.done [#allocation6], 32
    $region49: #{charrnn_forward.1} parent=1 // pred_fallthru
      _
    // Predicated region
    $region50: #{charrnn_forward.1} parent=1 // pred_check
      _
    $region51: #{charrnn_forward.1} parent=1 // pred_check_branch
      %2152 = sbr.rel (0) target = $region53
    $region52: #{charrnn_forward.1} parent=1 // pred_region
      %2153 = dma.done [#allocation9], 64
    $region53: #{charrnn_forward.1} parent=1 // pred_fallthru
      _
    // Predicated region
    $region54: #{charrnn_forward.1} parent=1 // pred_check
      _
    $region55: #{charrnn_forward.1} parent=1 // pred_check_branch
      %2155 = sbr.rel (0) target = $region57
    $region56: #{charrnn_forward.1} parent=1 // pred_region
      %2156 = dma.done [#allocation9], 64
    $region57: #{charrnn_forward.1} parent=1 // pred_fallthru
      _
    %2157 = vsyncpa [#allocation5], 1
    %2158 = vsyncpa [#allocation6], 1
    %2159 = vsyncpa [#allocation9], 1

</llo_original>
